<compile_context>
chip_gen: v6e
topology: v6e:2x2x1
jax: 0.10.0
libtpu: 0.0.40
codegen_flags: <defaults>
</compile_context>

<pallas_src>
import functools

import numpy as np
import jax
import jax.numpy as jnp
from jax import lax
from jax.experimental import pallas as pl
from jax.experimental.pallas import tpu as pltpu


def _ceil_to(n, m):
    return ((n + m - 1) // m) * m


# ------------------------- one-time weight preprocessing -------------------- #

def prepare_params(params, obs_shape, num_actions):
    """Convert PyTorch-layout params into batch-independent fused-layer matrices.

    Feature ordering everywhere is NCHW-flatten (c * H * W + y * W + x), so the
    conv3 output rows directly match torch's x.flatten(1, -1).
    """
    c_in, h, w = obs_shape
    w1 = np.asarray(params["w1"]); b1 = np.asarray(params["b1"])
    w2 = np.asarray(params["w2"]); b2 = np.asarray(params["b2"])
    w3 = np.asarray(params["w3"]); b3 = np.asarray(params["b3"])
    wa = np.asarray(params["wa"]); ba = np.asarray(params["ba"]).reshape(-1)
    wc1 = np.asarray(params["wc1"]); bc1 = np.asarray(params["bc1"]).reshape(-1)
    wc2 = np.asarray(params["wc2"]); bc2 = np.asarray(params["bc2"]).reshape(-1)
    wd = np.asarray(params["wd"]); bd = np.asarray(params["bd"]).reshape(-1)

    # spatial sizes through the conv stack
    h1, w1o = h - 1, w - 1               # conv1 (2x2 VALID)
    hp, wpo = h1 // 2, w1o // 2          # 2x2 max-pool (floor)
    h2, w2o = hp - 1, wpo - 1            # conv2
    h3, w3o = h2 - 1, w2o - 1            # conv3
    cout1, cout2, cout3 = w1.shape[0], w2.shape[0], w3.shape[0]

    f0 = c_in * h * w
    f0p = _ceil_to(f0, 128)                      # 243 -> 256
    fpp = _ceil_to(cout1 * hp * wpo, 128)        # pooled features (256)
    f2p = _ceil_to(cout2 * h2 * w2o, 128)        # conv2 features (288 -> 384)
    emb = cout3 * h3 * w3o                       # 128 == torch flatten size
    embp = _ceil_to(emb, 128)
    hid = wa.shape[1] + wc1.shape[1]             # 128 (actor64 || critic64)
    t_rows = _ceil_to(num_actions + 1, 8)        # [logits | value] rows

    # --- conv1 + ReLU + 2x2 max-pool: 4 pool taps stacked along M ---------- #
    w1p = np.zeros((4 * fpp, f0p), np.float32)
    b1p = np.zeros((4 * fpp, 1), np.float32)
    for dr in range(2):
        for dc in range(2):
            base = (dr * 2 + dc) * fpp
            for o in range(cout1):
                for p in range(hp):
                    for q in range(wpo):
                        r = base + o * hp * wpo + p * wpo + q
                        b1p[r, 0] = b1[o]
                        ii, jj = 2 * p + dr, 2 * q + dc
                        for c in range(c_in):
                            for dy in range(2):
                                for dx in range(2):
                                    w1p[r, c * h * w + (ii + dy) * w + (jj + dx)] = \
                                        w1[o, c, dy, dx]

    def conv_matrix(wc, bc, cin, hin, win, in_pad, out_pad):
        cout = wc.shape[0]
        hout, wout = hin - 1, win - 1
        m = np.zeros((out_pad, in_pad), np.float32)
        bvec = np.zeros((out_pad, 1), np.float32)
        for o in range(cout):
            for i in range(hout):
                for j in range(wout):
                    r = o * hout * wout + i * wout + j
                    bvec[r, 0] = bc[o]
                    for c in range(cin):
                        for dy in range(2):
                            for dx in range(2):
                                m[r, c * hin * win + (i + dy) * win + (j + dx)] = \
                                    wc[o, c, dy, dx]
        return m, bvec

    w2m, b2v = conv_matrix(w2, b2, cout1, hp, wpo, fpp, f2p)
    w3m, b3v = conv_matrix(w3, b3, cout2, h2, w2o, f2p, embp)

    # --- fused actor||critic first layer on the flattened conv3 features --- #
    whm = np.zeros((hid, embp), np.float32)
    whm[:wa.shape[1], :emb] = wa.T
    whm[wa.shape[1]:, :emb] = wc1.T
    bhv = np.concatenate([ba, bc1]).astype(np.float32)[:, None]

    # --- fused tail: rows [0, A) = logits, row A = value -------------------- #
    wtm = np.zeros((t_rows, hid), np.float32)
    wtm[:num_actions, :wa.shape[1]] = wd.T
    wtm[num_actions, wa.shape[1]:] = wc2[:, 0]
    btv = np.zeros((t_rows, 1), np.float32)
    btv[:num_actions, 0] = bd
    btv[num_actions, 0] = bc2[0]

    prep = dict(
        w1p=jnp.asarray(w1p), b1p=jnp.asarray(b1p),
        w2m=jnp.asarray(w2m), b2v=jnp.asarray(b2v),
        w3m=jnp.asarray(w3m), b3v=jnp.asarray(b3v),
        whm=jnp.asarray(whm), bhv=jnp.asarray(bhv),
        wtm=jnp.asarray(wtm), btv=jnp.asarray(btv),
    )
    dims = dict(f0=f0, f0p=f0p, t_rows=t_rows, out_rows=2 * t_rows)
    return prep, dims


# ------------------------------ fused kernel -------------------------------- #

def _fused_policy_kernel(x_ref, w1p_ref, b1p_ref, w2_ref, b2_ref, w3_ref, b3_ref,
                         wh_ref, bh_ref, wt_ref, bt_ref, out_ref, *, num_actions):
    def mm(a, b):
        return jnp.dot(a, b, preferred_element_type=jnp.float32)

    x = x_ref[...]                                               # (F0p, bb)

    # conv1 + ReLU + 2x2 max-pool: one matmul emits the 4 pool taps stacked
    # along M; relu-then-max == maxpool(relu(conv1)) since relu is monotone.
    z = jnp.maximum(mm(w1p_ref[...], x) + b1p_ref[...], 0.0)     # (4*Fp, bb)
    fp = w1p_ref.shape[0] // 4
    y = jnp.maximum(jnp.maximum(z[0 * fp:1 * fp], z[1 * fp:2 * fp]),
                    jnp.maximum(z[2 * fp:3 * fp], z[3 * fp:4 * fp]))  # (Fp, bb)

    # conv2 + ReLU, conv3 + ReLU (full 2x2 stencil folded into the matrices)
    y = jnp.maximum(mm(w2_ref[...], y) + b2_ref[...], 0.0)       # (F2p, bb)
    y = jnp.maximum(mm(w3_ref[...], y) + b3_ref[...], 0.0)       # (Embp, bb)

    # fused actor||critic first layer, then fused [logits | value] tail
    hcat = jnp.tanh(mm(wh_ref[...], y) + bh_ref[...])            # (128, bb)
    t = mm(wt_ref[...], hcat) + bt_ref[...]                      # (Trows, bb)

    # log-softmax / mode / per-column entropy over the action (sublane) axis
    a = num_actions
    row = lax.broadcasted_iota(jnp.int32, t.shape, 0)
    is_logit = row < a
    masked = jnp.where(is_logit, t, -1e30)
    m = jnp.max(masked, axis=0, keepdims=True)                   # (1, bb)
    e = jnp.where(is_logit, jnp.exp(t - m), 0.0)
    s = jnp.sum(e, axis=0, keepdims=True)
    logp = t - m - jnp.log(s)                                    # rows < a valid
    p = e / s
    ent = -jnp.sum(p * logp, axis=0, keepdims=True)              # (1, bb)
    action = jnp.min(jnp.where(masked >= m, row.astype(jnp.float32), float(a)),
                     axis=0, keepdims=True)                      # (1, bb)
    value = jnp.sum(jnp.where(row == a, t, 0.0), axis=0, keepdims=True)

    # one full-width lane-dense store:
    #   rows [0, a)     : log-probs
    #   row  a          : value
    #   row  Trows      : mode action
    #   row  Trows + 1  : per-column entropy
    lo = jnp.where(is_logit, logp, 0.0) + jnp.where(row == a, value, 0.0)
    hi = jnp.where(row == 0, action, 0.0) + jnp.where(row == 1, ent, 0.0)
    out_ref[...] = jnp.concatenate([lo, hi], axis=0)             # (2*Trows, bb)


# ------------------------------- wrapper ------------------------------------ #

def _choose_block(batch):
    bp = _ceil_to(max(batch, 1), 128)       # lanes always dense
    bb = 128 if bp <= 512 else 256          # >=2 grid steps once bp >= 256 (v7x)
    bp = _ceil_to(bp, bb)
    return bp, bb


def make_act_fn(prep, dims, num_actions):
    """Returns a jitted act(x_nchw) -> (value, action, action_log_dist, dist_entropy)."""
    weights = (prep["w1p"], prep["b1p"], prep["w2m"], prep["b2v"],
               prep["w3m"], prep["b3v"], prep["whm"], prep["bhv"],
               prep["wtm"], prep["btv"])
    f0, f0p = dims["f0"], dims["f0p"]
    t_rows, out_rows = dims["t_rows"], dims["out_rows"]
    macs = sum(int(w.shape[0]) * int(w.shape[1]) for w in weights[0::2])
    wbytes = sum(int(np.prod(w.shape)) * 4 for w in weights)

    @jax.jit
    def act(x_nchw):
        b = x_nchw.shape[0]
        bp, bb = _choose_block(b)

        # NCHW flatten -> features on sublanes, batch on lanes; pad once.
        x2d = x_nchw.reshape(b, -1).T.astype(jnp.float32)
        x2d = jnp.pad(x2d, ((0, f0p - f0), (0, bp - b)))

        w_specs = [pl.BlockSpec(tuple(wgt.shape), lambda i: (0, 0)) for wgt in weights]
        out = pl.pallas_call(
            functools.partial(_fused_policy_kernel, num_actions=num_actions),
            out_shape=jax.ShapeDtypeStruct((out_rows, bp), jnp.float32),
            grid=(bp // bb,),
            in_specs=[pl.BlockSpec((f0p, bb), lambda i: (0, i))] + w_specs,
            out_specs=pl.BlockSpec((out_rows, bb), lambda i: (0, i)),
            compiler_params=pltpu.CompilerParams(
                dimension_semantics=("parallel",),
                vmem_limit_bytes=32 * 1024 * 1024),
            cost_estimate=pl.CostEstimate(
                flops=2 * macs * bp,
                transcendentals=(128 + t_rows + 2) * bp,
                bytes_accessed=4 * (f0p + out_rows) * bp + wbytes),
        )(x2d, *weights)

        a = num_actions
        logp = out[:a, :b].T                          # (B, A) normalized log-probs
        value = out[a, :b][:, None]                   # (B, 1)
        action = out[t_rows, :b].astype(jnp.int32)[:, None]
        dist_entropy = jnp.mean(out[t_rows + 1, :b])
        return value, action, logp, dist_entropy

    return act


# ----------------------- deterministic parameter init ----------------------- #

def init_params(key, obs_shape, num_actions, final_channels=32):
    c_in, h, w = obs_shape
    emb = ((h - 1) // 2 - 2) * ((w - 1) // 2 - 2) * final_channels
    ks = jax.random.split(key, 12)
    p = {}
    p["w1"] = 0.2 * jax.random.normal(ks[0], (16, c_in, 2, 2), jnp.float32)
    p["b1"] = 0.1 * jax.random.normal(ks[1], (16,), jnp.float32)
    p["w2"] = 0.1 * jax.random.normal(ks[2], (32, 16, 2, 2), jnp.float32)
    p["b2"] = 0.1 * jax.random.normal(ks[3], (32,), jnp.float32)
    p["w3"] = 0.1 * jax.random.normal(ks[4], (final_channels, 32, 2, 2), jnp.float32)
    p["b3"] = 0.1 * jax.random.normal(ks[5], (final_channels,), jnp.float32)
    p["wa"] = 0.1 * jax.random.normal(ks[6], (emb, 64), jnp.float32)
    p["ba"] = 0.05 * jax.random.normal(ks[7], (1, 64), jnp.float32)
    p["wc1"] = 0.1 * jax.random.normal(ks[8], (emb, 64), jnp.float32)
    p["bc1"] = 0.05 * jax.random.normal(ks[9], (1, 64), jnp.float32)
    p["wc2"] = 0.1 * jax.random.normal(ks[10], (64, 1), jnp.float32)
    p["bc2"] = jnp.zeros((1, 1), jnp.float32)
    p["wd"] = 0.01 * jax.random.normal(ks[11], (64, num_actions), jnp.float32)
    p["bd"] = jnp.zeros((1, num_actions), jnp.float32)
    return p


# --------------------------- pure-JAX reference ------------------------------ #

def ref_act(x_nchw, p, num_actions):
    def conv_relu(x, w, b):
        y = lax.conv_general_dilated(x, w, (1, 1), "VALID",
                                     dimension_numbers=("NCHW", "OIHW", "NCHW"))
        return jnp.maximum(y + b[None, :, None, None], 0.0)

    x = conv_relu(x_nchw, p["w1"], p["b1"])
    x = lax.reduce_window(x, -jnp.inf, lax.max, (1, 1, 2, 2), (1, 1, 2, 2), "VALID")
    x = conv_relu(x, p["w2"], p["b2"])
    x = conv_relu(x, p["w3"], p["b3"])
    bsz = x.shape[0]
    xf = x.reshape(bsz, -1)
    h_a = jnp.tanh(xf @ p["wa"] + p["ba"])
    h_c = jnp.tanh(xf @ p["wc1"] + p["bc1"])
    value = h_c @ p["wc2"] + p["bc2"]
    logits = h_a @ p["wd"] + p["bd"]
    logp = jax.nn.log_softmax(logits, axis=-1)
    action = jnp.argmax(logits, axis=-1)[:, None].astype(jnp.int32)
    prob = jnp.exp(logp)
    ent = -(prob * logp).sum(-1).mean()
    return value, action, logp, ent


if __name__ == "__main__":
    num_actions = 7
    obs_shape = (3, 9, 9)   # (C, H, W) -> image_embedding_size = 2*2*32 = 128
    batch = 2

    key = jax.random.PRNGKey(0)
    kx, kp = jax.random.split(key)
    x = jax.random.normal(kx, (batch,) + obs_shape, jnp.float32)
    params = init_params(kp, obs_shape, num_actions)
    prep, dims = prepare_params(params, obs_shape, num_actions)
    act = make_act_fn(prep, dims, num_actions)

    out = act(x)
    value, action, action_log_dist, dist_entropy = jax.block_until_ready(out)

    rv, ra, rl, re = ref_act(x, params, num_actions)
    np.testing.assert_allclose(np.asarray(value), np.asarray(rv), rtol=1e-4, atol=1e-4)
    np.testing.assert_allclose(np.asarray(action_log_dist), np.asarray(rl),
                               rtol=1e-4, atol=1e-4)
    np.testing.assert_allclose(np.asarray(dist_entropy), np.asarray(re),
                               rtol=1e-4, atol=1e-4)
    assert np.array_equal(np.asarray(action), np.asarray(ra))

    print("KERNEL_OK")
</pallas_src>

<mosaic_0001>
module attributes {stable_mosaic.version = 11 : i64} {
  func.func @_fused_policy_kernel(%arg0: i32, %arg1: memref<256x128xf32, #tpu.memory_space<vmem>>, %arg2: memref<1024x256xf32, #tpu.memory_space<vmem>>, %arg3: memref<1024x1xf32, #tpu.memory_space<vmem>>, %arg4: memref<384x256xf32, #tpu.memory_space<vmem>>, %arg5: memref<384x1xf32, #tpu.memory_space<vmem>>, %arg6: memref<128x384xf32, #tpu.memory_space<vmem>>, %arg7: memref<128x1xf32, #tpu.memory_space<vmem>>, %arg8: memref<128x128xf32, #tpu.memory_space<vmem>>, %arg9: memref<128x1xf32, #tpu.memory_space<vmem>>, %arg10: memref<8x128xf32, #tpu.memory_space<vmem>>, %arg11: memref<8x1xf32, #tpu.memory_space<vmem>>, %arg12: memref<16x128xf32, #tpu.memory_space<vmem>>) attributes {dimension_semantics = [#tpu.dimension_semantics<parallel>], iteration_bounds = array<i64: 1>, scalar_prefetch = 0 : i64, scratch_operands = 0 : i64, tpu.core_type = #tpu.core_type<tc>, window_params = [{transform_indices = @transform_0, window_bounds = array<i64: 256, 128>}, {pipeline_mode = #tpu.pipeline_mode<synchronous>, transform_indices = @transform_1, window_bounds = array<i64: 1024, 256>}, {pipeline_mode = #tpu.pipeline_mode<synchronous>, transform_indices = @transform_2, window_bounds = array<i64: 1024, 1>}, {pipeline_mode = #tpu.pipeline_mode<synchronous>, transform_indices = @transform_3, window_bounds = array<i64: 384, 256>}, {pipeline_mode = #tpu.pipeline_mode<synchronous>, transform_indices = @transform_4, window_bounds = array<i64: 384, 1>}, {pipeline_mode = #tpu.pipeline_mode<synchronous>, transform_indices = @transform_5, window_bounds = array<i64: 128, 384>}, {pipeline_mode = #tpu.pipeline_mode<synchronous>, transform_indices = @transform_6, window_bounds = array<i64: 128, 1>}, {pipeline_mode = #tpu.pipeline_mode<synchronous>, transform_indices = @transform_7, window_bounds = array<i64: 128, 128>}, {pipeline_mode = #tpu.pipeline_mode<synchronous>, transform_indices = @transform_8, window_bounds = array<i64: 128, 1>}, {pipeline_mode = #tpu.pipeline_mode<synchronous>, transform_indices = @transform_9, window_bounds = array<i64: 8, 128>}, {pipeline_mode = #tpu.pipeline_mode<synchronous>, transform_indices = @transform_10, window_bounds = array<i64: 8, 1>}, {transform_indices = @transform_11, window_bounds = array<i64: 16, 128>}]} {
    %c0 = arith.constant 0 : index
    %c0_0 = arith.constant 0 : index
    %0 = vector.load %arg1[%c0, %c0_0] : memref<256x128xf32, #tpu.memory_space<vmem>>, vector<256x128xf32>
    %c0_1 = arith.constant 0 : index
    %c0_2 = arith.constant 0 : index
    %1 = vector.load %arg2[%c0_1, %c0_2] : memref<1024x256xf32, #tpu.memory_space<vmem>>, vector<1024x256xf32>
    %cst = arith.constant dense<0.000000e+00> : vector<1024x128xf32>
    %2 = tpu.matmul %1, %0, %cst {dimension_numbers = #tpu.dot_dimension_numbers<[1], [0], [0], [1], [0, 0, 1, 1], [], []>} : vector<1024x256xf32>, vector<256x128xf32>, vector<1024x128xf32> -> vector<1024x128xf32>
    %c0_3 = arith.constant 0 : index
    %c0_4 = arith.constant 0 : index
    %3 = vector.load %arg3[%c0_3, %c0_4] : memref<1024x1xf32, #tpu.memory_space<vmem>>, vector<1024x1xf32>
    %4 = vector.broadcast %3 : vector<1024x1xf32> to vector<1024x128xf32>
    %5 = arith.addf %2, %4 : vector<1024x128xf32>
    %cst_5 = arith.constant 0.000000e+00 : f32
    %6 = vector.broadcast %cst_5 : f32 to vector<1024x128xf32>
    %7 = arith.maximumf %5, %6 : vector<1024x128xf32>
    %8 = vector.extract_strided_slice %7 {offsets = [0, 0], sizes = [256, 128], strides = [1, 1]} : vector<1024x128xf32> to vector<256x128xf32>
    %9 = vector.extract_strided_slice %7 {offsets = [256, 0], sizes = [256, 128], strides = [1, 1]} : vector<1024x128xf32> to vector<256x128xf32>
    %10 = arith.maximumf %8, %9 : vector<256x128xf32>
    %11 = vector.extract_strided_slice %7 {offsets = [512, 0], sizes = [256, 128], strides = [1, 1]} : vector<1024x128xf32> to vector<256x128xf32>
    %12 = vector.extract_strided_slice %7 {offsets = [768, 0], sizes = [256, 128], strides = [1, 1]} : vector<1024x128xf32> to vector<256x128xf32>
    %13 = arith.maximumf %11, %12 : vector<256x128xf32>
    %14 = arith.maximumf %10, %13 : vector<256x128xf32>
    %c0_6 = arith.constant 0 : index
    %c0_7 = arith.constant 0 : index
    %15 = vector.load %arg4[%c0_6, %c0_7] : memref<384x256xf32, #tpu.memory_space<vmem>>, vector<384x256xf32>
    %cst_8 = arith.constant dense<0.000000e+00> : vector<384x128xf32>
    %16 = tpu.matmul %15, %14, %cst_8 {dimension_numbers = #tpu.dot_dimension_numbers<[1], [0], [0], [1], [0, 0, 1, 1], [], []>} : vector<384x256xf32>, vector<256x128xf32>, vector<384x128xf32> -> vector<384x128xf32>
    %c0_9 = arith.constant 0 : index
    %c0_10 = arith.constant 0 : index
    %17 = vector.load %arg5[%c0_9, %c0_10] : memref<384x1xf32, #tpu.memory_space<vmem>>, vector<384x1xf32>
    %18 = vector.broadcast %17 : vector<384x1xf32> to vector<384x128xf32>
    %19 = arith.addf %16, %18 : vector<384x128xf32>
    %cst_11 = arith.constant 0.000000e+00 : f32
    %20 = vector.broadcast %cst_11 : f32 to vector<384x128xf32>
    %21 = arith.maximumf %19, %20 : vector<384x128xf32>
    %c0_12 = arith.constant 0 : index
    %c0_13 = arith.constant 0 : index
    %22 = vector.load %arg6[%c0_12, %c0_13] : memref<128x384xf32, #tpu.memory_space<vmem>>, vector<128x384xf32>
    %cst_14 = arith.constant dense<0.000000e+00> : vector<128x128xf32>
    %23 = tpu.matmul %22, %21, %cst_14 {dimension_numbers = #tpu.dot_dimension_numbers<[1], [0], [0], [1], [0, 0, 1, 1], [], []>} : vector<128x384xf32>, vector<384x128xf32>, vector<128x128xf32> -> vector<128x128xf32>
    %c0_15 = arith.constant 0 : index
    %c0_16 = arith.constant 0 : index
    %24 = vector.load %arg7[%c0_15, %c0_16] : memref<128x1xf32, #tpu.memory_space<vmem>>, vector<128x1xf32>
    %25 = vector.broadcast %24 : vector<128x1xf32> to vector<128x128xf32>
    %26 = arith.addf %23, %25 : vector<128x128xf32>
    %cst_17 = arith.constant 0.000000e+00 : f32
    %27 = vector.broadcast %cst_17 : f32 to vector<128x128xf32>
    %28 = arith.maximumf %26, %27 : vector<128x128xf32>
    %c0_18 = arith.constant 0 : index
    %c0_19 = arith.constant 0 : index
    %29 = vector.load %arg8[%c0_18, %c0_19] : memref<128x128xf32, #tpu.memory_space<vmem>>, vector<128x128xf32>
    %cst_20 = arith.constant dense<0.000000e+00> : vector<128x128xf32>
    %30 = tpu.matmul %29, %28, %cst_20 {dimension_numbers = #tpu.dot_dimension_numbers<[1], [0], [0], [1], [0, 0, 1, 1], [], []>} : vector<128x128xf32>, vector<128x128xf32>, vector<128x128xf32> -> vector<128x128xf32>
    %c0_21 = arith.constant 0 : index
    %c0_22 = arith.constant 0 : index
    %31 = vector.load %arg9[%c0_21, %c0_22] : memref<128x1xf32, #tpu.memory_space<vmem>>, vector<128x1xf32>
    %32 = vector.broadcast %31 : vector<128x1xf32> to vector<128x128xf32>
    %33 = arith.addf %30, %32 : vector<128x128xf32>
    %34 = math.tanh %33 : vector<128x128xf32>
    %c0_23 = arith.constant 0 : index
    %c0_24 = arith.constant 0 : index
    %35 = vector.load %arg10[%c0_23, %c0_24] : memref<8x128xf32, #tpu.memory_space<vmem>>, vector<8x128xf32>
    %cst_25 = arith.constant dense<0.000000e+00> : vector<8x128xf32>
    %36 = tpu.matmul %35, %34, %cst_25 {dimension_numbers = #tpu.dot_dimension_numbers<[1], [0], [0], [1], [0, 0, 1, 1], [], []>} : vector<8x128xf32>, vector<128x128xf32>, vector<8x128xf32> -> vector<8x128xf32>
    %c0_26 = arith.constant 0 : index
    %c0_27 = arith.constant 0 : index
    %37 = vector.load %arg11[%c0_26, %c0_27] : memref<8x1xf32, #tpu.memory_space<vmem>>, vector<8x1xf32>
    %38 = vector.broadcast %37 : vector<8x1xf32> to vector<8x128xf32>
    %39 = arith.addf %36, %38 : vector<8x128xf32>
    %40 = tpu.iota {dimensions = array<i32: 0>} : vector<8x128xi32>
    %c7_i32 = arith.constant 7 : i32
    %41 = vector.broadcast %c7_i32 : i32 to vector<8x128xi32>
    %42 = arith.cmpi slt, %40, %41 : vector<8x128xi32>
    %cst_28 = arith.constant -1.000000e+30 : f32
    %43 = vector.broadcast %cst_28 : f32 to vector<8x128xf32>
    %44 = arith.select %42, %39, %43 : vector<8x128xi1>, vector<8x128xf32>
    %cst_29 = arith.constant dense<0xFF800000> : vector<128xf32>
    %45 = vector.multi_reduction <maximumf>, %44, %cst_29 [0] : vector<8x128xf32> to vector<128xf32>
    %46 = vector.shape_cast %45 : vector<128xf32> to vector<1x128xf32>
    %47 = vector.broadcast %46 : vector<1x128xf32> to vector<8x128xf32>
    %48 = arith.subf %39, %47 : vector<8x128xf32>
    %49 = math.exp %48 : vector<8x128xf32>
    %cst_30 = arith.constant 0.000000e+00 : f32
    %50 = vector.broadcast %cst_30 : f32 to vector<8x128xf32>
    %51 = arith.select %42, %49, %50 : vector<8x128xi1>, vector<8x128xf32>
    %cst_31 = arith.constant dense<0.000000e+00> : vector<128xf32>
    %52 = vector.multi_reduction <add>, %51, %cst_31 [0] : vector<8x128xf32> to vector<128xf32>
    %53 = vector.shape_cast %52 : vector<128xf32> to vector<1x128xf32>
    %54 = vector.broadcast %46 : vector<1x128xf32> to vector<8x128xf32>
    %55 = arith.subf %39, %54 : vector<8x128xf32>
    %56 = math.log %53 : vector<1x128xf32>
    %57 = vector.broadcast %56 : vector<1x128xf32> to vector<8x128xf32>
    %58 = arith.subf %55, %57 : vector<8x128xf32>
    %59 = vector.broadcast %53 : vector<1x128xf32> to vector<8x128xf32>
    %60 = arith.divf %51, %59 : vector<8x128xf32>
    %61 = arith.mulf %60, %58 : vector<8x128xf32>
    %cst_32 = arith.constant dense<0.000000e+00> : vector<128xf32>
    %62 = vector.multi_reduction <add>, %61, %cst_32 [0] : vector<8x128xf32> to vector<128xf32>
    %63 = vector.shape_cast %62 : vector<128xf32> to vector<1x128xf32>
    %cst_33 = arith.constant 0.000000e+00 : f32
    %64 = vector.broadcast %cst_33 : f32 to vector<1x128xf32>
    %65 = arith.subf %64, %63 : vector<1x128xf32>
    %66 = vector.broadcast %46 : vector<1x128xf32> to vector<8x128xf32>
    %67 = arith.cmpf oge, %44, %66 : vector<8x128xf32>
    %68 = arith.sitofp %40 : vector<8x128xi32> to vector<8x128xf32>
    %cst_34 = arith.constant 7.000000e+00 : f32
    %69 = vector.broadcast %cst_34 : f32 to vector<8x128xf32>
    %70 = arith.select %67, %68, %69 : vector<8x128xi1>, vector<8x128xf32>
    %cst_35 = arith.constant dense<0x7F800000> : vector<128xf32>
    %71 = vector.multi_reduction <minimumf>, %70, %cst_35 [0] : vector<8x128xf32> to vector<128xf32>
    %72 = vector.shape_cast %71 : vector<128xf32> to vector<1x128xf32>
    %c7_i32_36 = arith.constant 7 : i32
    %73 = vector.broadcast %c7_i32_36 : i32 to vector<8x128xi32>
    %74 = arith.cmpi eq, %40, %73 : vector<8x128xi32>
    %cst_37 = arith.constant 0.000000e+00 : f32
    %75 = vector.broadcast %cst_37 : f32 to vector<8x128xf32>
    %76 = arith.select %74, %39, %75 : vector<8x128xi1>, vector<8x128xf32>
    %cst_38 = arith.constant dense<0.000000e+00> : vector<128xf32>
    %77 = vector.multi_reduction <add>, %76, %cst_38 [0] : vector<8x128xf32> to vector<128xf32>
    %78 = vector.shape_cast %77 : vector<128xf32> to vector<1x128xf32>
    %cst_39 = arith.constant 0.000000e+00 : f32
    %79 = vector.broadcast %cst_39 : f32 to vector<8x128xf32>
    %80 = arith.select %42, %58, %79 : vector<8x128xi1>, vector<8x128xf32>
    %c7_i32_40 = arith.constant 7 : i32
    %81 = vector.broadcast %c7_i32_40 : i32 to vector<8x128xi32>
    %82 = arith.cmpi eq, %40, %81 : vector<8x128xi32>
    %cst_41 = arith.constant 0.000000e+00 : f32
    %83 = vector.shape_cast %78 : vector<1x128xf32> to vector<1x128xf32>
    %84 = vector.broadcast %83 : vector<1x128xf32> to vector<8x128xf32>
    %85 = vector.broadcast %cst_41 : f32 to vector<8x128xf32>
    %86 = arith.select %82, %84, %85 : vector<8x128xi1>, vector<8x128xf32>
    %87 = arith.addf %80, %86 : vector<8x128xf32>
    %c0_i32 = arith.constant 0 : i32
    %88 = vector.broadcast %c0_i32 : i32 to vector<8x128xi32>
    %89 = arith.cmpi eq, %40, %88 : vector<8x128xi32>
    %cst_42 = arith.constant 0.000000e+00 : f32
    %90 = vector.shape_cast %72 : vector<1x128xf32> to vector<1x128xf32>
    %91 = vector.broadcast %90 : vector<1x128xf32> to vector<8x128xf32>
    %92 = vector.broadcast %cst_42 : f32 to vector<8x128xf32>
    %93 = arith.select %89, %91, %92 : vector<8x128xi1>, vector<8x128xf32>
    %c1_i32 = arith.constant 1 : i32
    %94 = vector.broadcast %c1_i32 : i32 to vector<8x128xi32>
    %95 = arith.cmpi eq, %40, %94 : vector<8x128xi32>
    %cst_43 = arith.constant 0.000000e+00 : f32
    %96 = vector.shape_cast %65 : vector<1x128xf32> to vector<1x128xf32>
    %97 = vector.broadcast %96 : vector<1x128xf32> to vector<8x128xf32>
    %98 = vector.broadcast %cst_43 : f32 to vector<8x128xf32>
    %99 = arith.select %95, %97, %98 : vector<8x128xi1>, vector<8x128xf32>
    %100 = arith.addf %93, %99 : vector<8x128xf32>
    %101 = tpu.concatenate %87, %100 in 0 : vector<8x128xf32>, vector<8x128xf32> -> vector<16x128xf32>
    %c0_44 = arith.constant 0 : index
    %c0_45 = arith.constant 0 : index
    %102 = vector.load %arg12[%c0_44, %c0_45] : memref<16x128xf32, #tpu.memory_space<vmem>>, vector<16x128xf32>
    tpu.vector_store %arg12[%c0_44, %c0_45], %101 {strides = array<i32>} : memref<16x128xf32, #tpu.memory_space<vmem>>, vector<16x128xf32>,
    return
  }
  func.func @transform_0(%arg0: i32) -> (i32, i32) {
    %c0_i32 = arith.constant 0 : i32
    %c0_i32_0 = arith.constant 0 : i32
    return %c0_i32, %arg0 : i32, i32
  }
  func.func @transform_1(%arg0: i32) -> (i32, i32) {
    %c0_i32 = arith.constant 0 : i32
    %c0_i32_0 = arith.constant 0 : i32
    %c0_i32_1 = arith.constant 0 : i32
    return %c0_i32, %c0_i32_0 : i32, i32
  }
  func.func @transform_2(%arg0: i32) -> (i32, i32) {
    %c0_i32 = arith.constant 0 : i32
    %c0_i32_0 = arith.constant 0 : i32
    %c0_i32_1 = arith.constant 0 : i32
    return %c0_i32, %c0_i32_0 : i32, i32
  }
  func.func @transform_3(%arg0: i32) -> (i32, i32) {
    %c0_i32 = arith.constant 0 : i32
    %c0_i32_0 = arith.constant 0 : i32
    %c0_i32_1 = arith.constant 0 : i32
    return %c0_i32, %c0_i32_0 : i32, i32
  }
  func.func @transform_4(%arg0: i32) -> (i32, i32) {
    %c0_i32 = arith.constant 0 : i32
    %c0_i32_0 = arith.constant 0 : i32
    %c0_i32_1 = arith.constant 0 : i32
    return %c0_i32, %c0_i32_0 : i32, i32
  }
  func.func @transform_5(%arg0: i32) -> (i32, i32) {
    %c0_i32 = arith.constant 0 : i32
    %c0_i32_0 = arith.constant 0 : i32
    %c0_i32_1 = arith.constant 0 : i32
    return %c0_i32, %c0_i32_0 : i32, i32
  }
  func.func @transform_6(%arg0: i32) -> (i32, i32) {
    %c0_i32 = arith.constant 0 : i32
    %c0_i32_0 = arith.constant 0 : i32
    %c0_i32_1 = arith.constant 0 : i32
    return %c0_i32, %c0_i32_0 : i32, i32
  }
  func.func @transform_7(%arg0: i32) -> (i32, i32) {
    %c0_i32 = arith.constant 0 : i32
    %c0_i32_0 = arith.constant 0 : i32
    %c0_i32_1 = arith.constant 0 : i32
    return %c0_i32, %c0_i32_0 : i32, i32
  }
  func.func @transform_8(%arg0: i32) -> (i32, i32) {
    %c0_i32 = arith.constant 0 : i32
    %c0_i32_0 = arith.constant 0 : i32
    %c0_i32_1 = arith.constant 0 : i32
    return %c0_i32, %c0_i32_0 : i32, i32
  }
  func.func @transform_9(%arg0: i32) -> (i32, i32) {
    %c0_i32 = arith.constant 0 : i32
    %c0_i32_0 = arith.constant 0 : i32
    %c0_i32_1 = arith.constant 0 : i32
    return %c0_i32, %c0_i32_0 : i32, i32
  }
  func.func @transform_10(%arg0: i32) -> (i32, i32) {
    %c0_i32 = arith.constant 0 : i32
    %c0_i32_0 = arith.constant 0 : i32
    %c0_i32_1 = arith.constant 0 : i32
    return %c0_i32, %c0_i32_0 : i32, i32
  }
  func.func @transform_11(%arg0: i32) -> (i32, i32) {
    %c0_i32 = arith.constant 0 : i32
    %c0_i32_0 = arith.constant 0 : i32
    return %c0_i32, %arg0 : i32, i32
  }
}

</mosaic_0001>

<llo_original>
// kernel: act.1
$region0: #{act.1}
  #allocation0 [shape = 'u32[]', space=smem, size = 0x4, offset = 0x4, fixed_abs, tag = 'smem constant byte address 0x4 - core index']
  #allocation1 [shape = 'u32[144,128]{1,0:T(1,128)}', space=vmem, size = 0x12000, scoped, tag = 'internal scratch']
  %s0 = inlined_call_operand.vmem [shape: f32[256,128], index: 0, kind: input, shape index: {}]
  %s1 = inlined_call_operand.hbm [shape: f32[1024,256], index: 1, kind: input, shape index: {}]
  %s2 = inlined_call_operand.vmem [shape: f32[1024,1], index: 2, kind: input, shape index: {}]
  %s3 = inlined_call_operand.hbm [shape: f32[384,256], index: 3, kind: input, shape index: {}]
  %s4 = inlined_call_operand.hbm [shape: f32[384,1], index: 4, kind: input, shape index: {}]
  %s5 = inlined_call_operand.hbm [shape: f32[128,384], index: 5, kind: input, shape index: {}]
  %s6 = inlined_call_operand.hbm [shape: f32[128,1], index: 6, kind: input, shape index: {}]
  %s7 = inlined_call_operand.hbm [shape: f32[128,128], index: 7, kind: input, shape index: {}]
  %s8 = inlined_call_operand.hbm [shape: f32[128,1], index: 8, kind: input, shape index: {}]
  %s9 = inlined_call_operand.vmem [shape: f32[8,128], index: 9, kind: input, shape index: {}]
  %s10 = inlined_call_operand.vmem [shape: f32[8,1], index: 10, kind: input, shape index: {}]
  %s11 = inlined_call_operand.vmem [shape: f32[16,128], index: 11, kind: output, shape index: {}]
  %s12 = sld [smem:[#allocation0]]
  $region82: #{act.1} parent=0
    _
  %s14 = ssub.s32 1, %s12
  %s15 = scalar_select 0, %s14, %s12
  $region1: #{act.1} parent=0
    #allocation2 [shape = 'u8[1048576]{0}', space=vmem, size = 0x100000, scoped, tag = 'input window, operand 1, single buffered']
    #allocation3 [shape = 's32[1]{0}', space=sflag, size = 0x4, scoped, tag = 'scoped memory for act.1']
    #allocation4 [shape = 'u8[393216]{0}', space=vmem, size = 0x60000, scoped, tag = 'input window, operand 3, single buffered']
    #allocation5 [shape = 's32[1]{0}', space=sflag, size = 0x4, scoped, tag = 'scoped memory for act.1']
    #allocation6 [shape = 'u8[196608]{0}', space=vmem, size = 0x30000, scoped, tag = 'input window, operand 4, single buffered']
    #allocation7 [shape = 'u8[196608]{0}', space=vmem, size = 0x30000, scoped, tag = 'input window, operand 5, single buffered']
    #allocation8 [shape = 's32[1]{0}', space=sflag, size = 0x4, scoped, tag = 'scoped memory for act.1']
    #allocation9 [shape = 'u8[65536]{0}', space=vmem, size = 0x10000, scoped, tag = 'input window, operand 6, single buffered']
    #allocation10 [shape = 'u8[65536]{0}', space=vmem, size = 0x10000, scoped, tag = 'input window, operand 7, single buffered']
    #allocation11 [shape = 's32[1]{0}', space=sflag, size = 0x4, scoped, tag = 'scoped memory for act.1']
    #allocation12 [shape = 'u8[65536]{0}', space=vmem, size = 0x10000, scoped, tag = 'input window, operand 8, single buffered']
    %16 = vsyncpa [#allocation3], 0
    %17 = vsyncpa [#allocation5], 0
    %18 = vsyncpa [#allocation8], 0
    %19 = vsyncpa [#allocation11], 0
    // Predicated region
    $region2: #{act.1} parent=1 // pred_check
      _
    $region3: #{act.1} parent=1 // pred_check_branch
      %21 = sbr.rel (0) target = $region5
    $region4: #{act.1} parent=1 // pred_region
      _
    $region5: #{act.1} parent=1 // pred_fallthru
      _
    // Predicated region
    $region6: #{act.1} parent=1 // pred_check
      _
    $region7: #{act.1} parent=1 // pred_check_branch
      %23 = sbr.rel (0) target = $region9
    $region8: #{act.1} parent=1 // pred_region
      %s25 = ssub.s32 32768, 32768
      %26 = vsyncadd [#allocation3], %s25
      %s27 = sshll.u32 [#allocation2], 4
      %s28 = int_to_ptr.vmem [resolvable:$true] %s27
      %33 = dma.hbm_to_vmem [thread:$0]  %s1, 32768, %s28, [#allocation3], 256, 256, 16
    $region9: #{act.1} parent=1 // pred_fallthru
      _
    // Predicated region
    $region10: #{act.1} parent=1 // pred_check
      _
    $region11: #{act.1} parent=1 // pred_check_branch
      %35 = sbr.rel (0) target = $region13
    $region12: #{act.1} parent=1 // pred_region
      _
    $region13: #{act.1} parent=1 // pred_fallthru
      _
    // Predicated region
    $region14: #{act.1} parent=1 // pred_check
      _
    $region15: #{act.1} parent=1 // pred_check_branch
      %37 = sbr.rel (0) target = $region17
    $region16: #{act.1} parent=1 // pred_region
      %s39 = ssub.s32 12288, 12288
      %40 = vsyncadd [#allocation5], %s39
      %s41 = sshll.u32 [#allocation4], 4
      %s42 = int_to_ptr.vmem [resolvable:$true] %s41
      %47 = dma.hbm_to_vmem [thread:$0]  %s3, 12288, %s42, [#allocation5], 256, 256, 16
    $region17: #{act.1} parent=1 // pred_fallthru
      _
    // Predicated region
    $region18: #{act.1} parent=1 // pred_check
      _
    $region19: #{act.1} parent=1 // pred_check_branch
      %49 = sbr.rel (0) target = $region21
    $region20: #{act.1} parent=1 // pred_region
      %s51 = ssub.s32 6144, 6144
      %52 = vsyncadd [#allocation5], %s51
      %s53 = sshll.u32 [#allocation6], 4
      %s54 = int_to_ptr.vmem [resolvable:$true] %s53
      %59 = dma.hbm_to_vmem [thread:$0]  %s4, 6144, %s54, [#allocation5], 128, 128, 8
    $region21: #{act.1} parent=1 // pred_fallthru
      _
    // Predicated region
    $region22: #{act.1} parent=1 // pred_check
      _
    $region23: #{act.1} parent=1 // pred_check_branch
      %61 = sbr.rel (0) target = $region25
    $region24: #{act.1} parent=1 // pred_region
      %s63 = ssub.s32 6144, 6144
      %64 = vsyncadd [#allocation8], %s63
      %s65 = sshll.u32 [#allocation7], 4
      %s66 = int_to_ptr.vmem [resolvable:$true] %s65
      %71 = dma.hbm_to_vmem [thread:$0]  %s5, 6144, %s66, [#allocation8], 384, 384, 24
    $region25: #{act.1} parent=1 // pred_fallthru
      _
    // Predicated region
    $region26: #{act.1} parent=1 // pred_check
      _
    $region27: #{act.1} parent=1 // pred_check_branch
      %73 = sbr.rel (0) target = $region29
    $region28: #{act.1} parent=1 // pred_region
      %s75 = ssub.s32 2048, 2048
      %76 = vsyncadd [#allocation8], %s75
      %s77 = sshll.u32 [#allocation9], 4
      %s78 = int_to_ptr.vmem [resolvable:$true] %s77
      %83 = dma.hbm_to_vmem [thread:$0]  %s6, 2048, %s78, [#allocation8], 128, 128, 8
    $region29: #{act.1} parent=1 // pred_fallthru
      _
    // Predicated region
    $region30: #{act.1} parent=1 // pred_check
      _
    $region31: #{act.1} parent=1 // pred_check_branch
      %85 = sbr.rel (0) target = $region33
    $region32: #{act.1} parent=1 // pred_region
      %s87 = ssub.s32 2048, 2048
      %88 = vsyncadd [#allocation11], %s87
      %s89 = sshll.u32 [#allocation10], 4
      %s90 = int_to_ptr.vmem [resolvable:$true] %s89
      %95 = dma.hbm_to_vmem [thread:$0]  %s7, 2048, %s90, [#allocation11], 128, 128, 8
    $region33: #{act.1} parent=1 // pred_fallthru
      _
    // Predicated region
    $region34: #{act.1} parent=1 // pred_check
      _
    $region35: #{act.1} parent=1 // pred_check_branch
      %97 = sbr.rel (0) target = $region37
    $region36: #{act.1} parent=1 // pred_region
      %s99 = ssub.s32 2048, 2048
      %100 = vsyncadd [#allocation11], %s99
      %s101 = sshll.u32 [#allocation12], 4
      %s102 = int_to_ptr.vmem [resolvable:$true] %s101
      %107 = dma.hbm_to_vmem [thread:$0]  %s8, 2048, %s102, [#allocation11], 128, 128, 8
    $region37: #{act.1} parent=1 // pred_fallthru
      _
    // Predicated region
    $region38: #{act.1} parent=1 // pred_check
      _
    $region39: #{act.1} parent=1 // pred_check_branch
      %109 = sbr.rel (0) target = $region41
    $region40: #{act.1} parent=1 // pred_region
      _
    $region41: #{act.1} parent=1 // pred_fallthru
      _
    // Predicated region
    $region42: #{act.1} parent=1 // pred_check
      _
    $region43: #{act.1} parent=1 // pred_check_branch
      %111 = sbr.rel (0) target = $region45
    $region44: #{act.1} parent=1 // pred_region
      _
    $region45: #{act.1} parent=1 // pred_fallthru
      _
    // Predicated region
    $region46: #{act.1} parent=1 // pred_check
      _
    $region47: #{act.1} parent=1 // pred_check_branch
      %113 = sbr.rel (0) target = $region49
    $region48: #{act.1} parent=1 // pred_region
      %114 = dma.done [#allocation3], 32768
    $region49: #{act.1} parent=1 // pred_fallthru
      _
    // Predicated region
    $region50: #{act.1} parent=1 // pred_check
      _
    $region51: #{act.1} parent=1 // pred_check_branch
      %116 = sbr.rel (0) target = $region53
    $region52: #{act.1} parent=1 // pred_region
      %117 = dma.done [#allocation5], 12288
    $region53: #{act.1} parent=1 // pred_fallthru
      _
    // Predicated region
    $region54: #{act.1} parent=1 // pred_check
      _
    $region55: #{act.1} parent=1 // pred_check_branch
      %119 = sbr.rel (0) target = $region57
    $region56: #{act.1} parent=1 // pred_region
      %120 = dma.done [#allocation5], 6144
    $region57: #{act.1} parent=1 // pred_fallthru
      _
    // Predicated region
    $region58: #{act.1} parent=1 // pred_check
      _
    $region59: #{act.1} parent=1 // pred_check_branch
      %122 = sbr.rel (0) target = $region61
    $region60: #{act.1} parent=1 // pred_region
      %123 = dma.done [#allocation8], 6144
    $region61: #{act.1} parent=1 // pred_fallthru
      _
    // Predicated region
    $region62: #{act.1} parent=1 // pred_check
      _
    $region63: #{act.1} parent=1 // pred_check_branch
      %125 = sbr.rel (0) target = $region65
    $region64: #{act.1} parent=1 // pred_region
      %126 = dma.done [#allocation8], 2048
    $region65: #{act.1} parent=1 // pred_fallthru
      _
    // Predicated region
    $region66: #{act.1} parent=1 // pred_check
      _
    $region67: #{act.1} parent=1 // pred_check_branch
      %128 = sbr.rel (0) target = $region69
    $region68: #{act.1} parent=1 // pred_region
      %129 = dma.done [#allocation11], 2048
    $region69: #{act.1} parent=1 // pred_fallthru
      _
    // Predicated region
    $region70: #{act.1} parent=1 // pred_check
      _
    $region71: #{act.1} parent=1 // pred_check_branch
      %131 = sbr.rel (0) target = $region73
    $region72: #{act.1} parent=1 // pred_region
      %132 = dma.done [#allocation11], 2048
    $region73: #{act.1} parent=1 // pred_fallthru
      _
    %v133 = vld [vmem:[%s0] sm:$0xff]
    %v134 = vld [vmem:[%s0 + $0x8] sm:$0xff]
    %v135 = vld [vmem:[%s0 + $0x10] sm:$0xff]
    %v136 = vld [vmem:[%s0 + $0x18] sm:$0xff]
    %v137 = vld [vmem:[%s0 + $0x20] sm:$0xff]
    %v138 = vld [vmem:[%s0 + $0x28] sm:$0xff]
    %v139 = vld [vmem:[%s0 + $0x30] sm:$0xff]
    %v140 = vld [vmem:[%s0 + $0x38] sm:$0xff]
    %v141 = vld [vmem:[%s0 + $0x40] sm:$0xff]
    %v142 = vld [vmem:[%s0 + $0x48] sm:$0xff]
    %v143 = vld [vmem:[%s0 + $0x50] sm:$0xff]
    %v144 = vld [vmem:[%s0 + $0x58] sm:$0xff]
    %v145 = vld [vmem:[%s0 + $0x60] sm:$0xff]
    %v146 = vld [vmem:[%s0 + $0x68] sm:$0xff]
    %v147 = vld [vmem:[%s0 + $0x70] sm:$0xff]
    %v148 = vld [vmem:[%s0 + $0x78] sm:$0xff]
    %v149 = vld [vmem:[%s0 + $0x80] sm:$0xff]
    %v150 = vld [vmem:[%s0 + $0x88] sm:$0xff]
    %v151 = vld [vmem:[%s0 + $0x90] sm:$0xff]
    %v152 = vld [vmem:[%s0 + $0x98] sm:$0xff]
    %v153 = vld [vmem:[%s0 + $0xa0] sm:$0xff]
    %v154 = vld [vmem:[%s0 + $0xa8] sm:$0xff]
    %v155 = vld [vmem:[%s0 + $0xb0] sm:$0xff]
    %v156 = vld [vmem:[%s0 + $0xb8] sm:$0xff]
    %v157 = vld [vmem:[%s0 + $0xc0] sm:$0xff]
    %v158 = vld [vmem:[%s0 + $0xc8] sm:$0xff]
    %v159 = vld [vmem:[%s0 + $0xd0] sm:$0xff]
    %v160 = vld [vmem:[%s0 + $0xd8] sm:$0xff]
    %v161 = vld [vmem:[%s0 + $0xe0] sm:$0xff]
    %v162 = vld [vmem:[%s0 + $0xe8] sm:$0xff]
    %v163 = vld [vmem:[%s0 + $0xf0] sm:$0xff]
    %v164 = vld [vmem:[%s0 + $0xf8] sm:$0xff]
    %v165 = vld [vmem:[#allocation2] sm:$0xff]
    %v166 = vld [vmem:[#allocation2 + $0x8] sm:$0xff]
    %v167 = vld [vmem:[#allocation2 + $0x10] sm:$0xff]
    %v168 = vld [vmem:[#allocation2 + $0x18] sm:$0xff]
    %v169 = vld [vmem:[#allocation2 + $0x20] sm:$0xff]
    %v170 = vld [vmem:[#allocation2 + $0x28] sm:$0xff]
    %v171 = vld [vmem:[#allocation2 + $0x30] sm:$0xff]
    %v172 = vld [vmem:[#allocation2 + $0x38] sm:$0xff]
    %v173 = vld [vmem:[#allocation2 + $0x40] sm:$0xff]
    %v174 = vld [vmem:[#allocation2 + $0x48] sm:$0xff]
    %v175 = vld [vmem:[#allocation2 + $0x50] sm:$0xff]
    %v176 = vld [vmem:[#allocation2 + $0x58] sm:$0xff]
    %v177 = vld [vmem:[#allocation2 + $0x60] sm:$0xff]
    %v178 = vld [vmem:[#allocation2 + $0x68] sm:$0xff]
    %v179 = vld [vmem:[#allocation2 + $0x70] sm:$0xff]
    %v180 = vld [vmem:[#allocation2 + $0x78] sm:$0xff]
    %v181 = vld [vmem:[#allocation2 + $0x80] sm:$0xff]
    %v182 = vld [vmem:[#allocation2 + $0x88] sm:$0xff]
    %v183 = vld [vmem:[#allocation2 + $0x90] sm:$0xff]
    %v184 = vld [vmem:[#allocation2 + $0x98] sm:$0xff]
    %v185 = vld [vmem:[#allocation2 + $0xa0] sm:$0xff]
    %v186 = vld [vmem:[#allocation2 + $0xa8] sm:$0xff]
    %v187 = vld [vmem:[#allocation2 + $0xb0] sm:$0xff]
    %v188 = vld [vmem:[#allocation2 + $0xb8] sm:$0xff]
    %v189 = vld [vmem:[#allocation2 + $0xc0] sm:$0xff]
    %v190 = vld [vmem:[#allocation2 + $0xc8] sm:$0xff]
    %v191 = vld [vmem:[#allocation2 + $0xd0] sm:$0xff]
    %v192 = vld [vmem:[#allocation2 + $0xd8] sm:$0xff]
    %v193 = vld [vmem:[#allocation2 + $0xe0] sm:$0xff]
    %v194 = vld [vmem:[#allocation2 + $0xe8] sm:$0xff]
    %v195 = vld [vmem:[#allocation2 + $0xf0] sm:$0xff]
    %v196 = vld [vmem:[#allocation2 + $0xf8] sm:$0xff]
    %v197 = vld [vmem:[#allocation2 + $0x100] sm:$0xff]
    %v198 = vld [vmem:[#allocation2 + $0x108] sm:$0xff]
    %v199 = vld [vmem:[#allocation2 + $0x110] sm:$0xff]
    %v200 = vld [vmem:[#allocation2 + $0x118] sm:$0xff]
    %v201 = vld [vmem:[#allocation2 + $0x120] sm:$0xff]
    %v202 = vld [vmem:[#allocation2 + $0x128] sm:$0xff]
    %v203 = vld [vmem:[#allocation2 + $0x130] sm:$0xff]
    %v204 = vld [vmem:[#allocation2 + $0x138] sm:$0xff]
    %v205 = vld [vmem:[#allocation2 + $0x140] sm:$0xff]
    %v206 = vld [vmem:[#allocation2 + $0x148] sm:$0xff]
    %v207 = vld [vmem:[#allocation2 + $0x150] sm:$0xff]
    %v208 = vld [vmem:[#allocation2 + $0x158] sm:$0xff]
    %v209 = vld [vmem:[#allocation2 + $0x160] sm:$0xff]
    %v210 = vld [vmem:[#allocation2 + $0x168] sm:$0xff]
    %v211 = vld [vmem:[#allocation2 + $0x170] sm:$0xff]
    %v212 = vld [vmem:[#allocation2 + $0x178] sm:$0xff]
    %v213 = vld [vmem:[#allocation2 + $0x180] sm:$0xff]
    %v214 = vld [vmem:[#allocation2 + $0x188] sm:$0xff]
    %v215 = vld [vmem:[#allocation2 + $0x190] sm:$0xff]
    %v216 = vld [vmem:[#allocation2 + $0x198] sm:$0xff]
    %v217 = vld [vmem:[#allocation2 + $0x1a0] sm:$0xff]
    %v218 = vld [vmem:[#allocation2 + $0x1a8] sm:$0xff]
    %v219 = vld [vmem:[#allocation2 + $0x1b0] sm:$0xff]
    %v220 = vld [vmem:[#allocation2 + $0x1b8] sm:$0xff]
    %v221 = vld [vmem:[#allocation2 + $0x1c0] sm:$0xff]
    %v222 = vld [vmem:[#allocation2 + $0x1c8] sm:$0xff]
    %v223 = vld [vmem:[#allocation2 + $0x1d0] sm:$0xff]
    %v224 = vld [vmem:[#allocation2 + $0x1d8] sm:$0xff]
    %v225 = vld [vmem:[#allocation2 + $0x1e0] sm:$0xff]
    %v226 = vld [vmem:[#allocation2 + $0x1e8] sm:$0xff]
    %v227 = vld [vmem:[#allocation2 + $0x1f0] sm:$0xff]
    %v228 = vld [vmem:[#allocation2 + $0x1f8] sm:$0xff]
    %v229 = vld [vmem:[#allocation2 + $0x200] sm:$0xff]
    %v230 = vld [vmem:[#allocation2 + $0x208] sm:$0xff]
    %v231 = vld [vmem:[#allocation2 + $0x210] sm:$0xff]
    %v232 = vld [vmem:[#allocation2 + $0x218] sm:$0xff]
    %v233 = vld [vmem:[#allocation2 + $0x220] sm:$0xff]
    %v234 = vld [vmem:[#allocation2 + $0x228] sm:$0xff]
    %v235 = vld [vmem:[#allocation2 + $0x230] sm:$0xff]
    %v236 = vld [vmem:[#allocation2 + $0x238] sm:$0xff]
    %v237 = vld [vmem:[#allocation2 + $0x240] sm:$0xff]
    %v238 = vld [vmem:[#allocation2 + $0x248] sm:$0xff]
    %v239 = vld [vmem:[#allocation2 + $0x250] sm:$0xff]
    %v240 = vld [vmem:[#allocation2 + $0x258] sm:$0xff]
    %v241 = vld [vmem:[#allocation2 + $0x260] sm:$0xff]
    %v242 = vld [vmem:[#allocation2 + $0x268] sm:$0xff]
    %v243 = vld [vmem:[#allocation2 + $0x270] sm:$0xff]
    %v244 = vld [vmem:[#allocation2 + $0x278] sm:$0xff]
    %v245 = vld [vmem:[#allocation2 + $0x280] sm:$0xff]
    %v246 = vld [vmem:[#allocation2 + $0x288] sm:$0xff]
    %v247 = vld [vmem:[#allocation2 + $0x290] sm:$0xff]
    %v248 = vld [vmem:[#allocation2 + $0x298] sm:$0xff]
    %v249 = vld [vmem:[#allocation2 + $0x2a0] sm:$0xff]
    %v250 = vld [vmem:[#allocation2 + $0x2a8] sm:$0xff]
    %v251 = vld [vmem:[#allocation2 + $0x2b0] sm:$0xff]
    %v252 = vld [vmem:[#allocation2 + $0x2b8] sm:$0xff]
    %v253 = vld [vmem:[#allocation2 + $0x2c0] sm:$0xff]
    %v254 = vld [vmem:[#allocation2 + $0x2c8] sm:$0xff]
    %v255 = vld [vmem:[#allocation2 + $0x2d0] sm:$0xff]
    %v256 = vld [vmem:[#allocation2 + $0x2d8] sm:$0xff]
    %v257 = vld [vmem:[#allocation2 + $0x2e0] sm:$0xff]
    %v258 = vld [vmem:[#allocation2 + $0x2e8] sm:$0xff]
    %v259 = vld [vmem:[#allocation2 + $0x2f0] sm:$0xff]
    %v260 = vld [vmem:[#allocation2 + $0x2f8] sm:$0xff]
    %v261 = vld [vmem:[#allocation2 + $0x300] sm:$0xff]
    %v262 = vld [vmem:[#allocation2 + $0x308] sm:$0xff]
    %v263 = vld [vmem:[#allocation2 + $0x310] sm:$0xff]
    %v264 = vld [vmem:[#allocation2 + $0x318] sm:$0xff]
    %v265 = vld [vmem:[#allocation2 + $0x320] sm:$0xff]
    %v266 = vld [vmem:[#allocation2 + $0x328] sm:$0xff]
    %v267 = vld [vmem:[#allocation2 + $0x330] sm:$0xff]
    %v268 = vld [vmem:[#allocation2 + $0x338] sm:$0xff]
    %v269 = vld [vmem:[#allocation2 + $0x340] sm:$0xff]
    %v270 = vld [vmem:[#allocation2 + $0x348] sm:$0xff]
    %v271 = vld [vmem:[#allocation2 + $0x350] sm:$0xff]
    %v272 = vld [vmem:[#allocation2 + $0x358] sm:$0xff]
    %v273 = vld [vmem:[#allocation2 + $0x360] sm:$0xff]
    %v274 = vld [vmem:[#allocation2 + $0x368] sm:$0xff]
    %v275 = vld [vmem:[#allocation2 + $0x370] sm:$0xff]
    %v276 = vld [vmem:[#allocation2 + $0x378] sm:$0xff]
    %v277 = vld [vmem:[#allocation2 + $0x380] sm:$0xff]
    %v278 = vld [vmem:[#allocation2 + $0x388] sm:$0xff]
    %v279 = vld [vmem:[#allocation2 + $0x390] sm:$0xff]
    %v280 = vld [vmem:[#allocation2 + $0x398] sm:$0xff]
    %v281 = vld [vmem:[#allocation2 + $0x3a0] sm:$0xff]
    %v282 = vld [vmem:[#allocation2 + $0x3a8] sm:$0xff]
    %v283 = vld [vmem:[#allocation2 + $0x3b0] sm:$0xff]
    %v284 = vld [vmem:[#allocation2 + $0x3b8] sm:$0xff]
    %v285 = vld [vmem:[#allocation2 + $0x3c0] sm:$0xff]
    %v286 = vld [vmem:[#allocation2 + $0x3c8] sm:$0xff]
    %v287 = vld [vmem:[#allocation2 + $0x3d0] sm:$0xff]
    %v288 = vld [vmem:[#allocation2 + $0x3d8] sm:$0xff]
    %v289 = vld [vmem:[#allocation2 + $0x3e0] sm:$0xff]
    %v290 = vld [vmem:[#allocation2 + $0x3e8] sm:$0xff]
    %v291 = vld [vmem:[#allocation2 + $0x3f0] sm:$0xff]
    %v292 = vld [vmem:[#allocation2 + $0x3f8] sm:$0xff]
    %v293 = vld [vmem:[#allocation2 + $0x400] sm:$0xff]
    %v294 = vld [vmem:[#allocation2 + $0x408] sm:$0xff]
    %v295 = vld [vmem:[#allocation2 + $0x410] sm:$0xff]
    %v296 = vld [vmem:[#allocation2 + $0x418] sm:$0xff]
    %v297 = vld [vmem:[#allocation2 + $0x420] sm:$0xff]
    %v298 = vld [vmem:[#allocation2 + $0x428] sm:$0xff]
    %v299 = vld [vmem:[#allocation2 + $0x430] sm:$0xff]
    %v300 = vld [vmem:[#allocation2 + $0x438] sm:$0xff]
    %v301 = vld [vmem:[#allocation2 + $0x440] sm:$0xff]
    %v302 = vld [vmem:[#allocation2 + $0x448] sm:$0xff]
    %v303 = vld [vmem:[#allocation2 + $0x450] sm:$0xff]
    %v304 = vld [vmem:[#allocation2 + $0x458] sm:$0xff]
    %v305 = vld [vmem:[#allocation2 + $0x460] sm:$0xff]
    %v306 = vld [vmem:[#allocation2 + $0x468] sm:$0xff]
    %v307 = vld [vmem:[#allocation2 + $0x470] sm:$0xff]
    %v308 = vld [vmem:[#allocation2 + $0x478] sm:$0xff]
    %v309 = vld [vmem:[#allocation2 + $0x480] sm:$0xff]
    %v310 = vld [vmem:[#allocation2 + $0x488] sm:$0xff]
    %v311 = vld [vmem:[#allocation2 + $0x490] sm:$0xff]
    %v312 = vld [vmem:[#allocation2 + $0x498] sm:$0xff]
    %v313 = vld [vmem:[#allocation2 + $0x4a0] sm:$0xff]
    %v314 = vld [vmem:[#allocation2 + $0x4a8] sm:$0xff]
    %v315 = vld [vmem:[#allocation2 + $0x4b0] sm:$0xff]
    %v316 = vld [vmem:[#allocation2 + $0x4b8] sm:$0xff]
    %v317 = vld [vmem:[#allocation2 + $0x4c0] sm:$0xff]
    %v318 = vld [vmem:[#allocation2 + $0x4c8] sm:$0xff]
    %v319 = vld [vmem:[#allocation2 + $0x4d0] sm:$0xff]
    %v320 = vld [vmem:[#allocation2 + $0x4d8] sm:$0xff]
    %v321 = vld [vmem:[#allocation2 + $0x4e0] sm:$0xff]
    %v322 = vld [vmem:[#allocation2 + $0x4e8] sm:$0xff]
    %v323 = vld [vmem:[#allocation2 + $0x4f0] sm:$0xff]
    %v324 = vld [vmem:[#allocation2 + $0x4f8] sm:$0xff]
    %v325 = vld [vmem:[#allocation2 + $0x500] sm:$0xff]
    %v326 = vld [vmem:[#allocation2 + $0x508] sm:$0xff]
    %v327 = vld [vmem:[#allocation2 + $0x510] sm:$0xff]
    %v328 = vld [vmem:[#allocation2 + $0x518] sm:$0xff]
    %v329 = vld [vmem:[#allocation2 + $0x520] sm:$0xff]
    %v330 = vld [vmem:[#allocation2 + $0x528] sm:$0xff]
    %v331 = vld [vmem:[#allocation2 + $0x530] sm:$0xff]
    %v332 = vld [vmem:[#allocation2 + $0x538] sm:$0xff]
    %v333 = vld [vmem:[#allocation2 + $0x540] sm:$0xff]
    %v334 = vld [vmem:[#allocation2 + $0x548] sm:$0xff]
    %v335 = vld [vmem:[#allocation2 + $0x550] sm:$0xff]
    %v336 = vld [vmem:[#allocation2 + $0x558] sm:$0xff]
    %v337 = vld [vmem:[#allocation2 + $0x560] sm:$0xff]
    %v338 = vld [vmem:[#allocation2 + $0x568] sm:$0xff]
    %v339 = vld [vmem:[#allocation2 + $0x570] sm:$0xff]
    %v340 = vld [vmem:[#allocation2 + $0x578] sm:$0xff]
    %v341 = vld [vmem:[#allocation2 + $0x580] sm:$0xff]
    %v342 = vld [vmem:[#allocation2 + $0x588] sm:$0xff]
    %v343 = vld [vmem:[#allocation2 + $0x590] sm:$0xff]
    %v344 = vld [vmem:[#allocation2 + $0x598] sm:$0xff]
    %v345 = vld [vmem:[#allocation2 + $0x5a0] sm:$0xff]
    %v346 = vld [vmem:[#allocation2 + $0x5a8] sm:$0xff]
    %v347 = vld [vmem:[#allocation2 + $0x5b0] sm:$0xff]
    %v348 = vld [vmem:[#allocation2 + $0x5b8] sm:$0xff]
    %v349 = vld [vmem:[#allocation2 + $0x5c0] sm:$0xff]
    %v350 = vld [vmem:[#allocation2 + $0x5c8] sm:$0xff]
    %v351 = vld [vmem:[#allocation2 + $0x5d0] sm:$0xff]
    %v352 = vld [vmem:[#allocation2 + $0x5d8] sm:$0xff]
    %v353 = vld [vmem:[#allocation2 + $0x5e0] sm:$0xff]
    %v354 = vld [vmem:[#allocation2 + $0x5e8] sm:$0xff]
    %v355 = vld [vmem:[#allocation2 + $0x5f0] sm:$0xff]
    %v356 = vld [vmem:[#allocation2 + $0x5f8] sm:$0xff]
    %v357 = vld [vmem:[#allocation2 + $0x600] sm:$0xff]
    %v358 = vld [vmem:[#allocation2 + $0x608] sm:$0xff]
    %v359 = vld [vmem:[#allocation2 + $0x610] sm:$0xff]
    %v360 = vld [vmem:[#allocation2 + $0x618] sm:$0xff]
    %v361 = vld [vmem:[#allocation2 + $0x620] sm:$0xff]
    %v362 = vld [vmem:[#allocation2 + $0x628] sm:$0xff]
    %v363 = vld [vmem:[#allocation2 + $0x630] sm:$0xff]
    %v364 = vld [vmem:[#allocation2 + $0x638] sm:$0xff]
    %v365 = vld [vmem:[#allocation2 + $0x640] sm:$0xff]
    %v366 = vld [vmem:[#allocation2 + $0x648] sm:$0xff]
    %v367 = vld [vmem:[#allocation2 + $0x650] sm:$0xff]
    %v368 = vld [vmem:[#allocation2 + $0x658] sm:$0xff]
    %v369 = vld [vmem:[#allocation2 + $0x660] sm:$0xff]
    %v370 = vld [vmem:[#allocation2 + $0x668] sm:$0xff]
    %v371 = vld [vmem:[#allocation2 + $0x670] sm:$0xff]
    %v372 = vld [vmem:[#allocation2 + $0x678] sm:$0xff]
    %v373 = vld [vmem:[#allocation2 + $0x680] sm:$0xff]
    %v374 = vld [vmem:[#allocation2 + $0x688] sm:$0xff]
    %v375 = vld [vmem:[#allocation2 + $0x690] sm:$0xff]
    %v376 = vld [vmem:[#allocation2 + $0x698] sm:$0xff]
    %v377 = vld [vmem:[#allocation2 + $0x6a0] sm:$0xff]
    %v378 = vld [vmem:[#allocation2 + $0x6a8] sm:$0xff]
    %v379 = vld [vmem:[#allocation2 + $0x6b0] sm:$0xff]
    %v380 = vld [vmem:[#allocation2 + $0x6b8] sm:$0xff]
    %v381 = vld [vmem:[#allocation2 + $0x6c0] sm:$0xff]
    %v382 = vld [vmem:[#allocation2 + $0x6c8] sm:$0xff]
    %v383 = vld [vmem:[#allocation2 + $0x6d0] sm:$0xff]
    %v384 = vld [vmem:[#allocation2 + $0x6d8] sm:$0xff]
    %v385 = vld [vmem:[#allocation2 + $0x6e0] sm:$0xff]
    %v386 = vld [vmem:[#allocation2 + $0x6e8] sm:$0xff]
    %v387 = vld [vmem:[#allocation2 + $0x6f0] sm:$0xff]
    %v388 = vld [vmem:[#allocation2 + $0x6f8] sm:$0xff]
    %v389 = vld [vmem:[#allocation2 + $0x700] sm:$0xff]
    %v390 = vld [vmem:[#allocation2 + $0x708] sm:$0xff]
    %v391 = vld [vmem:[#allocation2 + $0x710] sm:$0xff]
    %v392 = vld [vmem:[#allocation2 + $0x718] sm:$0xff]
    %v393 = vld [vmem:[#allocation2 + $0x720] sm:$0xff]
    %v394 = vld [vmem:[#allocation2 + $0x728] sm:$0xff]
    %v395 = vld [vmem:[#allocation2 + $0x730] sm:$0xff]
    %v396 = vld [vmem:[#allocation2 + $0x738] sm:$0xff]
    %v397 = vld [vmem:[#allocation2 + $0x740] sm:$0xff]
    %v398 = vld [vmem:[#allocation2 + $0x748] sm:$0xff]
    %v399 = vld [vmem:[#allocation2 + $0x750] sm:$0xff]
    %v400 = vld [vmem:[#allocation2 + $0x758] sm:$0xff]
    %v401 = vld [vmem:[#allocation2 + $0x760] sm:$0xff]
    %v402 = vld [vmem:[#allocation2 + $0x768] sm:$0xff]
    %v403 = vld [vmem:[#allocation2 + $0x770] sm:$0xff]
    %v404 = vld [vmem:[#allocation2 + $0x778] sm:$0xff]
    %v405 = vld [vmem:[#allocation2 + $0x780] sm:$0xff]
    %v406 = vld [vmem:[#allocation2 + $0x788] sm:$0xff]
    %v407 = vld [vmem:[#allocation2 + $0x790] sm:$0xff]
    %v408 = vld [vmem:[#allocation2 + $0x798] sm:$0xff]
    %v409 = vld [vmem:[#allocation2 + $0x7a0] sm:$0xff]
    %v410 = vld [vmem:[#allocation2 + $0x7a8] sm:$0xff]
    %v411 = vld [vmem:[#allocation2 + $0x7b0] sm:$0xff]
    %v412 = vld [vmem:[#allocation2 + $0x7b8] sm:$0xff]
    %v413 = vld [vmem:[#allocation2 + $0x7c0] sm:$0xff]
    %v414 = vld [vmem:[#allocation2 + $0x7c8] sm:$0xff]
    %v415 = vld [vmem:[#allocation2 + $0x7d0] sm:$0xff]
    %v416 = vld [vmem:[#allocation2 + $0x7d8] sm:$0xff]
    %v417 = vld [vmem:[#allocation2 + $0x7e0] sm:$0xff]
    %v418 = vld [vmem:[#allocation2 + $0x7e8] sm:$0xff]
    %v419 = vld [vmem:[#allocation2 + $0x7f0] sm:$0xff]
    %v420 = vld [vmem:[#allocation2 + $0x7f8] sm:$0xff]
    %v421 = vld [vmem:[%s2] sm:$0xff]
    %v422 = vld [vmem:[%s2 + $0x8] sm:$0xff]
    %v423 = vld [vmem:[%s2 + $0x10] sm:$0xff]
    %v424 = vld [vmem:[%s2 + $0x18] sm:$0xff]
    %v425 = vld [vmem:[%s2 + $0x20] sm:$0xff]
    %v426 = vld [vmem:[%s2 + $0x28] sm:$0xff]
    %v427 = vld [vmem:[%s2 + $0x30] sm:$0xff]
    %v428 = vld [vmem:[%s2 + $0x38] sm:$0xff]
    %v429 = vld [vmem:[%s2 + $0x40] sm:$0xff]
    %v430 = vld [vmem:[%s2 + $0x48] sm:$0xff]
    %v431 = vld [vmem:[%s2 + $0x50] sm:$0xff]
    %v432 = vld [vmem:[%s2 + $0x58] sm:$0xff]
    %v433 = vld [vmem:[%s2 + $0x60] sm:$0xff]
    %v434 = vld [vmem:[%s2 + $0x68] sm:$0xff]
    %v435 = vld [vmem:[%s2 + $0x70] sm:$0xff]
    %v436 = vld [vmem:[%s2 + $0x78] sm:$0xff]
    %v437 = vld [vmem:[%s2 + $0x80] sm:$0xff]
    %v438 = vld [vmem:[%s2 + $0x88] sm:$0xff]
    %v439 = vld [vmem:[%s2 + $0x90] sm:$0xff]
    %v440 = vld [vmem:[%s2 + $0x98] sm:$0xff]
    %v441 = vld [vmem:[%s2 + $0xa0] sm:$0xff]
    %v442 = vld [vmem:[%s2 + $0xa8] sm:$0xff]
    %v443 = vld [vmem:[%s2 + $0xb0] sm:$0xff]
    %v444 = vld [vmem:[%s2 + $0xb8] sm:$0xff]
    %v445 = vld [vmem:[%s2 + $0xc0] sm:$0xff]
    %v446 = vld [vmem:[%s2 + $0xc8] sm:$0xff]
    %v447 = vld [vmem:[%s2 + $0xd0] sm:$0xff]
    %v448 = vld [vmem:[%s2 + $0xd8] sm:$0xff]
    %v449 = vld [vmem:[%s2 + $0xe0] sm:$0xff]
    %v450 = vld [vmem:[%s2 + $0xe8] sm:$0xff]
    %v451 = vld [vmem:[%s2 + $0xf0] sm:$0xff]
    %v452 = vld [vmem:[%s2 + $0xf8] sm:$0xff]
    %v453 = vld [vmem:[%s2 + $0x100] sm:$0xff]
    %v454 = vld [vmem:[%s2 + $0x108] sm:$0xff]
    %v455 = vld [vmem:[%s2 + $0x110] sm:$0xff]
    %v456 = vld [vmem:[%s2 + $0x118] sm:$0xff]
    %v457 = vld [vmem:[%s2 + $0x120] sm:$0xff]
    %v458 = vld [vmem:[%s2 + $0x128] sm:$0xff]
    %v459 = vld [vmem:[%s2 + $0x130] sm:$0xff]
    %v460 = vld [vmem:[%s2 + $0x138] sm:$0xff]
    %v461 = vld [vmem:[%s2 + $0x140] sm:$0xff]
    %v462 = vld [vmem:[%s2 + $0x148] sm:$0xff]
    %v463 = vld [vmem:[%s2 + $0x150] sm:$0xff]
    %v464 = vld [vmem:[%s2 + $0x158] sm:$0xff]
    %v465 = vld [vmem:[%s2 + $0x160] sm:$0xff]
    %v466 = vld [vmem:[%s2 + $0x168] sm:$0xff]
    %v467 = vld [vmem:[%s2 + $0x170] sm:$0xff]
    %v468 = vld [vmem:[%s2 + $0x178] sm:$0xff]
    %v469 = vld [vmem:[%s2 + $0x180] sm:$0xff]
    %v470 = vld [vmem:[%s2 + $0x188] sm:$0xff]
    %v471 = vld [vmem:[%s2 + $0x190] sm:$0xff]
    %v472 = vld [vmem:[%s2 + $0x198] sm:$0xff]
    %v473 = vld [vmem:[%s2 + $0x1a0] sm:$0xff]
    %v474 = vld [vmem:[%s2 + $0x1a8] sm:$0xff]
    %v475 = vld [vmem:[%s2 + $0x1b0] sm:$0xff]
    %v476 = vld [vmem:[%s2 + $0x1b8] sm:$0xff]
    %v477 = vld [vmem:[%s2 + $0x1c0] sm:$0xff]
    %v478 = vld [vmem:[%s2 + $0x1c8] sm:$0xff]
    %v479 = vld [vmem:[%s2 + $0x1d0] sm:$0xff]
    %v480 = vld [vmem:[%s2 + $0x1d8] sm:$0xff]
    %v481 = vld [vmem:[%s2 + $0x1e0] sm:$0xff]
    %v482 = vld [vmem:[%s2 + $0x1e8] sm:$0xff]
    %v483 = vld [vmem:[%s2 + $0x1f0] sm:$0xff]
    %v484 = vld [vmem:[%s2 + $0x1f8] sm:$0xff]
    %v485 = vld [vmem:[%s2 + $0x200] sm:$0xff]
    %v486 = vld [vmem:[%s2 + $0x208] sm:$0xff]
    %v487 = vld [vmem:[%s2 + $0x210] sm:$0xff]
    %v488 = vld [vmem:[%s2 + $0x218] sm:$0xff]
    %v489 = vld [vmem:[%s2 + $0x220] sm:$0xff]
    %v490 = vld [vmem:[%s2 + $0x228] sm:$0xff]
    %v491 = vld [vmem:[%s2 + $0x230] sm:$0xff]
    %v492 = vld [vmem:[%s2 + $0x238] sm:$0xff]
    %v493 = vld [vmem:[%s2 + $0x240] sm:$0xff]
    %v494 = vld [vmem:[%s2 + $0x248] sm:$0xff]
    %v495 = vld [vmem:[%s2 + $0x250] sm:$0xff]
    %v496 = vld [vmem:[%s2 + $0x258] sm:$0xff]
    %v497 = vld [vmem:[%s2 + $0x260] sm:$0xff]
    %v498 = vld [vmem:[%s2 + $0x268] sm:$0xff]
    %v499 = vld [vmem:[%s2 + $0x270] sm:$0xff]
    %v500 = vld [vmem:[%s2 + $0x278] sm:$0xff]
    %v501 = vld [vmem:[%s2 + $0x280] sm:$0xff]
    %v502 = vld [vmem:[%s2 + $0x288] sm:$0xff]
    %v503 = vld [vmem:[%s2 + $0x290] sm:$0xff]
    %v504 = vld [vmem:[%s2 + $0x298] sm:$0xff]
    %v505 = vld [vmem:[%s2 + $0x2a0] sm:$0xff]
    %v506 = vld [vmem:[%s2 + $0x2a8] sm:$0xff]
    %v507 = vld [vmem:[%s2 + $0x2b0] sm:$0xff]
    %v508 = vld [vmem:[%s2 + $0x2b8] sm:$0xff]
    %v509 = vld [vmem:[%s2 + $0x2c0] sm:$0xff]
    %v510 = vld [vmem:[%s2 + $0x2c8] sm:$0xff]
    %v511 = vld [vmem:[%s2 + $0x2d0] sm:$0xff]
    %v512 = vld [vmem:[%s2 + $0x2d8] sm:$0xff]
    %v513 = vld [vmem:[%s2 + $0x2e0] sm:$0xff]
    %v514 = vld [vmem:[%s2 + $0x2e8] sm:$0xff]
    %v515 = vld [vmem:[%s2 + $0x2f0] sm:$0xff]
    %v516 = vld [vmem:[%s2 + $0x2f8] sm:$0xff]
    %v517 = vld [vmem:[%s2 + $0x300] sm:$0xff]
    %v518 = vld [vmem:[%s2 + $0x308] sm:$0xff]
    %v519 = vld [vmem:[%s2 + $0x310] sm:$0xff]
    %v520 = vld [vmem:[%s2 + $0x318] sm:$0xff]
    %v521 = vld [vmem:[%s2 + $0x320] sm:$0xff]
    %v522 = vld [vmem:[%s2 + $0x328] sm:$0xff]
    %v523 = vld [vmem:[%s2 + $0x330] sm:$0xff]
    %v524 = vld [vmem:[%s2 + $0x338] sm:$0xff]
    %v525 = vld [vmem:[%s2 + $0x340] sm:$0xff]
    %v526 = vld [vmem:[%s2 + $0x348] sm:$0xff]
    %v527 = vld [vmem:[%s2 + $0x350] sm:$0xff]
    %v528 = vld [vmem:[%s2 + $0x358] sm:$0xff]
    %v529 = vld [vmem:[%s2 + $0x360] sm:$0xff]
    %v530 = vld [vmem:[%s2 + $0x368] sm:$0xff]
    %v531 = vld [vmem:[%s2 + $0x370] sm:$0xff]
    %v532 = vld [vmem:[%s2 + $0x378] sm:$0xff]
    %v533 = vld [vmem:[%s2 + $0x380] sm:$0xff]
    %v534 = vld [vmem:[%s2 + $0x388] sm:$0xff]
    %v535 = vld [vmem:[%s2 + $0x390] sm:$0xff]
    %v536 = vld [vmem:[%s2 + $0x398] sm:$0xff]
    %v537 = vld [vmem:[%s2 + $0x3a0] sm:$0xff]
    %v538 = vld [vmem:[%s2 + $0x3a8] sm:$0xff]
    %v539 = vld [vmem:[%s2 + $0x3b0] sm:$0xff]
    %v540 = vld [vmem:[%s2 + $0x3b8] sm:$0xff]
    %v541 = vld [vmem:[%s2 + $0x3c0] sm:$0xff]
    %v542 = vld [vmem:[%s2 + $0x3c8] sm:$0xff]
    %v543 = vld [vmem:[%s2 + $0x3d0] sm:$0xff]
    %v544 = vld [vmem:[%s2 + $0x3d8] sm:$0xff]
    %v545 = vld [vmem:[%s2 + $0x3e0] sm:$0xff]
    %v546 = vld [vmem:[%s2 + $0x3e8] sm:$0xff]
    %v547 = vld [vmem:[%s2 + $0x3f0] sm:$0xff]
    %v548 = vld [vmem:[%s2 + $0x3f8] sm:$0xff]
    %550 = vset.pattern.permute.xlu0 0
    %551 = vperm.xlu0 %550, %v421
    %v552 = vpop.permute.xlu0 %551
    %555 = vset.pattern.permute.xlu0 0
    %556 = vperm.xlu0 %555, %v422
    %v557 = vpop.permute.xlu0 %556
    %560 = vset.pattern.permute.xlu0 0
    %561 = vperm.xlu0 %560, %v423
    %v562 = vpop.permute.xlu0 %561
    %565 = vset.pattern.permute.xlu0 0
    %566 = vperm.xlu0 %565, %v424
    %v567 = vpop.permute.xlu0 %566
    %570 = vset.pattern.permute.xlu0 0
    %571 = vperm.xlu0 %570, %v425
    %v572 = vpop.permute.xlu0 %571
    %575 = vset.pattern.permute.xlu0 0
    %576 = vperm.xlu0 %575, %v426
    %v577 = vpop.permute.xlu0 %576
    %580 = vset.pattern.permute.xlu0 0
    %581 = vperm.xlu0 %580, %v427
    %v582 = vpop.permute.xlu0 %581
    %585 = vset.pattern.permute.xlu0 0
    %586 = vperm.xlu0 %585, %v428
    %v587 = vpop.permute.xlu0 %586
    %590 = vset.pattern.permute.xlu0 0
    %591 = vperm.xlu0 %590, %v429
    %v592 = vpop.permute.xlu0 %591
    %595 = vset.pattern.permute.xlu0 0
    %596 = vperm.xlu0 %595, %v430
    %v597 = vpop.permute.xlu0 %596
    %600 = vset.pattern.permute.xlu0 0
    %601 = vperm.xlu0 %600, %v431
    %v602 = vpop.permute.xlu0 %601
    %605 = vset.pattern.permute.xlu0 0
    %606 = vperm.xlu0 %605, %v432
    %v607 = vpop.permute.xlu0 %606
    %610 = vset.pattern.permute.xlu0 0
    %611 = vperm.xlu0 %610, %v433
    %v612 = vpop.permute.xlu0 %611
    %615 = vset.pattern.permute.xlu0 0
    %616 = vperm.xlu0 %615, %v434
    %v617 = vpop.permute.xlu0 %616
    %620 = vset.pattern.permute.xlu0 0
    %621 = vperm.xlu0 %620, %v435
    %v622 = vpop.permute.xlu0 %621
    %625 = vset.pattern.permute.xlu0 0
    %626 = vperm.xlu0 %625, %v436
    %v627 = vpop.permute.xlu0 %626
    %630 = vset.pattern.permute.xlu0 0
    %631 = vperm.xlu0 %630, %v437
    %v632 = vpop.permute.xlu0 %631
    %635 = vset.pattern.permute.xlu0 0
    %636 = vperm.xlu0 %635, %v438
    %v637 = vpop.permute.xlu0 %636
    %640 = vset.pattern.permute.xlu0 0
    %641 = vperm.xlu0 %640, %v439
    %v642 = vpop.permute.xlu0 %641
    %645 = vset.pattern.permute.xlu0 0
    %646 = vperm.xlu0 %645, %v440
    %v647 = vpop.permute.xlu0 %646
    %650 = vset.pattern.permute.xlu0 0
    %651 = vperm.xlu0 %650, %v441
    %v652 = vpop.permute.xlu0 %651
    %655 = vset.pattern.permute.xlu0 0
    %656 = vperm.xlu0 %655, %v442
    %v657 = vpop.permute.xlu0 %656
    %660 = vset.pattern.permute.xlu0 0
    %661 = vperm.xlu0 %660, %v443
    %v662 = vpop.permute.xlu0 %661
    %665 = vset.pattern.permute.xlu0 0
    %666 = vperm.xlu0 %665, %v444
    %v667 = vpop.permute.xlu0 %666
    %670 = vset.pattern.permute.xlu0 0
    %671 = vperm.xlu0 %670, %v445
    %v672 = vpop.permute.xlu0 %671
    %675 = vset.pattern.permute.xlu0 0
    %676 = vperm.xlu0 %675, %v446
    %v677 = vpop.permute.xlu0 %676
    %680 = vset.pattern.permute.xlu0 0
    %681 = vperm.xlu0 %680, %v447
    %v682 = vpop.permute.xlu0 %681
    %685 = vset.pattern.permute.xlu0 0
    %686 = vperm.xlu0 %685, %v448
    %v687 = vpop.permute.xlu0 %686
    %690 = vset.pattern.permute.xlu0 0
    %691 = vperm.xlu0 %690, %v449
    %v692 = vpop.permute.xlu0 %691
    %695 = vset.pattern.permute.xlu0 0
    %696 = vperm.xlu0 %695, %v450
    %v697 = vpop.permute.xlu0 %696
    %700 = vset.pattern.permute.xlu0 0
    %701 = vperm.xlu0 %700, %v451
    %v702 = vpop.permute.xlu0 %701
    %705 = vset.pattern.permute.xlu0 0
    %706 = vperm.xlu0 %705, %v452
    %v707 = vpop.permute.xlu0 %706
    %710 = vset.pattern.permute.xlu0 0
    %711 = vperm.xlu0 %710, %v453
    %v712 = vpop.permute.xlu0 %711
    %715 = vset.pattern.permute.xlu0 0
    %716 = vperm.xlu0 %715, %v454
    %v717 = vpop.permute.xlu0 %716
    %720 = vset.pattern.permute.xlu0 0
    %721 = vperm.xlu0 %720, %v455
    %v722 = vpop.permute.xlu0 %721
    %725 = vset.pattern.permute.xlu0 0
    %726 = vperm.xlu0 %725, %v456
    %v727 = vpop.permute.xlu0 %726
    %730 = vset.pattern.permute.xlu0 0
    %731 = vperm.xlu0 %730, %v457
    %v732 = vpop.permute.xlu0 %731
    %735 = vset.pattern.permute.xlu0 0
    %736 = vperm.xlu0 %735, %v458
    %v737 = vpop.permute.xlu0 %736
    %740 = vset.pattern.permute.xlu0 0
    %741 = vperm.xlu0 %740, %v459
    %v742 = vpop.permute.xlu0 %741
    %745 = vset.pattern.permute.xlu0 0
    %746 = vperm.xlu0 %745, %v460
    %v747 = vpop.permute.xlu0 %746
    %750 = vset.pattern.permute.xlu0 0
    %751 = vperm.xlu0 %750, %v461
    %v752 = vpop.permute.xlu0 %751
    %755 = vset.pattern.permute.xlu0 0
    %756 = vperm.xlu0 %755, %v462
    %v757 = vpop.permute.xlu0 %756
    %760 = vset.pattern.permute.xlu0 0
    %761 = vperm.xlu0 %760, %v463
    %v762 = vpop.permute.xlu0 %761
    %765 = vset.pattern.permute.xlu0 0
    %766 = vperm.xlu0 %765, %v464
    %v767 = vpop.permute.xlu0 %766
    %770 = vset.pattern.permute.xlu0 0
    %771 = vperm.xlu0 %770, %v465
    %v772 = vpop.permute.xlu0 %771
    %775 = vset.pattern.permute.xlu0 0
    %776 = vperm.xlu0 %775, %v466
    %v777 = vpop.permute.xlu0 %776
    %780 = vset.pattern.permute.xlu0 0
    %781 = vperm.xlu0 %780, %v467
    %v782 = vpop.permute.xlu0 %781
    %785 = vset.pattern.permute.xlu0 0
    %786 = vperm.xlu0 %785, %v468
    %v787 = vpop.permute.xlu0 %786
    %790 = vset.pattern.permute.xlu0 0
    %791 = vperm.xlu0 %790, %v469
    %v792 = vpop.permute.xlu0 %791
    %795 = vset.pattern.permute.xlu0 0
    %796 = vperm.xlu0 %795, %v470
    %v797 = vpop.permute.xlu0 %796
    %800 = vset.pattern.permute.xlu0 0
    %801 = vperm.xlu0 %800, %v471
    %v802 = vpop.permute.xlu0 %801
    %805 = vset.pattern.permute.xlu0 0
    %806 = vperm.xlu0 %805, %v472
    %v807 = vpop.permute.xlu0 %806
    %810 = vset.pattern.permute.xlu0 0
    %811 = vperm.xlu0 %810, %v473
    %v812 = vpop.permute.xlu0 %811
    %815 = vset.pattern.permute.xlu0 0
    %816 = vperm.xlu0 %815, %v474
    %v817 = vpop.permute.xlu0 %816
    %820 = vset.pattern.permute.xlu0 0
    %821 = vperm.xlu0 %820, %v475
    %v822 = vpop.permute.xlu0 %821
    %825 = vset.pattern.permute.xlu0 0
    %826 = vperm.xlu0 %825, %v476
    %v827 = vpop.permute.xlu0 %826
    %830 = vset.pattern.permute.xlu0 0
    %831 = vperm.xlu0 %830, %v477
    %v832 = vpop.permute.xlu0 %831
    %835 = vset.pattern.permute.xlu0 0
    %836 = vperm.xlu0 %835, %v478
    %v837 = vpop.permute.xlu0 %836
    %840 = vset.pattern.permute.xlu0 0
    %841 = vperm.xlu0 %840, %v479
    %v842 = vpop.permute.xlu0 %841
    %845 = vset.pattern.permute.xlu0 0
    %846 = vperm.xlu0 %845, %v480
    %v847 = vpop.permute.xlu0 %846
    %850 = vset.pattern.permute.xlu0 0
    %851 = vperm.xlu0 %850, %v481
    %v852 = vpop.permute.xlu0 %851
    %855 = vset.pattern.permute.xlu0 0
    %856 = vperm.xlu0 %855, %v482
    %v857 = vpop.permute.xlu0 %856
    %860 = vset.pattern.permute.xlu0 0
    %861 = vperm.xlu0 %860, %v483
    %v862 = vpop.permute.xlu0 %861
    %865 = vset.pattern.permute.xlu0 0
    %866 = vperm.xlu0 %865, %v484
    %v867 = vpop.permute.xlu0 %866
    %870 = vset.pattern.permute.xlu0 0
    %871 = vperm.xlu0 %870, %v485
    %v872 = vpop.permute.xlu0 %871
    %875 = vset.pattern.permute.xlu0 0
    %876 = vperm.xlu0 %875, %v486
    %v877 = vpop.permute.xlu0 %876
    %880 = vset.pattern.permute.xlu0 0
    %881 = vperm.xlu0 %880, %v487
    %v882 = vpop.permute.xlu0 %881
    %885 = vset.pattern.permute.xlu0 0
    %886 = vperm.xlu0 %885, %v488
    %v887 = vpop.permute.xlu0 %886
    %890 = vset.pattern.permute.xlu0 0
    %891 = vperm.xlu0 %890, %v489
    %v892 = vpop.permute.xlu0 %891
    %895 = vset.pattern.permute.xlu0 0
    %896 = vperm.xlu0 %895, %v490
    %v897 = vpop.permute.xlu0 %896
    %900 = vset.pattern.permute.xlu0 0
    %901 = vperm.xlu0 %900, %v491
    %v902 = vpop.permute.xlu0 %901
    %905 = vset.pattern.permute.xlu0 0
    %906 = vperm.xlu0 %905, %v492
    %v907 = vpop.permute.xlu0 %906
    %910 = vset.pattern.permute.xlu0 0
    %911 = vperm.xlu0 %910, %v493
    %v912 = vpop.permute.xlu0 %911
    %915 = vset.pattern.permute.xlu0 0
    %916 = vperm.xlu0 %915, %v494
    %v917 = vpop.permute.xlu0 %916
    %920 = vset.pattern.permute.xlu0 0
    %921 = vperm.xlu0 %920, %v495
    %v922 = vpop.permute.xlu0 %921
    %925 = vset.pattern.permute.xlu0 0
    %926 = vperm.xlu0 %925, %v496
    %v927 = vpop.permute.xlu0 %926
    %930 = vset.pattern.permute.xlu0 0
    %931 = vperm.xlu0 %930, %v497
    %v932 = vpop.permute.xlu0 %931
    %935 = vset.pattern.permute.xlu0 0
    %936 = vperm.xlu0 %935, %v498
    %v937 = vpop.permute.xlu0 %936
    %940 = vset.pattern.permute.xlu0 0
    %941 = vperm.xlu0 %940, %v499
    %v942 = vpop.permute.xlu0 %941
    %945 = vset.pattern.permute.xlu0 0
    %946 = vperm.xlu0 %945, %v500
    %v947 = vpop.permute.xlu0 %946
    %950 = vset.pattern.permute.xlu0 0
    %951 = vperm.xlu0 %950, %v501
    %v952 = vpop.permute.xlu0 %951
    %955 = vset.pattern.permute.xlu0 0
    %956 = vperm.xlu0 %955, %v502
    %v957 = vpop.permute.xlu0 %956
    %960 = vset.pattern.permute.xlu0 0
    %961 = vperm.xlu0 %960, %v503
    %v962 = vpop.permute.xlu0 %961
    %965 = vset.pattern.permute.xlu0 0
    %966 = vperm.xlu0 %965, %v504
    %v967 = vpop.permute.xlu0 %966
    %970 = vset.pattern.permute.xlu0 0
    %971 = vperm.xlu0 %970, %v505
    %v972 = vpop.permute.xlu0 %971
    %975 = vset.pattern.permute.xlu0 0
    %976 = vperm.xlu0 %975, %v506
    %v977 = vpop.permute.xlu0 %976
    %980 = vset.pattern.permute.xlu0 0
    %981 = vperm.xlu0 %980, %v507
    %v982 = vpop.permute.xlu0 %981
    %985 = vset.pattern.permute.xlu0 0
    %986 = vperm.xlu0 %985, %v508
    %v987 = vpop.permute.xlu0 %986
    %990 = vset.pattern.permute.xlu0 0
    %991 = vperm.xlu0 %990, %v509
    %v992 = vpop.permute.xlu0 %991
    %995 = vset.pattern.permute.xlu0 0
    %996 = vperm.xlu0 %995, %v510
    %v997 = vpop.permute.xlu0 %996
    %1000 = vset.pattern.permute.xlu0 0
    %1001 = vperm.xlu0 %1000, %v511
    %v1002 = vpop.permute.xlu0 %1001
    %1005 = vset.pattern.permute.xlu0 0
    %1006 = vperm.xlu0 %1005, %v512
    %v1007 = vpop.permute.xlu0 %1006
    %1010 = vset.pattern.permute.xlu0 0
    %1011 = vperm.xlu0 %1010, %v513
    %v1012 = vpop.permute.xlu0 %1011
    %1015 = vset.pattern.permute.xlu0 0
    %1016 = vperm.xlu0 %1015, %v514
    %v1017 = vpop.permute.xlu0 %1016
    %1020 = vset.pattern.permute.xlu0 0
    %1021 = vperm.xlu0 %1020, %v515
    %v1022 = vpop.permute.xlu0 %1021
    %1025 = vset.pattern.permute.xlu0 0
    %1026 = vperm.xlu0 %1025, %v516
    %v1027 = vpop.permute.xlu0 %1026
    %1030 = vset.pattern.permute.xlu0 0
    %1031 = vperm.xlu0 %1030, %v517
    %v1032 = vpop.permute.xlu0 %1031
    %1035 = vset.pattern.permute.xlu0 0
    %1036 = vperm.xlu0 %1035, %v518
    %v1037 = vpop.permute.xlu0 %1036
    %1040 = vset.pattern.permute.xlu0 0
    %1041 = vperm.xlu0 %1040, %v519
    %v1042 = vpop.permute.xlu0 %1041
    %1045 = vset.pattern.permute.xlu0 0
    %1046 = vperm.xlu0 %1045, %v520
    %v1047 = vpop.permute.xlu0 %1046
    %1050 = vset.pattern.permute.xlu0 0
    %1051 = vperm.xlu0 %1050, %v521
    %v1052 = vpop.permute.xlu0 %1051
    %1055 = vset.pattern.permute.xlu0 0
    %1056 = vperm.xlu0 %1055, %v522
    %v1057 = vpop.permute.xlu0 %1056
    %1060 = vset.pattern.permute.xlu0 0
    %1061 = vperm.xlu0 %1060, %v523
    %v1062 = vpop.permute.xlu0 %1061
    %1065 = vset.pattern.permute.xlu0 0
    %1066 = vperm.xlu0 %1065, %v524
    %v1067 = vpop.permute.xlu0 %1066
    %1070 = vset.pattern.permute.xlu0 0
    %1071 = vperm.xlu0 %1070, %v525
    %v1072 = vpop.permute.xlu0 %1071
    %1075 = vset.pattern.permute.xlu0 0
    %1076 = vperm.xlu0 %1075, %v526
    %v1077 = vpop.permute.xlu0 %1076
    %1080 = vset.pattern.permute.xlu0 0
    %1081 = vperm.xlu0 %1080, %v527
    %v1082 = vpop.permute.xlu0 %1081
    %1085 = vset.pattern.permute.xlu0 0
    %1086 = vperm.xlu0 %1085, %v528
    %v1087 = vpop.permute.xlu0 %1086
    %1090 = vset.pattern.permute.xlu0 0
    %1091 = vperm.xlu0 %1090, %v529
    %v1092 = vpop.permute.xlu0 %1091
    %1095 = vset.pattern.permute.xlu0 0
    %1096 = vperm.xlu0 %1095, %v530
    %v1097 = vpop.permute.xlu0 %1096
    %1100 = vset.pattern.permute.xlu0 0
    %1101 = vperm.xlu0 %1100, %v531
    %v1102 = vpop.permute.xlu0 %1101
    %1105 = vset.pattern.permute.xlu0 0
    %1106 = vperm.xlu0 %1105, %v532
    %v1107 = vpop.permute.xlu0 %1106
    %1110 = vset.pattern.permute.xlu0 0
    %1111 = vperm.xlu0 %1110, %v533
    %v1112 = vpop.permute.xlu0 %1111
    %1115 = vset.pattern.permute.xlu0 0
    %1116 = vperm.xlu0 %1115, %v534
    %v1117 = vpop.permute.xlu0 %1116
    %1120 = vset.pattern.permute.xlu0 0
    %1121 = vperm.xlu0 %1120, %v535
    %v1122 = vpop.permute.xlu0 %1121
    %1125 = vset.pattern.permute.xlu0 0
    %1126 = vperm.xlu0 %1125, %v536
    %v1127 = vpop.permute.xlu0 %1126
    %1130 = vset.pattern.permute.xlu0 0
    %1131 = vperm.xlu0 %1130, %v537
    %v1132 = vpop.permute.xlu0 %1131
    %1135 = vset.pattern.permute.xlu0 0
    %1136 = vperm.xlu0 %1135, %v538
    %v1137 = vpop.permute.xlu0 %1136
    %1140 = vset.pattern.permute.xlu0 0
    %1141 = vperm.xlu0 %1140, %v539
    %v1142 = vpop.permute.xlu0 %1141
    %1145 = vset.pattern.permute.xlu0 0
    %1146 = vperm.xlu0 %1145, %v540
    %v1147 = vpop.permute.xlu0 %1146
    %1150 = vset.pattern.permute.xlu0 0
    %1151 = vperm.xlu0 %1150, %v541
    %v1152 = vpop.permute.xlu0 %1151
    %1155 = vset.pattern.permute.xlu0 0
    %1156 = vperm.xlu0 %1155, %v542
    %v1157 = vpop.permute.xlu0 %1156
    %1160 = vset.pattern.permute.xlu0 0
    %1161 = vperm.xlu0 %1160, %v543
    %v1162 = vpop.permute.xlu0 %1161
    %1165 = vset.pattern.permute.xlu0 0
    %1166 = vperm.xlu0 %1165, %v544
    %v1167 = vpop.permute.xlu0 %1166
    %1170 = vset.pattern.permute.xlu0 0
    %1171 = vperm.xlu0 %1170, %v545
    %v1172 = vpop.permute.xlu0 %1171
    %1175 = vset.pattern.permute.xlu0 0
    %1176 = vperm.xlu0 %1175, %v546
    %v1177 = vpop.permute.xlu0 %1176
    %1180 = vset.pattern.permute.xlu0 0
    %1181 = vperm.xlu0 %1180, %v547
    %v1182 = vpop.permute.xlu0 %1181
    %1185 = vset.pattern.permute.xlu0 0
    %1186 = vperm.xlu0 %1185, %v548
    %v1187 = vpop.permute.xlu0 %1186
    %1189 = vmatprep.subr.mxu0 0.0
    %1190 = vmatpush1.msra.mxu0 %v148
    %1191 = vmatprep.subr.mxu0 0.0
    %1192 = vmatpush1.msra.mxu0 %v147
    %1193 = vmatprep.subr.mxu0 0.0
    %1194 = vmatpush1.msra.mxu0 %v146
    %1195 = vmatprep.subr.mxu0 0.0
    %1196 = vmatpush1.msra.mxu0 %v145
    %1197 = vmatprep.subr.mxu0 0.0
    %1198 = vmatpush1.msra.mxu0 %v144
    %1199 = vmatprep.subr.mxu0 0.0
    %1200 = vmatpush1.msra.mxu0 %v143
    %1201 = vmatprep.subr.mxu0 0.0
    %1202 = vmatpush1.msra.mxu0 %v142
    %1203 = vmatprep.subr.mxu0 0.0
    %1204 = vmatpush1.msra.mxu0 %v141
    %1205 = vmatprep.subr.mxu0 0.0
    %1206 = vmatpush1.msra.mxu0 %v140
    %1207 = vmatprep.subr.mxu0 0.0
    %1208 = vmatpush1.msra.mxu0 %v139
    %1209 = vmatprep.subr.mxu0 0.0
    %1210 = vmatpush1.msra.mxu0 %v138
    %1211 = vmatprep.subr.mxu0 0.0
    %1212 = vmatpush1.msra.mxu0 %v137
    %1213 = vmatprep.subr.mxu0 0.0
    %1214 = vmatpush1.msra.mxu0 %v136
    %1215 = vmatprep.subr.mxu0 0.0
    %1216 = vmatpush1.msra.mxu0 %v135
    %1217 = vmatprep.subr.mxu0 0.0
    %1218 = vmatpush1.msra.mxu0 %v134
    %1219 = vmatprep.subr.mxu0 0.0
    %1220 = vmatpush1.msra.mxu0 %v133
    %1221 = vmatprep.subr.mxu0 0.0
    %1222 = vmatpush2.msra.mxu0 %v164
    %1223 = vmatprep.subr.mxu0 0.0
    %1224 = vmatpush2.msra.mxu0 %v163
    %1225 = vmatprep.subr.mxu0 0.0
    %1226 = vmatpush2.msra.mxu0 %v162
    %1227 = vmatprep.subr.mxu0 0.0
    %1228 = vmatpush2.msra.mxu0 %v161
    %1229 = vmatprep.subr.mxu0 0.0
    %1230 = vmatpush2.msra.mxu0 %v160
    %1231 = vmatprep.subr.mxu0 0.0
    %1232 = vmatpush2.msra.mxu0 %v159
    %1233 = vmatprep.subr.mxu0 0.0
    %1234 = vmatpush2.msra.mxu0 %v158
    %1235 = vmatprep.subr.mxu0 0.0
    %1236 = vmatpush2.msra.mxu0 %v157
    %1237 = vmatprep.subr.mxu0 0.0
    %1238 = vmatpush2.msra.mxu0 %v156
    %1239 = vmatprep.subr.mxu0 0.0
    %1240 = vmatpush2.msra.mxu0 %v155
    %1241 = vmatprep.subr.mxu0 0.0
    %1242 = vmatpush2.msra.mxu0 %v154
    %1243 = vmatprep.subr.mxu0 0.0
    %1244 = vmatpush2.msra.mxu0 %v153
    %1245 = vmatprep.subr.mxu0 0.0
    %1246 = vmatpush2.msra.mxu0 %v152
    %1247 = vmatprep.subr.mxu0 0.0
    %1248 = vmatpush2.msra.mxu0 %v151
    %1249 = vmatprep.subr.mxu0 0.0
    %1250 = vmatpush2.msra.mxu0 %v150
    %1251 = vmatprep.subr.mxu0 0.0
    %1252 = vmatpush2.msra.mxu0 %v149
    %1253 = vmatprep.mubr.f32.mxu0 %v166
    %1254 = vmatmul.mubr.f32.gmra.mxu0 %v165
    %v1255 = vpop.f32.mrf.mxu0
    %v1256 = vadd.f32 %v552, %v1255
    %v1257 = vpop.f32.mrf.mxu0
    %1258 = vmatprep.mubr.f32.mxu0 %v168
    %1259 = vmatmul.mubr.f32.gmra.mxu0 %v167
    %v1260 = vpop.f32.mrf.mxu0
    %v1261 = vadd.f32 %v557, %v1260
    %v1262 = vpop.f32.mrf.mxu0
    %1263 = vmatprep.mubr.f32.mxu0 %v170
    %1264 = vmatmul.mubr.f32.gmra.mxu0 %v169
    %v1265 = vpop.f32.mrf.mxu0
    %v1266 = vadd.f32 %v562, %v1265
    %v1267 = vpop.f32.mrf.mxu0
    %1268 = vmatprep.mubr.f32.mxu0 %v172
    %1269 = vmatmul.mubr.f32.gmra.mxu0 %v171
    %v1270 = vpop.f32.mrf.mxu0
    %v1271 = vadd.f32 %v567, %v1270
    %v1272 = vpop.f32.mrf.mxu0
    %1273 = vmatprep.mubr.f32.mxu0 %v174
    %1274 = vmatmul.mubr.f32.gmra.mxu0 %v173
    %v1275 = vpop.f32.mrf.mxu0
    %v1276 = vadd.f32 %v572, %v1275
    %v1277 = vpop.f32.mrf.mxu0
    %1278 = vmatprep.mubr.f32.mxu0 %v176
    %1279 = vmatmul.mubr.f32.gmra.mxu0 %v175
    %v1280 = vpop.f32.mrf.mxu0
    %v1281 = vadd.f32 %v577, %v1280
    %v1282 = vpop.f32.mrf.mxu0
    %1283 = vmatprep.mubr.f32.mxu0 %v178
    %1284 = vmatmul.mubr.f32.gmra.mxu0 %v177
    %v1285 = vpop.f32.mrf.mxu0
    %v1286 = vadd.f32 %v582, %v1285
    %v1287 = vpop.f32.mrf.mxu0
    %1288 = vmatprep.mubr.f32.mxu0 %v180
    %1289 = vmatmul.mubr.f32.gmra.mxu0 %v179
    %v1290 = vpop.f32.mrf.mxu0
    %v1291 = vadd.f32 %v587, %v1290
    %v1292 = vpop.f32.mrf.mxu0
    %1293 = vmatprep.mubr.f32.mxu0 %v182
    %1294 = vmatmul.mubr.f32.gmra.mxu0 %v181
    %v1295 = vpop.f32.mrf.mxu0
    %v1296 = vadd.f32 %v592, %v1295
    %v1297 = vpop.f32.mrf.mxu0
    %1298 = vmatprep.mubr.f32.mxu0 %v184
    %1299 = vmatmul.mubr.f32.gmra.mxu0 %v183
    %v1300 = vpop.f32.mrf.mxu0
    %v1301 = vadd.f32 %v597, %v1300
    %v1302 = vpop.f32.mrf.mxu0
    %1303 = vmatprep.mubr.f32.mxu0 %v186
    %1304 = vmatmul.mubr.f32.gmra.mxu0 %v185
    %v1305 = vpop.f32.mrf.mxu0
    %v1306 = vadd.f32 %v602, %v1305
    %v1307 = vpop.f32.mrf.mxu0
    %1308 = vmatprep.mubr.f32.mxu0 %v188
    %1309 = vmatmul.mubr.f32.gmra.mxu0 %v187
    %v1310 = vpop.f32.mrf.mxu0
    %v1311 = vadd.f32 %v607, %v1310
    %v1312 = vpop.f32.mrf.mxu0
    %1313 = vmatprep.mubr.f32.mxu0 %v190
    %1314 = vmatmul.mubr.f32.gmra.mxu0 %v189
    %v1315 = vpop.f32.mrf.mxu0
    %v1316 = vadd.f32 %v612, %v1315
    %v1317 = vpop.f32.mrf.mxu0
    %1318 = vmatprep.mubr.f32.mxu0 %v192
    %1319 = vmatmul.mubr.f32.gmra.mxu0 %v191
    %v1320 = vpop.f32.mrf.mxu0
    %v1321 = vadd.f32 %v617, %v1320
    %v1322 = vpop.f32.mrf.mxu0
    %1323 = vmatprep.mubr.f32.mxu0 %v194
    %1324 = vmatmul.mubr.f32.gmra.mxu0 %v193
    %v1325 = vpop.f32.mrf.mxu0
    %v1326 = vadd.f32 %v622, %v1325
    %v1327 = vpop.f32.mrf.mxu0
    %1328 = vmatprep.mubr.f32.mxu0 %v196
    %1329 = vmatmul.mubr.f32.gmra.mxu0 %v195
    %v1330 = vpop.f32.mrf.mxu0
    %v1331 = vadd.f32 %v627, %v1330
    %v1332 = vpop.f32.mrf.mxu0
    %1333 = vmatprep.mubr.f32.mxu0 %v198
    %1334 = vmatmul.mubr.f32.gmra.mxu0 %v197
    %v1335 = vpop.f32.mrf.mxu0
    %v1336 = vadd.f32 %v632, %v1335
    %v1337 = vpop.f32.mrf.mxu0
    %1338 = vmatprep.mubr.f32.mxu0 %v200
    %1339 = vmatmul.mubr.f32.gmra.mxu0 %v199
    %v1340 = vpop.f32.mrf.mxu0
    %v1341 = vadd.f32 %v637, %v1340
    %v1342 = vpop.f32.mrf.mxu0
    %1343 = vmatprep.mubr.f32.mxu0 %v202
    %1344 = vmatmul.mubr.f32.gmra.mxu0 %v201
    %v1345 = vpop.f32.mrf.mxu0
    %v1346 = vadd.f32 %v642, %v1345
    %v1347 = vpop.f32.mrf.mxu0
    %1348 = vmatprep.mubr.f32.mxu0 %v204
    %1349 = vmatmul.mubr.f32.gmra.mxu0 %v203
    %v1350 = vpop.f32.mrf.mxu0
    %v1351 = vadd.f32 %v647, %v1350
    %v1352 = vpop.f32.mrf.mxu0
    %1353 = vmatprep.mubr.f32.mxu0 %v206
    %1354 = vmatmul.mubr.f32.gmra.mxu0 %v205
    %v1355 = vpop.f32.mrf.mxu0
    %v1356 = vadd.f32 %v652, %v1355
    %v1357 = vpop.f32.mrf.mxu0
    %1358 = vmatprep.mubr.f32.mxu0 %v208
    %1359 = vmatmul.mubr.f32.gmra.mxu0 %v207
    %v1360 = vpop.f32.mrf.mxu0
    %v1361 = vadd.f32 %v657, %v1360
    %v1362 = vpop.f32.mrf.mxu0
    %1363 = vmatprep.mubr.f32.mxu0 %v210
    %1364 = vmatmul.mubr.f32.gmra.mxu0 %v209
    %v1365 = vpop.f32.mrf.mxu0
    %v1366 = vadd.f32 %v662, %v1365
    %v1367 = vpop.f32.mrf.mxu0
    %1368 = vmatprep.mubr.f32.mxu0 %v212
    %1369 = vmatmul.mubr.f32.gmra.mxu0 %v211
    %v1370 = vpop.f32.mrf.mxu0
    %v1371 = vadd.f32 %v667, %v1370
    %v1372 = vpop.f32.mrf.mxu0
    %1373 = vmatprep.mubr.f32.mxu0 %v214
    %1374 = vmatmul.mubr.f32.gmra.mxu0 %v213
    %v1375 = vpop.f32.mrf.mxu0
    %v1376 = vadd.f32 %v672, %v1375
    %v1377 = vpop.f32.mrf.mxu0
    %1378 = vmatprep.mubr.f32.mxu0 %v216
    %1379 = vmatmul.mubr.f32.gmra.mxu0 %v215
    %v1380 = vpop.f32.mrf.mxu0
    %v1381 = vadd.f32 %v677, %v1380
    %v1382 = vpop.f32.mrf.mxu0
    %1383 = vmatprep.mubr.f32.mxu0 %v218
    %1384 = vmatmul.mubr.f32.gmra.mxu0 %v217
    %v1385 = vpop.f32.mrf.mxu0
    %v1386 = vadd.f32 %v682, %v1385
    %v1387 = vpop.f32.mrf.mxu0
    %1388 = vmatprep.mubr.f32.mxu0 %v220
    %1389 = vmatmul.mubr.f32.gmra.mxu0 %v219
    %v1390 = vpop.f32.mrf.mxu0
    %v1391 = vadd.f32 %v687, %v1390
    %v1392 = vpop.f32.mrf.mxu0
    %1393 = vmatprep.mubr.f32.mxu0 %v222
    %1394 = vmatmul.mubr.f32.gmra.mxu0 %v221
    %v1395 = vpop.f32.mrf.mxu0
    %v1396 = vadd.f32 %v692, %v1395
    %v1397 = vpop.f32.mrf.mxu0
    %1398 = vmatprep.mubr.f32.mxu0 %v224
    %1399 = vmatmul.mubr.f32.gmra.mxu0 %v223
    %v1400 = vpop.f32.mrf.mxu0
    %v1401 = vadd.f32 %v697, %v1400
    %v1402 = vpop.f32.mrf.mxu0
    %1403 = vmatprep.mubr.f32.mxu0 %v226
    %1404 = vmatmul.mubr.f32.gmra.mxu0 %v225
    %v1405 = vpop.f32.mrf.mxu0
    %v1406 = vadd.f32 %v702, %v1405
    %v1407 = vpop.f32.mrf.mxu0
    %1408 = vmatprep.mubr.f32.mxu0 %v228
    %1409 = vmatmul.mubr.f32.gmra.mxu0 %v227
    %v1410 = vpop.f32.mrf.mxu0
    %v1411 = vadd.f32 %v707, %v1410
    %v1412 = vpop.f32.mrf.mxu0
    %1413 = vmatprep.mubr.f32.mxu0 %v230
    %1414 = vmatmul.mubr.f32.gmra.mxu0 %v229
    %v1415 = vpop.f32.mrf.mxu0
    %v1416 = vadd.f32 %v712, %v1415
    %v1417 = vpop.f32.mrf.mxu0
    %1418 = vmatprep.mubr.f32.mxu0 %v232
    %1419 = vmatmul.mubr.f32.gmra.mxu0 %v231
    %v1420 = vpop.f32.mrf.mxu0
    %v1421 = vadd.f32 %v717, %v1420
    %v1422 = vpop.f32.mrf.mxu0
    %1423 = vmatprep.mubr.f32.mxu0 %v234
    %1424 = vmatmul.mubr.f32.gmra.mxu0 %v233
    %v1425 = vpop.f32.mrf.mxu0
    %v1426 = vadd.f32 %v722, %v1425
    %v1427 = vpop.f32.mrf.mxu0
    %1428 = vmatprep.mubr.f32.mxu0 %v236
    %1429 = vmatmul.mubr.f32.gmra.mxu0 %v235
    %v1430 = vpop.f32.mrf.mxu0
    %v1431 = vadd.f32 %v727, %v1430
    %v1432 = vpop.f32.mrf.mxu0
    %1433 = vmatprep.mubr.f32.mxu0 %v238
    %1434 = vmatmul.mubr.f32.gmra.mxu0 %v237
    %v1435 = vpop.f32.mrf.mxu0
    %v1436 = vadd.f32 %v732, %v1435
    %v1437 = vpop.f32.mrf.mxu0
    %1438 = vmatprep.mubr.f32.mxu0 %v240
    %1439 = vmatmul.mubr.f32.gmra.mxu0 %v239
    %v1440 = vpop.f32.mrf.mxu0
    %v1441 = vadd.f32 %v737, %v1440
    %v1442 = vpop.f32.mrf.mxu0
    %1443 = vmatprep.mubr.f32.mxu0 %v242
    %1444 = vmatmul.mubr.f32.gmra.mxu0 %v241
    %v1445 = vpop.f32.mrf.mxu0
    %v1446 = vadd.f32 %v742, %v1445
    %v1447 = vpop.f32.mrf.mxu0
    %1448 = vmatprep.mubr.f32.mxu0 %v244
    %1449 = vmatmul.mubr.f32.gmra.mxu0 %v243
    %v1450 = vpop.f32.mrf.mxu0
    %v1451 = vadd.f32 %v747, %v1450
    %v1452 = vpop.f32.mrf.mxu0
    %1453 = vmatprep.mubr.f32.mxu0 %v246
    %1454 = vmatmul.mubr.f32.gmra.mxu0 %v245
    %v1455 = vpop.f32.mrf.mxu0
    %v1456 = vadd.f32 %v752, %v1455
    %v1457 = vpop.f32.mrf.mxu0
    %1458 = vmatprep.mubr.f32.mxu0 %v248
    %1459 = vmatmul.mubr.f32.gmra.mxu0 %v247
    %v1460 = vpop.f32.mrf.mxu0
    %v1461 = vadd.f32 %v757, %v1460
    %v1462 = vpop.f32.mrf.mxu0
    %1463 = vmatprep.mubr.f32.mxu0 %v250
    %1464 = vmatmul.mubr.f32.gmra.mxu0 %v249
    %v1465 = vpop.f32.mrf.mxu0
    %v1466 = vadd.f32 %v762, %v1465
    %v1467 = vpop.f32.mrf.mxu0
    %1468 = vmatprep.mubr.f32.mxu0 %v252
    %1469 = vmatmul.mubr.f32.gmra.mxu0 %v251
    %v1470 = vpop.f32.mrf.mxu0
    %v1471 = vadd.f32 %v767, %v1470
    %v1472 = vpop.f32.mrf.mxu0
    %1473 = vmatprep.mubr.f32.mxu0 %v254
    %1474 = vmatmul.mubr.f32.gmra.mxu0 %v253
    %v1475 = vpop.f32.mrf.mxu0
    %v1476 = vadd.f32 %v772, %v1475
    %v1477 = vpop.f32.mrf.mxu0
    %1478 = vmatprep.mubr.f32.mxu0 %v256
    %1479 = vmatmul.mubr.f32.gmra.mxu0 %v255
    %v1480 = vpop.f32.mrf.mxu0
    %v1481 = vadd.f32 %v777, %v1480
    %v1482 = vpop.f32.mrf.mxu0
    %1483 = vmatprep.mubr.f32.mxu0 %v258
    %1484 = vmatmul.mubr.f32.gmra.mxu0 %v257
    %v1485 = vpop.f32.mrf.mxu0
    %v1486 = vadd.f32 %v782, %v1485
    %v1487 = vpop.f32.mrf.mxu0
    %1488 = vmatprep.mubr.f32.mxu0 %v260
    %1489 = vmatmul.mubr.f32.gmra.mxu0 %v259
    %v1490 = vpop.f32.mrf.mxu0
    %v1491 = vadd.f32 %v787, %v1490
    %v1492 = vpop.f32.mrf.mxu0
    %1493 = vmatprep.mubr.f32.mxu0 %v262
    %1494 = vmatmul.mubr.f32.gmra.mxu0 %v261
    %v1495 = vpop.f32.mrf.mxu0
    %v1496 = vadd.f32 %v792, %v1495
    %v1497 = vpop.f32.mrf.mxu0
    %1498 = vmatprep.mubr.f32.mxu0 %v264
    %1499 = vmatmul.mubr.f32.gmra.mxu0 %v263
    %v1500 = vpop.f32.mrf.mxu0
    %v1501 = vadd.f32 %v797, %v1500
    %v1502 = vpop.f32.mrf.mxu0
    %1503 = vmatprep.mubr.f32.mxu0 %v266
    %1504 = vmatmul.mubr.f32.gmra.mxu0 %v265
    %v1505 = vpop.f32.mrf.mxu0
    %v1506 = vadd.f32 %v802, %v1505
    %v1507 = vpop.f32.mrf.mxu0
    %1508 = vmatprep.mubr.f32.mxu0 %v268
    %1509 = vmatmul.mubr.f32.gmra.mxu0 %v267
    %v1510 = vpop.f32.mrf.mxu0
    %v1511 = vadd.f32 %v807, %v1510
    %v1512 = vpop.f32.mrf.mxu0
    %1513 = vmatprep.mubr.f32.mxu0 %v270
    %1514 = vmatmul.mubr.f32.gmra.mxu0 %v269
    %v1515 = vpop.f32.mrf.mxu0
    %v1516 = vadd.f32 %v812, %v1515
    %v1517 = vpop.f32.mrf.mxu0
    %1518 = vmatprep.mubr.f32.mxu0 %v272
    %1519 = vmatmul.mubr.f32.gmra.mxu0 %v271
    %v1520 = vpop.f32.mrf.mxu0
    %v1521 = vadd.f32 %v817, %v1520
    %v1522 = vpop.f32.mrf.mxu0
    %1523 = vmatprep.mubr.f32.mxu0 %v274
    %1524 = vmatmul.mubr.f32.gmra.mxu0 %v273
    %v1525 = vpop.f32.mrf.mxu0
    %v1526 = vadd.f32 %v822, %v1525
    %v1527 = vpop.f32.mrf.mxu0
    %1528 = vmatprep.mubr.f32.mxu0 %v276
    %1529 = vmatmul.mubr.f32.gmra.mxu0 %v275
    %v1530 = vpop.f32.mrf.mxu0
    %v1531 = vadd.f32 %v827, %v1530
    %v1532 = vpop.f32.mrf.mxu0
    %1533 = vmatprep.mubr.f32.mxu0 %v278
    %1534 = vmatmul.mubr.f32.gmra.mxu0 %v277
    %v1535 = vpop.f32.mrf.mxu0
    %v1536 = vadd.f32 %v832, %v1535
    %v1537 = vpop.f32.mrf.mxu0
    %1538 = vmatprep.mubr.f32.mxu0 %v280
    %1539 = vmatmul.mubr.f32.gmra.mxu0 %v279
    %v1540 = vpop.f32.mrf.mxu0
    %v1541 = vadd.f32 %v837, %v1540
    %v1542 = vpop.f32.mrf.mxu0
    %1543 = vmatprep.mubr.f32.mxu0 %v282
    %1544 = vmatmul.mubr.f32.gmra.mxu0 %v281
    %v1545 = vpop.f32.mrf.mxu0
    %v1546 = vadd.f32 %v842, %v1545
    %v1547 = vpop.f32.mrf.mxu0
    %1548 = vmatprep.mubr.f32.mxu0 %v284
    %1549 = vmatmul.mubr.f32.gmra.mxu0 %v283
    %v1550 = vpop.f32.mrf.mxu0
    %v1551 = vadd.f32 %v847, %v1550
    %v1552 = vpop.f32.mrf.mxu0
    %1553 = vmatprep.mubr.f32.mxu0 %v286
    %1554 = vmatmul.mubr.f32.gmra.mxu0 %v285
    %v1555 = vpop.f32.mrf.mxu0
    %v1556 = vadd.f32 %v852, %v1555
    %v1557 = vpop.f32.mrf.mxu0
    %1558 = vmatprep.mubr.f32.mxu0 %v288
    %1559 = vmatmul.mubr.f32.gmra.mxu0 %v287
    %v1560 = vpop.f32.mrf.mxu0
    %v1561 = vadd.f32 %v857, %v1560
    %v1562 = vpop.f32.mrf.mxu0
    %1563 = vmatprep.mubr.f32.mxu0 %v290
    %1564 = vmatmul.mubr.f32.gmra.mxu0 %v289
    %v1565 = vpop.f32.mrf.mxu0
    %v1566 = vadd.f32 %v862, %v1565
    %v1567 = vpop.f32.mrf.mxu0
    %1568 = vmatprep.mubr.f32.mxu0 %v292
    %1569 = vmatmul.mubr.f32.gmra.mxu0 %v291
    %v1570 = vpop.f32.mrf.mxu0
    %v1571 = vadd.f32 %v867, %v1570
    %v1572 = vpop.f32.mrf.mxu0
    %1573 = vmatprep.mubr.f32.mxu0 %v294
    %1574 = vmatmul.mubr.f32.gmra.mxu0 %v293
    %v1575 = vpop.f32.mrf.mxu0
    %v1576 = vadd.f32 %v872, %v1575
    %v1577 = vpop.f32.mrf.mxu0
    %1578 = vmatprep.mubr.f32.mxu0 %v296
    %1579 = vmatmul.mubr.f32.gmra.mxu0 %v295
    %v1580 = vpop.f32.mrf.mxu0
    %v1581 = vadd.f32 %v877, %v1580
    %v1582 = vpop.f32.mrf.mxu0
    %1583 = vmatprep.mubr.f32.mxu0 %v298
    %1584 = vmatmul.mubr.f32.gmra.mxu0 %v297
    %v1585 = vpop.f32.mrf.mxu0
    %v1586 = vadd.f32 %v882, %v1585
    %v1587 = vpop.f32.mrf.mxu0
    %1588 = vmatprep.mubr.f32.mxu0 %v300
    %1589 = vmatmul.mubr.f32.gmra.mxu0 %v299
    %v1590 = vpop.f32.mrf.mxu0
    %v1591 = vadd.f32 %v887, %v1590
    %v1592 = vpop.f32.mrf.mxu0
    %1593 = vmatprep.mubr.f32.mxu0 %v302
    %1594 = vmatmul.mubr.f32.gmra.mxu0 %v301
    %v1595 = vpop.f32.mrf.mxu0
    %v1596 = vadd.f32 %v892, %v1595
    %v1597 = vpop.f32.mrf.mxu0
    %1598 = vmatprep.mubr.f32.mxu0 %v304
    %1599 = vmatmul.mubr.f32.gmra.mxu0 %v303
    %v1600 = vpop.f32.mrf.mxu0
    %v1601 = vadd.f32 %v897, %v1600
    %v1602 = vpop.f32.mrf.mxu0
    %1603 = vmatprep.mubr.f32.mxu0 %v306
    %1604 = vmatmul.mubr.f32.gmra.mxu0 %v305
    %v1605 = vpop.f32.mrf.mxu0
    %v1606 = vadd.f32 %v902, %v1605
    %v1607 = vpop.f32.mrf.mxu0
    %1608 = vmatprep.mubr.f32.mxu0 %v308
    %1609 = vmatmul.mubr.f32.gmra.mxu0 %v307
    %v1610 = vpop.f32.mrf.mxu0
    %v1611 = vadd.f32 %v907, %v1610
    %v1612 = vpop.f32.mrf.mxu0
    %1613 = vmatprep.mubr.f32.mxu0 %v310
    %1614 = vmatmul.mubr.f32.gmra.mxu0 %v309
    %v1615 = vpop.f32.mrf.mxu0
    %v1616 = vadd.f32 %v912, %v1615
    %v1617 = vpop.f32.mrf.mxu0
    %1618 = vmatprep.mubr.f32.mxu0 %v312
    %1619 = vmatmul.mubr.f32.gmra.mxu0 %v311
    %v1620 = vpop.f32.mrf.mxu0
    %v1621 = vadd.f32 %v917, %v1620
    %v1622 = vpop.f32.mrf.mxu0
    %1623 = vmatprep.mubr.f32.mxu0 %v314
    %1624 = vmatmul.mubr.f32.gmra.mxu0 %v313
    %v1625 = vpop.f32.mrf.mxu0
    %v1626 = vadd.f32 %v922, %v1625
    %v1627 = vpop.f32.mrf.mxu0
    %1628 = vmatprep.mubr.f32.mxu0 %v316
    %1629 = vmatmul.mubr.f32.gmra.mxu0 %v315
    %v1630 = vpop.f32.mrf.mxu0
    %v1631 = vadd.f32 %v927, %v1630
    %v1632 = vpop.f32.mrf.mxu0
    %1633 = vmatprep.mubr.f32.mxu0 %v318
    %1634 = vmatmul.mubr.f32.gmra.mxu0 %v317
    %v1635 = vpop.f32.mrf.mxu0
    %v1636 = vadd.f32 %v932, %v1635
    %v1637 = vpop.f32.mrf.mxu0
    %1638 = vmatprep.mubr.f32.mxu0 %v320
    %1639 = vmatmul.mubr.f32.gmra.mxu0 %v319
    %v1640 = vpop.f32.mrf.mxu0
    %v1641 = vadd.f32 %v937, %v1640
    %v1642 = vpop.f32.mrf.mxu0
    %1643 = vmatprep.mubr.f32.mxu0 %v322
    %1644 = vmatmul.mubr.f32.gmra.mxu0 %v321
    %v1645 = vpop.f32.mrf.mxu0
    %v1646 = vadd.f32 %v942, %v1645
    %v1647 = vpop.f32.mrf.mxu0
    %1648 = vmatprep.mubr.f32.mxu0 %v324
    %1649 = vmatmul.mubr.f32.gmra.mxu0 %v323
    %v1650 = vpop.f32.mrf.mxu0
    %v1651 = vadd.f32 %v947, %v1650
    %v1652 = vpop.f32.mrf.mxu0
    %1653 = vmatprep.mubr.f32.mxu0 %v326
    %1654 = vmatmul.mubr.f32.gmra.mxu0 %v325
    %v1655 = vpop.f32.mrf.mxu0
    %v1656 = vadd.f32 %v952, %v1655
    %v1657 = vpop.f32.mrf.mxu0
    %1658 = vmatprep.mubr.f32.mxu0 %v328
    %1659 = vmatmul.mubr.f32.gmra.mxu0 %v327
    %v1660 = vpop.f32.mrf.mxu0
    %v1661 = vadd.f32 %v957, %v1660
    %v1662 = vpop.f32.mrf.mxu0
    %1663 = vmatprep.mubr.f32.mxu0 %v330
    %1664 = vmatmul.mubr.f32.gmra.mxu0 %v329
    %v1665 = vpop.f32.mrf.mxu0
    %v1666 = vadd.f32 %v962, %v1665
    %v1667 = vpop.f32.mrf.mxu0
    %1668 = vmatprep.mubr.f32.mxu0 %v332
    %1669 = vmatmul.mubr.f32.gmra.mxu0 %v331
    %v1670 = vpop.f32.mrf.mxu0
    %v1671 = vadd.f32 %v967, %v1670
    %v1672 = vpop.f32.mrf.mxu0
    %1673 = vmatprep.mubr.f32.mxu0 %v334
    %1674 = vmatmul.mubr.f32.gmra.mxu0 %v333
    %v1675 = vpop.f32.mrf.mxu0
    %v1676 = vadd.f32 %v972, %v1675
    %v1677 = vpop.f32.mrf.mxu0
    %1678 = vmatprep.mubr.f32.mxu0 %v336
    %1679 = vmatmul.mubr.f32.gmra.mxu0 %v335
    %v1680 = vpop.f32.mrf.mxu0
    %v1681 = vadd.f32 %v977, %v1680
    %v1682 = vpop.f32.mrf.mxu0
    %1683 = vmatprep.mubr.f32.mxu0 %v338
    %1684 = vmatmul.mubr.f32.gmra.mxu0 %v337
    %v1685 = vpop.f32.mrf.mxu0
    %v1686 = vadd.f32 %v982, %v1685
    %v1687 = vpop.f32.mrf.mxu0
    %1688 = vmatprep.mubr.f32.mxu0 %v340
    %1689 = vmatmul.mubr.f32.gmra.mxu0 %v339
    %v1690 = vpop.f32.mrf.mxu0
    %v1691 = vadd.f32 %v987, %v1690
    %v1692 = vpop.f32.mrf.mxu0
    %1693 = vmatprep.mubr.f32.mxu0 %v342
    %1694 = vmatmul.mubr.f32.gmra.mxu0 %v341
    %v1695 = vpop.f32.mrf.mxu0
    %v1696 = vadd.f32 %v992, %v1695
    %v1697 = vpop.f32.mrf.mxu0
    %1698 = vmatprep.mubr.f32.mxu0 %v344
    %1699 = vmatmul.mubr.f32.gmra.mxu0 %v343
    %v1700 = vpop.f32.mrf.mxu0
    %v1701 = vadd.f32 %v997, %v1700
    %v1702 = vpop.f32.mrf.mxu0
    %1703 = vmatprep.mubr.f32.mxu0 %v346
    %1704 = vmatmul.mubr.f32.gmra.mxu0 %v345
    %v1705 = vpop.f32.mrf.mxu0
    %v1706 = vadd.f32 %v1002, %v1705
    %v1707 = vpop.f32.mrf.mxu0
    %1708 = vmatprep.mubr.f32.mxu0 %v348
    %1709 = vmatmul.mubr.f32.gmra.mxu0 %v347
    %v1710 = vpop.f32.mrf.mxu0
    %v1711 = vadd.f32 %v1007, %v1710
    %v1712 = vpop.f32.mrf.mxu0
    %1713 = vmatprep.mubr.f32.mxu0 %v350
    %1714 = vmatmul.mubr.f32.gmra.mxu0 %v349
    %v1715 = vpop.f32.mrf.mxu0
    %v1716 = vadd.f32 %v1012, %v1715
    %v1717 = vpop.f32.mrf.mxu0
    %1718 = vmatprep.mubr.f32.mxu0 %v352
    %1719 = vmatmul.mubr.f32.gmra.mxu0 %v351
    %v1720 = vpop.f32.mrf.mxu0
    %v1721 = vadd.f32 %v1017, %v1720
    %v1722 = vpop.f32.mrf.mxu0
    %1723 = vmatprep.mubr.f32.mxu0 %v354
    %1724 = vmatmul.mubr.f32.gmra.mxu0 %v353
    %v1725 = vpop.f32.mrf.mxu0
    %v1726 = vadd.f32 %v1022, %v1725
    %v1727 = vpop.f32.mrf.mxu0
    %1728 = vmatprep.mubr.f32.mxu0 %v356
    %1729 = vmatmul.mubr.f32.gmra.mxu0 %v355
    %v1730 = vpop.f32.mrf.mxu0
    %v1731 = vadd.f32 %v1027, %v1730
    %v1732 = vpop.f32.mrf.mxu0
    %1733 = vmatprep.mubr.f32.mxu0 %v358
    %1734 = vmatmul.mubr.f32.gmra.mxu0 %v357
    %v1735 = vpop.f32.mrf.mxu0
    %v1736 = vadd.f32 %v1032, %v1735
    %v1737 = vpop.f32.mrf.mxu0
    %1738 = vmatprep.mubr.f32.mxu0 %v360
    %1739 = vmatmul.mubr.f32.gmra.mxu0 %v359
    %v1740 = vpop.f32.mrf.mxu0
    %v1741 = vadd.f32 %v1037, %v1740
    %v1742 = vpop.f32.mrf.mxu0
    %1743 = vmatprep.mubr.f32.mxu0 %v362
    %1744 = vmatmul.mubr.f32.gmra.mxu0 %v361
    %v1745 = vpop.f32.mrf.mxu0
    %v1746 = vadd.f32 %v1042, %v1745
    %v1747 = vpop.f32.mrf.mxu0
    %1748 = vmatprep.mubr.f32.mxu0 %v364
    %1749 = vmatmul.mubr.f32.gmra.mxu0 %v363
    %v1750 = vpop.f32.mrf.mxu0
    %v1751 = vadd.f32 %v1047, %v1750
    %v1752 = vpop.f32.mrf.mxu0
    %1753 = vmatprep.mubr.f32.mxu0 %v366
    %1754 = vmatmul.mubr.f32.gmra.mxu0 %v365
    %v1755 = vpop.f32.mrf.mxu0
    %v1756 = vadd.f32 %v1052, %v1755
    %v1757 = vpop.f32.mrf.mxu0
    %1758 = vmatprep.mubr.f32.mxu0 %v368
    %1759 = vmatmul.mubr.f32.gmra.mxu0 %v367
    %v1760 = vpop.f32.mrf.mxu0
    %v1761 = vadd.f32 %v1057, %v1760
    %v1762 = vpop.f32.mrf.mxu0
    %1763 = vmatprep.mubr.f32.mxu0 %v370
    %1764 = vmatmul.mubr.f32.gmra.mxu0 %v369
    %v1765 = vpop.f32.mrf.mxu0
    %v1766 = vadd.f32 %v1062, %v1765
    %v1767 = vpop.f32.mrf.mxu0
    %1768 = vmatprep.mubr.f32.mxu0 %v372
    %1769 = vmatmul.mubr.f32.gmra.mxu0 %v371
    %v1770 = vpop.f32.mrf.mxu0
    %v1771 = vadd.f32 %v1067, %v1770
    %v1772 = vpop.f32.mrf.mxu0
    %1773 = vmatprep.mubr.f32.mxu0 %v374
    %1774 = vmatmul.mubr.f32.gmra.mxu0 %v373
    %v1775 = vpop.f32.mrf.mxu0
    %v1776 = vadd.f32 %v1072, %v1775
    %v1777 = vpop.f32.mrf.mxu0
    %1778 = vmatprep.mubr.f32.mxu0 %v376
    %1779 = vmatmul.mubr.f32.gmra.mxu0 %v375
    %v1780 = vpop.f32.mrf.mxu0
    %v1781 = vadd.f32 %v1077, %v1780
    %v1782 = vpop.f32.mrf.mxu0
    %1783 = vmatprep.mubr.f32.mxu0 %v378
    %1784 = vmatmul.mubr.f32.gmra.mxu0 %v377
    %v1785 = vpop.f32.mrf.mxu0
    %v1786 = vadd.f32 %v1082, %v1785
    %v1787 = vpop.f32.mrf.mxu0
    %1788 = vmatprep.mubr.f32.mxu0 %v380
    %1789 = vmatmul.mubr.f32.gmra.mxu0 %v379
    %v1790 = vpop.f32.mrf.mxu0
    %v1791 = vadd.f32 %v1087, %v1790
    %v1792 = vpop.f32.mrf.mxu0
    %1793 = vmatprep.mubr.f32.mxu0 %v382
    %1794 = vmatmul.mubr.f32.gmra.mxu0 %v381
    %v1795 = vpop.f32.mrf.mxu0
    %v1796 = vadd.f32 %v1092, %v1795
    %v1797 = vpop.f32.mrf.mxu0
    %1798 = vmatprep.mubr.f32.mxu0 %v384
    %1799 = vmatmul.mubr.f32.gmra.mxu0 %v383
    %v1800 = vpop.f32.mrf.mxu0
    %v1801 = vadd.f32 %v1097, %v1800
    %v1802 = vpop.f32.mrf.mxu0
    %1803 = vmatprep.mubr.f32.mxu0 %v386
    %1804 = vmatmul.mubr.f32.gmra.mxu0 %v385
    %v1805 = vpop.f32.mrf.mxu0
    %v1806 = vadd.f32 %v1102, %v1805
    %v1807 = vpop.f32.mrf.mxu0
    %1808 = vmatprep.mubr.f32.mxu0 %v388
    %1809 = vmatmul.mubr.f32.gmra.mxu0 %v387
    %v1810 = vpop.f32.mrf.mxu0
    %v1811 = vadd.f32 %v1107, %v1810
    %v1812 = vpop.f32.mrf.mxu0
    %1813 = vmatprep.mubr.f32.mxu0 %v390
    %1814 = vmatmul.mubr.f32.gmra.mxu0 %v389
    %v1815 = vpop.f32.mrf.mxu0
    %v1816 = vadd.f32 %v1112, %v1815
    %v1817 = vpop.f32.mrf.mxu0
    %1818 = vmatprep.mubr.f32.mxu0 %v392
    %1819 = vmatmul.mubr.f32.gmra.mxu0 %v391
    %v1820 = vpop.f32.mrf.mxu0
    %v1821 = vadd.f32 %v1117, %v1820
    %v1822 = vpop.f32.mrf.mxu0
    %1823 = vmatprep.mubr.f32.mxu0 %v394
    %1824 = vmatmul.mubr.f32.gmra.mxu0 %v393
    %v1825 = vpop.f32.mrf.mxu0
    %v1826 = vadd.f32 %v1122, %v1825
    %v1827 = vpop.f32.mrf.mxu0
    %1828 = vmatprep.mubr.f32.mxu0 %v396
    %1829 = vmatmul.mubr.f32.gmra.mxu0 %v395
    %v1830 = vpop.f32.mrf.mxu0
    %v1831 = vadd.f32 %v1127, %v1830
    %v1832 = vpop.f32.mrf.mxu0
    %1833 = vmatprep.mubr.f32.mxu0 %v398
    %1834 = vmatmul.mubr.f32.gmra.mxu0 %v397
    %v1835 = vpop.f32.mrf.mxu0
    %v1836 = vadd.f32 %v1132, %v1835
    %v1837 = vpop.f32.mrf.mxu0
    %1838 = vmatprep.mubr.f32.mxu0 %v400
    %1839 = vmatmul.mubr.f32.gmra.mxu0 %v399
    %v1840 = vpop.f32.mrf.mxu0
    %v1841 = vadd.f32 %v1137, %v1840
    %v1842 = vpop.f32.mrf.mxu0
    %1843 = vmatprep.mubr.f32.mxu0 %v402
    %1844 = vmatmul.mubr.f32.gmra.mxu0 %v401
    %v1845 = vpop.f32.mrf.mxu0
    %v1846 = vadd.f32 %v1142, %v1845
    %v1847 = vpop.f32.mrf.mxu0
    %1848 = vmatprep.mubr.f32.mxu0 %v404
    %1849 = vmatmul.mubr.f32.gmra.mxu0 %v403
    %v1850 = vpop.f32.mrf.mxu0
    %v1851 = vadd.f32 %v1147, %v1850
    %v1852 = vpop.f32.mrf.mxu0
    %1853 = vmatprep.mubr.f32.mxu0 %v406
    %1854 = vmatmul.mubr.f32.gmra.mxu0 %v405
    %v1855 = vpop.f32.mrf.mxu0
    %v1856 = vadd.f32 %v1152, %v1855
    %v1857 = vpop.f32.mrf.mxu0
    %1858 = vmatprep.mubr.f32.mxu0 %v408
    %1859 = vmatmul.mubr.f32.gmra.mxu0 %v407
    %v1860 = vpop.f32.mrf.mxu0
    %v1861 = vadd.f32 %v1157, %v1860
    %v1862 = vpop.f32.mrf.mxu0
    %1863 = vmatprep.mubr.f32.mxu0 %v410
    %1864 = vmatmul.mubr.f32.gmra.mxu0 %v409
    %v1865 = vpop.f32.mrf.mxu0
    %v1866 = vadd.f32 %v1162, %v1865
    %v1867 = vpop.f32.mrf.mxu0
    %1868 = vmatprep.mubr.f32.mxu0 %v412
    %1869 = vmatmul.mubr.f32.gmra.mxu0 %v411
    %v1870 = vpop.f32.mrf.mxu0
    %v1871 = vadd.f32 %v1167, %v1870
    %v1872 = vpop.f32.mrf.mxu0
    %1873 = vmatprep.mubr.f32.mxu0 %v414
    %1874 = vmatmul.mubr.f32.gmra.mxu0 %v413
    %v1875 = vpop.f32.mrf.mxu0
    %v1876 = vadd.f32 %v1172, %v1875
    %v1877 = vpop.f32.mrf.mxu0
    %1878 = vmatprep.mubr.f32.mxu0 %v416
    %1879 = vmatmul.mubr.f32.gmra.mxu0 %v415
    %v1880 = vpop.f32.mrf.mxu0
    %v1881 = vadd.f32 %v1177, %v1880
    %v1882 = vpop.f32.mrf.mxu0
    %1883 = vmatprep.mubr.f32.mxu0 %v418
    %1884 = vmatmul.mubr.f32.gmra.mxu0 %v417
    %v1885 = vpop.f32.mrf.mxu0
    %v1886 = vadd.f32 %v1182, %v1885
    %v1887 = vpop.f32.mrf.mxu0
    %1888 = vmatprep.mubr.f32.mxu0 %v420
    %1889 = vmatmul.mubr.f32.gmra.mxu0 %v419
    %v1890 = vpop.f32.mrf.mxu0
    %v1891 = vadd.f32 %v1187, %v1890
    %v1892 = vpop.f32.mrf.mxu0
    %1893 = vdwg.mxu0
    %v1894 = vmax.f32 %v1256, 0.0
    %v1895 = vmax.f32 %v1261, 0.0
    %v1896 = vmax.f32 %v1266, 0.0
    %v1897 = vmax.f32 %v1271, 0.0
    %v1898 = vmax.f32 %v1276, 0.0
    %v1899 = vmax.f32 %v1281, 0.0
    %v1900 = vmax.f32 %v1286, 0.0
    %v1901 = vmax.f32 %v1291, 0.0
    %v1902 = vmax.f32 %v1296, 0.0
    %v1903 = vmax.f32 %v1301, 0.0
    %v1904 = vmax.f32 %v1306, 0.0
    %v1905 = vmax.f32 %v1311, 0.0
    %v1906 = vmax.f32 %v1316, 0.0
    %v1907 = vmax.f32 %v1321, 0.0
    %v1908 = vmax.f32 %v1326, 0.0
    %v1909 = vmax.f32 %v1331, 0.0
    %v1910 = vmax.f32 %v1336, 0.0
    %v1911 = vmax.f32 %v1341, 0.0
    %v1912 = vmax.f32 %v1346, 0.0
    %v1913 = vmax.f32 %v1351, 0.0
    %v1914 = vmax.f32 %v1356, 0.0
    %v1915 = vmax.f32 %v1361, 0.0
    %v1916 = vmax.f32 %v1366, 0.0
    %v1917 = vmax.f32 %v1371, 0.0
    %v1918 = vmax.f32 %v1376, 0.0
    %v1919 = vmax.f32 %v1381, 0.0
    %v1920 = vmax.f32 %v1386, 0.0
    %v1921 = vmax.f32 %v1391, 0.0
    %v1922 = vmax.f32 %v1396, 0.0
    %v1923 = vmax.f32 %v1401, 0.0
    %v1924 = vmax.f32 %v1406, 0.0
    %v1925 = vmax.f32 %v1411, 0.0
    %v1926 = vmax.f32 %v1416, 0.0
    %v1927 = vmax.f32 %v1421, 0.0
    %v1928 = vmax.f32 %v1426, 0.0
    %v1929 = vmax.f32 %v1431, 0.0
    %v1930 = vmax.f32 %v1436, 0.0
    %v1931 = vmax.f32 %v1441, 0.0
    %v1932 = vmax.f32 %v1446, 0.0
    %v1933 = vmax.f32 %v1451, 0.0
    %v1934 = vmax.f32 %v1456, 0.0
    %v1935 = vmax.f32 %v1461, 0.0
    %v1936 = vmax.f32 %v1466, 0.0
    %v1937 = vmax.f32 %v1471, 0.0
    %v1938 = vmax.f32 %v1476, 0.0
    %v1939 = vmax.f32 %v1481, 0.0
    %v1940 = vmax.f32 %v1486, 0.0
    %v1941 = vmax.f32 %v1491, 0.0
    %v1942 = vmax.f32 %v1496, 0.0
    %v1943 = vmax.f32 %v1501, 0.0
    %v1944 = vmax.f32 %v1506, 0.0
    %v1945 = vmax.f32 %v1511, 0.0
    %v1946 = vmax.f32 %v1516, 0.0
    %v1947 = vmax.f32 %v1521, 0.0
    %v1948 = vmax.f32 %v1526, 0.0
    %v1949 = vmax.f32 %v1531, 0.0
    %v1950 = vmax.f32 %v1536, 0.0
    %v1951 = vmax.f32 %v1541, 0.0
    %v1952 = vmax.f32 %v1546, 0.0
    %v1953 = vmax.f32 %v1551, 0.0
    %v1954 = vmax.f32 %v1556, 0.0
    %v1955 = vmax.f32 %v1561, 0.0
    %v1956 = vmax.f32 %v1566, 0.0
    %v1957 = vmax.f32 %v1571, 0.0
    %v1958 = vmax.f32 %v1576, 0.0
    %v1959 = vmax.f32 %v1581, 0.0
    %v1960 = vmax.f32 %v1586, 0.0
    %v1961 = vmax.f32 %v1591, 0.0
    %v1962 = vmax.f32 %v1596, 0.0
    %v1963 = vmax.f32 %v1601, 0.0
    %v1964 = vmax.f32 %v1606, 0.0
    %v1965 = vmax.f32 %v1611, 0.0
    %v1966 = vmax.f32 %v1616, 0.0
    %v1967 = vmax.f32 %v1621, 0.0
    %v1968 = vmax.f32 %v1626, 0.0
    %v1969 = vmax.f32 %v1631, 0.0
    %v1970 = vmax.f32 %v1636, 0.0
    %v1971 = vmax.f32 %v1641, 0.0
    %v1972 = vmax.f32 %v1646, 0.0
    %v1973 = vmax.f32 %v1651, 0.0
    %v1974 = vmax.f32 %v1656, 0.0
    %v1975 = vmax.f32 %v1661, 0.0
    %v1976 = vmax.f32 %v1666, 0.0
    %v1977 = vmax.f32 %v1671, 0.0
    %v1978 = vmax.f32 %v1676, 0.0
    %v1979 = vmax.f32 %v1681, 0.0
    %v1980 = vmax.f32 %v1686, 0.0
    %v1981 = vmax.f32 %v1691, 0.0
    %v1982 = vmax.f32 %v1696, 0.0
    %v1983 = vmax.f32 %v1701, 0.0
    %v1984 = vmax.f32 %v1706, 0.0
    %v1985 = vmax.f32 %v1711, 0.0
    %v1986 = vmax.f32 %v1716, 0.0
    %v1987 = vmax.f32 %v1721, 0.0
    %v1988 = vmax.f32 %v1726, 0.0
    %v1989 = vmax.f32 %v1731, 0.0
    %v1990 = vmax.f32 %v1736, 0.0
    %v1991 = vmax.f32 %v1741, 0.0
    %v1992 = vmax.f32 %v1746, 0.0
    %v1993 = vmax.f32 %v1751, 0.0
    %v1994 = vmax.f32 %v1756, 0.0
    %v1995 = vmax.f32 %v1761, 0.0
    %v1996 = vmax.f32 %v1766, 0.0
    %v1997 = vmax.f32 %v1771, 0.0
    %v1998 = vmax.f32 %v1776, 0.0
    %v1999 = vmax.f32 %v1781, 0.0
    %v2000 = vmax.f32 %v1786, 0.0
    %v2001 = vmax.f32 %v1791, 0.0
    %v2002 = vmax.f32 %v1796, 0.0
    %v2003 = vmax.f32 %v1801, 0.0
    %v2004 = vmax.f32 %v1806, 0.0
    %v2005 = vmax.f32 %v1811, 0.0
    %v2006 = vmax.f32 %v1816, 0.0
    %v2007 = vmax.f32 %v1821, 0.0
    %v2008 = vmax.f32 %v1826, 0.0
    %v2009 = vmax.f32 %v1831, 0.0
    %v2010 = vmax.f32 %v1836, 0.0
    %v2011 = vmax.f32 %v1841, 0.0
    %v2012 = vmax.f32 %v1846, 0.0
    %v2013 = vmax.f32 %v1851, 0.0
    %v2014 = vmax.f32 %v1856, 0.0
    %v2015 = vmax.f32 %v1861, 0.0
    %v2016 = vmax.f32 %v1866, 0.0
    %v2017 = vmax.f32 %v1871, 0.0
    %v2018 = vmax.f32 %v1876, 0.0
    %v2019 = vmax.f32 %v1881, 0.0
    %v2020 = vmax.f32 %v1886, 0.0
    %v2021 = vmax.f32 %v1891, 0.0
    %v2022 = vmax.f32 %v1894, %v1926
    %v2023 = vmax.f32 %v1895, %v1927
    %v2024 = vmax.f32 %v1896, %v1928
    %v2025 = vmax.f32 %v1897, %v1929
    %v2026 = vmax.f32 %v1898, %v1930
    %v2027 = vmax.f32 %v1899, %v1931
    %v2028 = vmax.f32 %v1900, %v1932
    %v2029 = vmax.f32 %v1901, %v1933
    %v2030 = vmax.f32 %v1902, %v1934
    %v2031 = vmax.f32 %v1903, %v1935
    %v2032 = vmax.f32 %v1904, %v1936
    %v2033 = vmax.f32 %v1905, %v1937
    %v2034 = vmax.f32 %v1906, %v1938
    %v2035 = vmax.f32 %v1907, %v1939
    %v2036 = vmax.f32 %v1908, %v1940
    %v2037 = vmax.f32 %v1909, %v1941
    %v2038 = vmax.f32 %v1910, %v1942
    %v2039 = vmax.f32 %v1911, %v1943
    %v2040 = vmax.f32 %v1912, %v1944
    %v2041 = vmax.f32 %v1913, %v1945
    %v2042 = vmax.f32 %v1914, %v1946
    %v2043 = vmax.f32 %v1915, %v1947
    %v2044 = vmax.f32 %v1916, %v1948
    %v2045 = vmax.f32 %v1917, %v1949
    %v2046 = vmax.f32 %v1918, %v1950
    %v2047 = vmax.f32 %v1919, %v1951
    %v2048 = vmax.f32 %v1920, %v1952
    %v2049 = vmax.f32 %v1921, %v1953
    %v2050 = vmax.f32 %v1922, %v1954
    %v2051 = vmax.f32 %v1923, %v1955
    %v2052 = vmax.f32 %v1924, %v1956
    %v2053 = vmax.f32 %v1925, %v1957
    %v2054 = vmax.f32 %v1958, %v1990
    %v2055 = vmax.f32 %v1959, %v1991
    %v2056 = vmax.f32 %v1960, %v1992
    %v2057 = vmax.f32 %v1961, %v1993
    %v2058 = vmax.f32 %v1962, %v1994
    %v2059 = vmax.f32 %v1963, %v1995
    %v2060 = vmax.f32 %v1964, %v1996
    %v2061 = vmax.f32 %v1965, %v1997
    %v2062 = vmax.f32 %v1966, %v1998
    %v2063 = vmax.f32 %v1967, %v1999
    %v2064 = vmax.f32 %v1968, %v2000
    %v2065 = vmax.f32 %v1969, %v2001
    %v2066 = vmax.f32 %v1970, %v2002
    %v2067 = vmax.f32 %v1971, %v2003
    %v2068 = vmax.f32 %v1972, %v2004
    %v2069 = vmax.f32 %v1973, %v2005
    %v2070 = vmax.f32 %v1974, %v2006
    %v2071 = vmax.f32 %v1975, %v2007
    %v2072 = vmax.f32 %v1976, %v2008
    %v2073 = vmax.f32 %v1977, %v2009
    %v2074 = vmax.f32 %v1978, %v2010
    %v2075 = vmax.f32 %v1979, %v2011
    %v2076 = vmax.f32 %v1980, %v2012
    %v2077 = vmax.f32 %v1981, %v2013
    %v2078 = vmax.f32 %v1982, %v2014
    %v2079 = vmax.f32 %v1983, %v2015
    %v2080 = vmax.f32 %v1984, %v2016
    %v2081 = vmax.f32 %v1985, %v2017
    %v2082 = vmax.f32 %v1986, %v2018
    %v2083 = vmax.f32 %v1987, %v2019
    %v2084 = vmax.f32 %v1988, %v2020
    %v2085 = vmax.f32 %v1989, %v2021
    %v2086 = vmax.f32 %v2022, %v2054
    %v2087 = vmax.f32 %v2023, %v2055
    %v2088 = vmax.f32 %v2024, %v2056
    %v2089 = vmax.f32 %v2025, %v2057
    %v2090 = vmax.f32 %v2026, %v2058
    %v2091 = vmax.f32 %v2027, %v2059
    %v2092 = vmax.f32 %v2028, %v2060
    %v2093 = vmax.f32 %v2029, %v2061
    %v2094 = vmax.f32 %v2030, %v2062
    %v2095 = vmax.f32 %v2031, %v2063
    %v2096 = vmax.f32 %v2032, %v2064
    %v2097 = vmax.f32 %v2033, %v2065
    %v2098 = vmax.f32 %v2034, %v2066
    %v2099 = vmax.f32 %v2035, %v2067
    %v2100 = vmax.f32 %v2036, %v2068
    %v2101 = vmax.f32 %v2037, %v2069
    %v2102 = vmax.f32 %v2038, %v2070
    %v2103 = vmax.f32 %v2039, %v2071
    %v2104 = vmax.f32 %v2040, %v2072
    %v2105 = vmax.f32 %v2041, %v2073
    %v2106 = vmax.f32 %v2042, %v2074
    %v2107 = vmax.f32 %v2043, %v2075
    %v2108 = vmax.f32 %v2044, %v2076
    %v2109 = vmax.f32 %v2045, %v2077
    %v2110 = vmax.f32 %v2046, %v2078
    %v2111 = vmax.f32 %v2047, %v2079
    %v2112 = vmax.f32 %v2048, %v2080
    %v2113 = vmax.f32 %v2049, %v2081
    %v2114 = vmax.f32 %v2050, %v2082
    %v2115 = vmax.f32 %v2051, %v2083
    %v2116 = vmax.f32 %v2052, %v2084
    %v2117 = vmax.f32 %v2053, %v2085
    %v2118 = vld [vmem:[#allocation4] sm:$0xff]
    %v2119 = vld [vmem:[#allocation4 + $0x8] sm:$0xff]
    %v2120 = vld [vmem:[#allocation4 + $0x10] sm:$0xff]
    %v2121 = vld [vmem:[#allocation4 + $0x18] sm:$0xff]
    %v2122 = vld [vmem:[#allocation4 + $0x20] sm:$0xff]
    %v2123 = vld [vmem:[#allocation4 + $0x28] sm:$0xff]
    %v2124 = vld [vmem:[#allocation4 + $0x30] sm:$0xff]
    %v2125 = vld [vmem:[#allocation4 + $0x38] sm:$0xff]
    %v2126 = vld [vmem:[#allocation4 + $0x40] sm:$0xff]
    %v2127 = vld [vmem:[#allocation4 + $0x48] sm:$0xff]
    %v2128 = vld [vmem:[#allocation4 + $0x50] sm:$0xff]
    %v2129 = vld [vmem:[#allocation4 + $0x58] sm:$0xff]
    %v2130 = vld [vmem:[#allocation4 + $0x60] sm:$0xff]
    %v2131 = vld [vmem:[#allocation4 + $0x68] sm:$0xff]
    %v2132 = vld [vmem:[#allocation4 + $0x70] sm:$0xff]
    %v2133 = vld [vmem:[#allocation4 + $0x78] sm:$0xff]
    %v2134 = vld [vmem:[#allocation4 + $0x80] sm:$0xff]
    %v2135 = vld [vmem:[#allocation4 + $0x88] sm:$0xff]
    %v2136 = vld [vmem:[#allocation4 + $0x90] sm:$0xff]
    %v2137 = vld [vmem:[#allocation4 + $0x98] sm:$0xff]
    %v2138 = vld [vmem:[#allocation4 + $0xa0] sm:$0xff]
    %v2139 = vld [vmem:[#allocation4 + $0xa8] sm:$0xff]
    %v2140 = vld [vmem:[#allocation4 + $0xb0] sm:$0xff]
    %v2141 = vld [vmem:[#allocation4 + $0xb8] sm:$0xff]
    %v2142 = vld [vmem:[#allocation4 + $0xc0] sm:$0xff]
    %v2143 = vld [vmem:[#allocation4 + $0xc8] sm:$0xff]
    %v2144 = vld [vmem:[#allocation4 + $0xd0] sm:$0xff]
    %v2145 = vld [vmem:[#allocation4 + $0xd8] sm:$0xff]
    %v2146 = vld [vmem:[#allocation4 + $0xe0] sm:$0xff]
    %v2147 = vld [vmem:[#allocation4 + $0xe8] sm:$0xff]
    %v2148 = vld [vmem:[#allocation4 + $0xf0] sm:$0xff]
    %v2149 = vld [vmem:[#allocation4 + $0xf8] sm:$0xff]
    %v2150 = vld [vmem:[#allocation4 + $0x100] sm:$0xff]
    %v2151 = vld [vmem:[#allocation4 + $0x108] sm:$0xff]
    %v2152 = vld [vmem:[#allocation4 + $0x110] sm:$0xff]
    %v2153 = vld [vmem:[#allocation4 + $0x118] sm:$0xff]
    %v2154 = vld [vmem:[#allocation4 + $0x120] sm:$0xff]
    %v2155 = vld [vmem:[#allocation4 + $0x128] sm:$0xff]
    %v2156 = vld [vmem:[#allocation4 + $0x130] sm:$0xff]
    %v2157 = vld [vmem:[#allocation4 + $0x138] sm:$0xff]
    %v2158 = vld [vmem:[#allocation4 + $0x140] sm:$0xff]
    %v2159 = vld [vmem:[#allocation4 + $0x148] sm:$0xff]
    %v2160 = vld [vmem:[#allocation4 + $0x150] sm:$0xff]
    %v2161 = vld [vmem:[#allocation4 + $0x158] sm:$0xff]
    %v2162 = vld [vmem:[#allocation4 + $0x160] sm:$0xff]
    %v2163 = vld [vmem:[#allocation4 + $0x168] sm:$0xff]
    %v2164 = vld [vmem:[#allocation4 + $0x170] sm:$0xff]
    %v2165 = vld [vmem:[#allocation4 + $0x178] sm:$0xff]
    %v2166 = vld [vmem:[#allocation4 + $0x180] sm:$0xff]
    %v2167 = vld [vmem:[#allocation4 + $0x188] sm:$0xff]
    %v2168 = vld [vmem:[#allocation4 + $0x190] sm:$0xff]
    %v2169 = vld [vmem:[#allocation4 + $0x198] sm:$0xff]
    %v2170 = vld [vmem:[#allocation4 + $0x1a0] sm:$0xff]
    %v2171 = vld [vmem:[#allocation4 + $0x1a8] sm:$0xff]
    %v2172 = vld [vmem:[#allocation4 + $0x1b0] sm:$0xff]
    %v2173 = vld [vmem:[#allocation4 + $0x1b8] sm:$0xff]
    %v2174 = vld [vmem:[#allocation4 + $0x1c0] sm:$0xff]
    %v2175 = vld [vmem:[#allocation4 + $0x1c8] sm:$0xff]
    %v2176 = vld [vmem:[#allocation4 + $0x1d0] sm:$0xff]
    %v2177 = vld [vmem:[#allocation4 + $0x1d8] sm:$0xff]
    %v2178 = vld [vmem:[#allocation4 + $0x1e0] sm:$0xff]
    %v2179 = vld [vmem:[#allocation4 + $0x1e8] sm:$0xff]
    %v2180 = vld [vmem:[#allocation4 + $0x1f0] sm:$0xff]
    %v2181 = vld [vmem:[#allocation4 + $0x1f8] sm:$0xff]
    %v2182 = vld [vmem:[#allocation4 + $0x200] sm:$0xff]
    %v2183 = vld [vmem:[#allocation4 + $0x208] sm:$0xff]
    %v2184 = vld [vmem:[#allocation4 + $0x210] sm:$0xff]
    %v2185 = vld [vmem:[#allocation4 + $0x218] sm:$0xff]
    %v2186 = vld [vmem:[#allocation4 + $0x220] sm:$0xff]
    %v2187 = vld [vmem:[#allocation4 + $0x228] sm:$0xff]
    %v2188 = vld [vmem:[#allocation4 + $0x230] sm:$0xff]
    %v2189 = vld [vmem:[#allocation4 + $0x238] sm:$0xff]
    %v2190 = vld [vmem:[#allocation4 + $0x240] sm:$0xff]
    %v2191 = vld [vmem:[#allocation4 + $0x248] sm:$0xff]
    %v2192 = vld [vmem:[#allocation4 + $0x250] sm:$0xff]
    %v2193 = vld [vmem:[#allocation4 + $0x258] sm:$0xff]
    %v2194 = vld [vmem:[#allocation4 + $0x260] sm:$0xff]
    %v2195 = vld [vmem:[#allocation4 + $0x268] sm:$0xff]
    %v2196 = vld [vmem:[#allocation4 + $0x270] sm:$0xff]
    %v2197 = vld [vmem:[#allocation4 + $0x278] sm:$0xff]
    %v2198 = vld [vmem:[#allocation4 + $0x280] sm:$0xff]
    %v2199 = vld [vmem:[#allocation4 + $0x288] sm:$0xff]
    %v2200 = vld [vmem:[#allocation4 + $0x290] sm:$0xff]
    %v2201 = vld [vmem:[#allocation4 + $0x298] sm:$0xff]
    %v2202 = vld [vmem:[#allocation4 + $0x2a0] sm:$0xff]
    %v2203 = vld [vmem:[#allocation4 + $0x2a8] sm:$0xff]
    %v2204 = vld [vmem:[#allocation4 + $0x2b0] sm:$0xff]
    %v2205 = vld [vmem:[#allocation4 + $0x2b8] sm:$0xff]
    %v2206 = vld [vmem:[#allocation4 + $0x2c0] sm:$0xff]
    %v2207 = vld [vmem:[#allocation4 + $0x2c8] sm:$0xff]
    %v2208 = vld [vmem:[#allocation4 + $0x2d0] sm:$0xff]
    %v2209 = vld [vmem:[#allocation4 + $0x2d8] sm:$0xff]
    %v2210 = vld [vmem:[#allocation4 + $0x2e0] sm:$0xff]
    %v2211 = vld [vmem:[#allocation4 + $0x2e8] sm:$0xff]
    %v2212 = vld [vmem:[#allocation4 + $0x2f0] sm:$0xff]
    %v2213 = vld [vmem:[#allocation4 + $0x2f8] sm:$0xff]
    %v2214 = vld [vmem:[#allocation6] sm:$0xff]
    %v2215 = vld [vmem:[#allocation6 + $0x8] sm:$0xff]
    %v2216 = vld [vmem:[#allocation6 + $0x10] sm:$0xff]
    %v2217 = vld [vmem:[#allocation6 + $0x18] sm:$0xff]
    %v2218 = vld [vmem:[#allocation6 + $0x20] sm:$0xff]
    %v2219 = vld [vmem:[#allocation6 + $0x28] sm:$0xff]
    %v2220 = vld [vmem:[#allocation6 + $0x30] sm:$0xff]
    %v2221 = vld [vmem:[#allocation6 + $0x38] sm:$0xff]
    %v2222 = vld [vmem:[#allocation6 + $0x40] sm:$0xff]
    %v2223 = vld [vmem:[#allocation6 + $0x48] sm:$0xff]
    %v2224 = vld [vmem:[#allocation6 + $0x50] sm:$0xff]
    %v2225 = vld [vmem:[#allocation6 + $0x58] sm:$0xff]
    %v2226 = vld [vmem:[#allocation6 + $0x60] sm:$0xff]
    %v2227 = vld [vmem:[#allocation6 + $0x68] sm:$0xff]
    %v2228 = vld [vmem:[#allocation6 + $0x70] sm:$0xff]
    %v2229 = vld [vmem:[#allocation6 + $0x78] sm:$0xff]
    %v2230 = vld [vmem:[#allocation6 + $0x80] sm:$0xff]
    %v2231 = vld [vmem:[#allocation6 + $0x88] sm:$0xff]
    %v2232 = vld [vmem:[#allocation6 + $0x90] sm:$0xff]
    %v2233 = vld [vmem:[#allocation6 + $0x98] sm:$0xff]
    %v2234 = vld [vmem:[#allocation6 + $0xa0] sm:$0xff]
    %v2235 = vld [vmem:[#allocation6 + $0xa8] sm:$0xff]
    %v2236 = vld [vmem:[#allocation6 + $0xb0] sm:$0xff]
    %v2237 = vld [vmem:[#allocation6 + $0xb8] sm:$0xff]
    %v2238 = vld [vmem:[#allocation6 + $0xc0] sm:$0xff]
    %v2239 = vld [vmem:[#allocation6 + $0xc8] sm:$0xff]
    %v2240 = vld [vmem:[#allocation6 + $0xd0] sm:$0xff]
    %v2241 = vld [vmem:[#allocation6 + $0xd8] sm:$0xff]
    %v2242 = vld [vmem:[#allocation6 + $0xe0] sm:$0xff]
    %v2243 = vld [vmem:[#allocation6 + $0xe8] sm:$0xff]
    %v2244 = vld [vmem:[#allocation6 + $0xf0] sm:$0xff]
    %v2245 = vld [vmem:[#allocation6 + $0xf8] sm:$0xff]
    %v2246 = vld [vmem:[#allocation6 + $0x100] sm:$0xff]
    %v2247 = vld [vmem:[#allocation6 + $0x108] sm:$0xff]
    %v2248 = vld [vmem:[#allocation6 + $0x110] sm:$0xff]
    %v2249 = vld [vmem:[#allocation6 + $0x118] sm:$0xff]
    %v2250 = vld [vmem:[#allocation6 + $0x120] sm:$0xff]
    %v2251 = vld [vmem:[#allocation6 + $0x128] sm:$0xff]
    %v2252 = vld [vmem:[#allocation6 + $0x130] sm:$0xff]
    %v2253 = vld [vmem:[#allocation6 + $0x138] sm:$0xff]
    %v2254 = vld [vmem:[#allocation6 + $0x140] sm:$0xff]
    %v2255 = vld [vmem:[#allocation6 + $0x148] sm:$0xff]
    %v2256 = vld [vmem:[#allocation6 + $0x150] sm:$0xff]
    %v2257 = vld [vmem:[#allocation6 + $0x158] sm:$0xff]
    %v2258 = vld [vmem:[#allocation6 + $0x160] sm:$0xff]
    %v2259 = vld [vmem:[#allocation6 + $0x168] sm:$0xff]
    %v2260 = vld [vmem:[#allocation6 + $0x170] sm:$0xff]
    %v2261 = vld [vmem:[#allocation6 + $0x178] sm:$0xff]
    %2263 = vset.pattern.permute.xlu0 0
    %2264 = vperm.xlu0 %2263, %v2214
    %v2265 = vpop.permute.xlu0 %2264
    %2268 = vset.pattern.permute.xlu0 0
    %2269 = vperm.xlu0 %2268, %v2215
    %v2270 = vpop.permute.xlu0 %2269
    %2273 = vset.pattern.permute.xlu0 0
    %2274 = vperm.xlu0 %2273, %v2216
    %v2275 = vpop.permute.xlu0 %2274
    %2278 = vset.pattern.permute.xlu0 0
    %2279 = vperm.xlu0 %2278, %v2217
    %v2280 = vpop.permute.xlu0 %2279
    %2283 = vset.pattern.permute.xlu0 0
    %2284 = vperm.xlu0 %2283, %v2218
    %v2285 = vpop.permute.xlu0 %2284
    %2288 = vset.pattern.permute.xlu0 0
    %2289 = vperm.xlu0 %2288, %v2219
    %v2290 = vpop.permute.xlu0 %2289
    %2293 = vset.pattern.permute.xlu0 0
    %2294 = vperm.xlu0 %2293, %v2220
    %v2295 = vpop.permute.xlu0 %2294
    %2298 = vset.pattern.permute.xlu0 0
    %2299 = vperm.xlu0 %2298, %v2221
    %v2300 = vpop.permute.xlu0 %2299
    %2303 = vset.pattern.permute.xlu0 0
    %2304 = vperm.xlu0 %2303, %v2222
    %v2305 = vpop.permute.xlu0 %2304
    %2308 = vset.pattern.permute.xlu0 0
    %2309 = vperm.xlu0 %2308, %v2223
    %v2310 = vpop.permute.xlu0 %2309
    %2313 = vset.pattern.permute.xlu0 0
    %2314 = vperm.xlu0 %2313, %v2224
    %v2315 = vpop.permute.xlu0 %2314
    %2318 = vset.pattern.permute.xlu0 0
    %2319 = vperm.xlu0 %2318, %v2225
    %v2320 = vpop.permute.xlu0 %2319
    %2323 = vset.pattern.permute.xlu0 0
    %2324 = vperm.xlu0 %2323, %v2226
    %v2325 = vpop.permute.xlu0 %2324
    %2328 = vset.pattern.permute.xlu0 0
    %2329 = vperm.xlu0 %2328, %v2227
    %v2330 = vpop.permute.xlu0 %2329
    %2333 = vset.pattern.permute.xlu0 0
    %2334 = vperm.xlu0 %2333, %v2228
    %v2335 = vpop.permute.xlu0 %2334
    %2338 = vset.pattern.permute.xlu0 0
    %2339 = vperm.xlu0 %2338, %v2229
    %v2340 = vpop.permute.xlu0 %2339
    %2343 = vset.pattern.permute.xlu0 0
    %2344 = vperm.xlu0 %2343, %v2230
    %v2345 = vpop.permute.xlu0 %2344
    %2348 = vset.pattern.permute.xlu0 0
    %2349 = vperm.xlu0 %2348, %v2231
    %v2350 = vpop.permute.xlu0 %2349
    %2353 = vset.pattern.permute.xlu0 0
    %2354 = vperm.xlu0 %2353, %v2232
    %v2355 = vpop.permute.xlu0 %2354
    %2358 = vset.pattern.permute.xlu0 0
    %2359 = vperm.xlu0 %2358, %v2233
    %v2360 = vpop.permute.xlu0 %2359
    %2363 = vset.pattern.permute.xlu0 0
    %2364 = vperm.xlu0 %2363, %v2234
    %v2365 = vpop.permute.xlu0 %2364
    %2368 = vset.pattern.permute.xlu0 0
    %2369 = vperm.xlu0 %2368, %v2235
    %v2370 = vpop.permute.xlu0 %2369
    %2373 = vset.pattern.permute.xlu0 0
    %2374 = vperm.xlu0 %2373, %v2236
    %v2375 = vpop.permute.xlu0 %2374
    %2378 = vset.pattern.permute.xlu0 0
    %2379 = vperm.xlu0 %2378, %v2237
    %v2380 = vpop.permute.xlu0 %2379
    %2383 = vset.pattern.permute.xlu0 0
    %2384 = vperm.xlu0 %2383, %v2238
    %v2385 = vpop.permute.xlu0 %2384
    %2388 = vset.pattern.permute.xlu0 0
    %2389 = vperm.xlu0 %2388, %v2239
    %v2390 = vpop.permute.xlu0 %2389
    %2393 = vset.pattern.permute.xlu0 0
    %2394 = vperm.xlu0 %2393, %v2240
    %v2395 = vpop.permute.xlu0 %2394
    %2398 = vset.pattern.permute.xlu0 0
    %2399 = vperm.xlu0 %2398, %v2241
    %v2400 = vpop.permute.xlu0 %2399
    %2403 = vset.pattern.permute.xlu0 0
    %2404 = vperm.xlu0 %2403, %v2242
    %v2405 = vpop.permute.xlu0 %2404
    %2408 = vset.pattern.permute.xlu0 0
    %2409 = vperm.xlu0 %2408, %v2243
    %v2410 = vpop.permute.xlu0 %2409
    %2413 = vset.pattern.permute.xlu0 0
    %2414 = vperm.xlu0 %2413, %v2244
    %v2415 = vpop.permute.xlu0 %2414
    %2418 = vset.pattern.permute.xlu0 0
    %2419 = vperm.xlu0 %2418, %v2245
    %v2420 = vpop.permute.xlu0 %2419
    %2423 = vset.pattern.permute.xlu0 0
    %2424 = vperm.xlu0 %2423, %v2246
    %v2425 = vpop.permute.xlu0 %2424
    %2428 = vset.pattern.permute.xlu0 0
    %2429 = vperm.xlu0 %2428, %v2247
    %v2430 = vpop.permute.xlu0 %2429
    %2433 = vset.pattern.permute.xlu0 0
    %2434 = vperm.xlu0 %2433, %v2248
    %v2435 = vpop.permute.xlu0 %2434
    %2438 = vset.pattern.permute.xlu0 0
    %2439 = vperm.xlu0 %2438, %v2249
    %v2440 = vpop.permute.xlu0 %2439
    %2443 = vset.pattern.permute.xlu0 0
    %2444 = vperm.xlu0 %2443, %v2250
    %v2445 = vpop.permute.xlu0 %2444
    %2448 = vset.pattern.permute.xlu0 0
    %2449 = vperm.xlu0 %2448, %v2251
    %v2450 = vpop.permute.xlu0 %2449
    %2453 = vset.pattern.permute.xlu0 0
    %2454 = vperm.xlu0 %2453, %v2252
    %v2455 = vpop.permute.xlu0 %2454
    %2458 = vset.pattern.permute.xlu0 0
    %2459 = vperm.xlu0 %2458, %v2253
    %v2460 = vpop.permute.xlu0 %2459
    %2463 = vset.pattern.permute.xlu0 0
    %2464 = vperm.xlu0 %2463, %v2254
    %v2465 = vpop.permute.xlu0 %2464
    %2468 = vset.pattern.permute.xlu0 0
    %2469 = vperm.xlu0 %2468, %v2255
    %v2470 = vpop.permute.xlu0 %2469
    %2473 = vset.pattern.permute.xlu0 0
    %2474 = vperm.xlu0 %2473, %v2256
    %v2475 = vpop.permute.xlu0 %2474
    %2478 = vset.pattern.permute.xlu0 0
    %2479 = vperm.xlu0 %2478, %v2257
    %v2480 = vpop.permute.xlu0 %2479
    %2483 = vset.pattern.permute.xlu0 0
    %2484 = vperm.xlu0 %2483, %v2258
    %v2485 = vpop.permute.xlu0 %2484
    %2488 = vset.pattern.permute.xlu0 0
    %2489 = vperm.xlu0 %2488, %v2259
    %v2490 = vpop.permute.xlu0 %2489
    %2493 = vset.pattern.permute.xlu0 0
    %2494 = vperm.xlu0 %2493, %v2260
    %v2495 = vpop.permute.xlu0 %2494
    %2498 = vset.pattern.permute.xlu0 0
    %2499 = vperm.xlu0 %2498, %v2261
    %v2500 = vpop.permute.xlu0 %2499
    %2502 = vmatprep.subr.mxu0 0.0
    %2503 = vmatpush1.msra.mxu0 %v2101
    %2504 = vmatprep.subr.mxu0 0.0
    %2505 = vmatpush1.msra.mxu0 %v2100
    %2506 = vmatprep.subr.mxu0 0.0
    %2507 = vmatpush1.msra.mxu0 %v2099
    %2508 = vmatprep.subr.mxu0 0.0
    %2509 = vmatpush1.msra.mxu0 %v2098
    %2510 = vmatprep.subr.mxu0 0.0
    %2511 = vmatpush1.msra.mxu0 %v2097
    %2512 = vmatprep.subr.mxu0 0.0
    %2513 = vmatpush1.msra.mxu0 %v2096
    %2514 = vmatprep.subr.mxu0 0.0
    %2515 = vmatpush1.msra.mxu0 %v2095
    %2516 = vmatprep.subr.mxu0 0.0
    %2517 = vmatpush1.msra.mxu0 %v2094
    %2518 = vmatprep.subr.mxu0 0.0
    %2519 = vmatpush1.msra.mxu0 %v2093
    %2520 = vmatprep.subr.mxu0 0.0
    %2521 = vmatpush1.msra.mxu0 %v2092
    %2522 = vmatprep.subr.mxu0 0.0
    %2523 = vmatpush1.msra.mxu0 %v2091
    %2524 = vmatprep.subr.mxu0 0.0
    %2525 = vmatpush1.msra.mxu0 %v2090
    %2526 = vmatprep.subr.mxu0 0.0
    %2527 = vmatpush1.msra.mxu0 %v2089
    %2528 = vmatprep.subr.mxu0 0.0
    %2529 = vmatpush1.msra.mxu0 %v2088
    %2530 = vmatprep.subr.mxu0 0.0
    %2531 = vmatpush1.msra.mxu0 %v2087
    %2532 = vmatprep.subr.mxu0 0.0
    %2533 = vmatpush1.msra.mxu0 %v2086
    %2534 = vmatprep.subr.mxu0 0.0
    %2535 = vmatpush2.msra.mxu0 %v2117
    %2536 = vmatprep.subr.mxu0 0.0
    %2537 = vmatpush2.msra.mxu0 %v2116
    %2538 = vmatprep.subr.mxu0 0.0
    %2539 = vmatpush2.msra.mxu0 %v2115
    %2540 = vmatprep.subr.mxu0 0.0
    %2541 = vmatpush2.msra.mxu0 %v2114
    %2542 = vmatprep.subr.mxu0 0.0
    %2543 = vmatpush2.msra.mxu0 %v2113
    %2544 = vmatprep.subr.mxu0 0.0
    %2545 = vmatpush2.msra.mxu0 %v2112
    %2546 = vmatprep.subr.mxu0 0.0
    %2547 = vmatpush2.msra.mxu0 %v2111
    %2548 = vmatprep.subr.mxu0 0.0
    %2549 = vmatpush2.msra.mxu0 %v2110
    %2550 = vmatprep.subr.mxu0 0.0
    %2551 = vmatpush2.msra.mxu0 %v2109
    %2552 = vmatprep.subr.mxu0 0.0
    %2553 = vmatpush2.msra.mxu0 %v2108
    %2554 = vmatprep.subr.mxu0 0.0
    %2555 = vmatpush2.msra.mxu0 %v2107
    %2556 = vmatprep.subr.mxu0 0.0
    %2557 = vmatpush2.msra.mxu0 %v2106
    %2558 = vmatprep.subr.mxu0 0.0
    %2559 = vmatpush2.msra.mxu0 %v2105
    %2560 = vmatprep.subr.mxu0 0.0
    %2561 = vmatpush2.msra.mxu0 %v2104
    %2562 = vmatprep.subr.mxu0 0.0
    %2563 = vmatpush2.msra.mxu0 %v2103
    %2564 = vmatprep.subr.mxu0 0.0
    %2565 = vmatpush2.msra.mxu0 %v2102
    %2566 = vmatprep.mubr.f32.mxu0 %v2119
    %2567 = vmatmul.mubr.f32.gmra.mxu0 %v2118
    %v2568 = vpop.f32.mrf.mxu0
    %v2569 = vadd.f32 %v2265, %v2568
    %v2570 = vpop.f32.mrf.mxu0
    %2571 = vmatprep.mubr.f32.mxu0 %v2121
    %2572 = vmatmul.mubr.f32.gmra.mxu0 %v2120
    %v2573 = vpop.f32.mrf.mxu0
    %v2574 = vadd.f32 %v2270, %v2573
    %v2575 = vpop.f32.mrf.mxu0
    %2576 = vmatprep.mubr.f32.mxu0 %v2123
    %2577 = vmatmul.mubr.f32.gmra.mxu0 %v2122
    %v2578 = vpop.f32.mrf.mxu0
    %v2579 = vadd.f32 %v2275, %v2578
    %v2580 = vpop.f32.mrf.mxu0
    %2581 = vmatprep.mubr.f32.mxu0 %v2125
    %2582 = vmatmul.mubr.f32.gmra.mxu0 %v2124
    %v2583 = vpop.f32.mrf.mxu0
    %v2584 = vadd.f32 %v2280, %v2583
    %v2585 = vpop.f32.mrf.mxu0
    %2586 = vmatprep.mubr.f32.mxu0 %v2127
    %2587 = vmatmul.mubr.f32.gmra.mxu0 %v2126
    %v2588 = vpop.f32.mrf.mxu0
    %v2589 = vadd.f32 %v2285, %v2588
    %v2590 = vpop.f32.mrf.mxu0
    %2591 = vmatprep.mubr.f32.mxu0 %v2129
    %2592 = vmatmul.mubr.f32.gmra.mxu0 %v2128
    %v2593 = vpop.f32.mrf.mxu0
    %v2594 = vadd.f32 %v2290, %v2593
    %v2595 = vpop.f32.mrf.mxu0
    %2596 = vmatprep.mubr.f32.mxu0 %v2131
    %2597 = vmatmul.mubr.f32.gmra.mxu0 %v2130
    %v2598 = vpop.f32.mrf.mxu0
    %v2599 = vadd.f32 %v2295, %v2598
    %v2600 = vpop.f32.mrf.mxu0
    %2601 = vmatprep.mubr.f32.mxu0 %v2133
    %2602 = vmatmul.mubr.f32.gmra.mxu0 %v2132
    %v2603 = vpop.f32.mrf.mxu0
    %v2604 = vadd.f32 %v2300, %v2603
    %v2605 = vpop.f32.mrf.mxu0
    %2606 = vmatprep.mubr.f32.mxu0 %v2135
    %2607 = vmatmul.mubr.f32.gmra.mxu0 %v2134
    %v2608 = vpop.f32.mrf.mxu0
    %v2609 = vadd.f32 %v2305, %v2608
    %v2610 = vpop.f32.mrf.mxu0
    %2611 = vmatprep.mubr.f32.mxu0 %v2137
    %2612 = vmatmul.mubr.f32.gmra.mxu0 %v2136
    %v2613 = vpop.f32.mrf.mxu0
    %v2614 = vadd.f32 %v2310, %v2613
    %v2615 = vpop.f32.mrf.mxu0
    %2616 = vmatprep.mubr.f32.mxu0 %v2139
    %2617 = vmatmul.mubr.f32.gmra.mxu0 %v2138
    %v2618 = vpop.f32.mrf.mxu0
    %v2619 = vadd.f32 %v2315, %v2618
    %v2620 = vpop.f32.mrf.mxu0
    %2621 = vmatprep.mubr.f32.mxu0 %v2141
    %2622 = vmatmul.mubr.f32.gmra.mxu0 %v2140
    %v2623 = vpop.f32.mrf.mxu0
    %v2624 = vadd.f32 %v2320, %v2623
    %v2625 = vpop.f32.mrf.mxu0
    %2626 = vmatprep.mubr.f32.mxu0 %v2143
    %2627 = vmatmul.mubr.f32.gmra.mxu0 %v2142
    %v2628 = vpop.f32.mrf.mxu0
    %v2629 = vadd.f32 %v2325, %v2628
    %v2630 = vpop.f32.mrf.mxu0
    %2631 = vmatprep.mubr.f32.mxu0 %v2145
    %2632 = vmatmul.mubr.f32.gmra.mxu0 %v2144
    %v2633 = vpop.f32.mrf.mxu0
    %v2634 = vadd.f32 %v2330, %v2633
    %v2635 = vpop.f32.mrf.mxu0
    %2636 = vmatprep.mubr.f32.mxu0 %v2147
    %2637 = vmatmul.mubr.f32.gmra.mxu0 %v2146
    %v2638 = vpop.f32.mrf.mxu0
    %v2639 = vadd.f32 %v2335, %v2638
    %v2640 = vpop.f32.mrf.mxu0
    %2641 = vmatprep.mubr.f32.mxu0 %v2149
    %2642 = vmatmul.mubr.f32.gmra.mxu0 %v2148
    %v2643 = vpop.f32.mrf.mxu0
    %v2644 = vadd.f32 %v2340, %v2643
    %v2645 = vpop.f32.mrf.mxu0
    %2646 = vmatprep.mubr.f32.mxu0 %v2151
    %2647 = vmatmul.mubr.f32.gmra.mxu0 %v2150
    %v2648 = vpop.f32.mrf.mxu0
    %v2649 = vadd.f32 %v2345, %v2648
    %v2650 = vpop.f32.mrf.mxu0
    %2651 = vmatprep.mubr.f32.mxu0 %v2153
    %2652 = vmatmul.mubr.f32.gmra.mxu0 %v2152
    %v2653 = vpop.f32.mrf.mxu0
    %v2654 = vadd.f32 %v2350, %v2653
    %v2655 = vpop.f32.mrf.mxu0
    %2656 = vmatprep.mubr.f32.mxu0 %v2155
    %2657 = vmatmul.mubr.f32.gmra.mxu0 %v2154
    %v2658 = vpop.f32.mrf.mxu0
    %v2659 = vadd.f32 %v2355, %v2658
    %v2660 = vpop.f32.mrf.mxu0
    %2661 = vmatprep.mubr.f32.mxu0 %v2157
    %2662 = vmatmul.mubr.f32.gmra.mxu0 %v2156
    %v2663 = vpop.f32.mrf.mxu0
    %v2664 = vadd.f32 %v2360, %v2663
    %v2665 = vpop.f32.mrf.mxu0
    %2666 = vmatprep.mubr.f32.mxu0 %v2159
    %2667 = vmatmul.mubr.f32.gmra.mxu0 %v2158
    %v2668 = vpop.f32.mrf.mxu0
    %v2669 = vadd.f32 %v2365, %v2668
    %v2670 = vpop.f32.mrf.mxu0
    %2671 = vmatprep.mubr.f32.mxu0 %v2161
    %2672 = vmatmul.mubr.f32.gmra.mxu0 %v2160
    %v2673 = vpop.f32.mrf.mxu0
    %v2674 = vadd.f32 %v2370, %v2673
    %v2675 = vpop.f32.mrf.mxu0
    %2676 = vmatprep.mubr.f32.mxu0 %v2163
    %2677 = vmatmul.mubr.f32.gmra.mxu0 %v2162
    %v2678 = vpop.f32.mrf.mxu0
    %v2679 = vadd.f32 %v2375, %v2678
    %v2680 = vpop.f32.mrf.mxu0
    %2681 = vmatprep.mubr.f32.mxu0 %v2165
    %2682 = vmatmul.mubr.f32.gmra.mxu0 %v2164
    %v2683 = vpop.f32.mrf.mxu0
    %v2684 = vadd.f32 %v2380, %v2683
    %v2685 = vpop.f32.mrf.mxu0
    %2686 = vmatprep.mubr.f32.mxu0 %v2167
    %2687 = vmatmul.mubr.f32.gmra.mxu0 %v2166
    %v2688 = vpop.f32.mrf.mxu0
    %v2689 = vadd.f32 %v2385, %v2688
    %v2690 = vpop.f32.mrf.mxu0
    %2691 = vmatprep.mubr.f32.mxu0 %v2169
    %2692 = vmatmul.mubr.f32.gmra.mxu0 %v2168
    %v2693 = vpop.f32.mrf.mxu0
    %v2694 = vadd.f32 %v2390, %v2693
    %v2695 = vpop.f32.mrf.mxu0
    %2696 = vmatprep.mubr.f32.mxu0 %v2171
    %2697 = vmatmul.mubr.f32.gmra.mxu0 %v2170
    %v2698 = vpop.f32.mrf.mxu0
    %v2699 = vadd.f32 %v2395, %v2698
    %v2700 = vpop.f32.mrf.mxu0
    %2701 = vmatprep.mubr.f32.mxu0 %v2173
    %2702 = vmatmul.mubr.f32.gmra.mxu0 %v2172
    %v2703 = vpop.f32.mrf.mxu0
    %v2704 = vadd.f32 %v2400, %v2703
    %v2705 = vpop.f32.mrf.mxu0
    %2706 = vmatprep.mubr.f32.mxu0 %v2175
    %2707 = vmatmul.mubr.f32.gmra.mxu0 %v2174
    %v2708 = vpop.f32.mrf.mxu0
    %v2709 = vadd.f32 %v2405, %v2708
    %v2710 = vpop.f32.mrf.mxu0
    %2711 = vmatprep.mubr.f32.mxu0 %v2177
    %2712 = vmatmul.mubr.f32.gmra.mxu0 %v2176
    %v2713 = vpop.f32.mrf.mxu0
    %v2714 = vadd.f32 %v2410, %v2713
    %v2715 = vpop.f32.mrf.mxu0
    %2716 = vmatprep.mubr.f32.mxu0 %v2179
    %2717 = vmatmul.mubr.f32.gmra.mxu0 %v2178
    %v2718 = vpop.f32.mrf.mxu0
    %v2719 = vadd.f32 %v2415, %v2718
    %v2720 = vpop.f32.mrf.mxu0
    %2721 = vmatprep.mubr.f32.mxu0 %v2181
    %2722 = vmatmul.mubr.f32.gmra.mxu0 %v2180
    %v2723 = vpop.f32.mrf.mxu0
    %v2724 = vadd.f32 %v2420, %v2723
    %v2725 = vpop.f32.mrf.mxu0
    %2726 = vmatprep.mubr.f32.mxu0 %v2183
    %2727 = vmatmul.mubr.f32.gmra.mxu0 %v2182
    %v2728 = vpop.f32.mrf.mxu0
    %v2729 = vadd.f32 %v2425, %v2728
    %v2730 = vpop.f32.mrf.mxu0
    %2731 = vmatprep.mubr.f32.mxu0 %v2185
    %2732 = vmatmul.mubr.f32.gmra.mxu0 %v2184
    %v2733 = vpop.f32.mrf.mxu0
    %v2734 = vadd.f32 %v2430, %v2733
    %v2735 = vpop.f32.mrf.mxu0
    %2736 = vmatprep.mubr.f32.mxu0 %v2187
    %2737 = vmatmul.mubr.f32.gmra.mxu0 %v2186
    %v2738 = vpop.f32.mrf.mxu0
    %v2739 = vadd.f32 %v2435, %v2738
    %v2740 = vpop.f32.mrf.mxu0
    %2741 = vmatprep.mubr.f32.mxu0 %v2189
    %2742 = vmatmul.mubr.f32.gmra.mxu0 %v2188
    %v2743 = vpop.f32.mrf.mxu0
    %v2744 = vadd.f32 %v2440, %v2743
    %v2745 = vpop.f32.mrf.mxu0
    %2746 = vmatprep.mubr.f32.mxu0 %v2191
    %2747 = vmatmul.mubr.f32.gmra.mxu0 %v2190
    %v2748 = vpop.f32.mrf.mxu0
    %v2749 = vadd.f32 %v2445, %v2748
    %v2750 = vpop.f32.mrf.mxu0
    %2751 = vmatprep.mubr.f32.mxu0 %v2193
    %2752 = vmatmul.mubr.f32.gmra.mxu0 %v2192
    %v2753 = vpop.f32.mrf.mxu0
    %v2754 = vadd.f32 %v2450, %v2753
    %v2755 = vpop.f32.mrf.mxu0
    %2756 = vmatprep.mubr.f32.mxu0 %v2195
    %2757 = vmatmul.mubr.f32.gmra.mxu0 %v2194
    %v2758 = vpop.f32.mrf.mxu0
    %v2759 = vadd.f32 %v2455, %v2758
    %v2760 = vpop.f32.mrf.mxu0
    %2761 = vmatprep.mubr.f32.mxu0 %v2197
    %2762 = vmatmul.mubr.f32.gmra.mxu0 %v2196
    %v2763 = vpop.f32.mrf.mxu0
    %v2764 = vadd.f32 %v2460, %v2763
    %v2765 = vpop.f32.mrf.mxu0
    %2766 = vmatprep.mubr.f32.mxu0 %v2199
    %2767 = vmatmul.mubr.f32.gmra.mxu0 %v2198
    %v2768 = vpop.f32.mrf.mxu0
    %v2769 = vadd.f32 %v2465, %v2768
    %v2770 = vpop.f32.mrf.mxu0
    %2771 = vmatprep.mubr.f32.mxu0 %v2201
    %2772 = vmatmul.mubr.f32.gmra.mxu0 %v2200
    %v2773 = vpop.f32.mrf.mxu0
    %v2774 = vadd.f32 %v2470, %v2773
    %v2775 = vpop.f32.mrf.mxu0
    %2776 = vmatprep.mubr.f32.mxu0 %v2203
    %2777 = vmatmul.mubr.f32.gmra.mxu0 %v2202
    %v2778 = vpop.f32.mrf.mxu0
    %v2779 = vadd.f32 %v2475, %v2778
    %v2780 = vpop.f32.mrf.mxu0
    %2781 = vmatprep.mubr.f32.mxu0 %v2205
    %2782 = vmatmul.mubr.f32.gmra.mxu0 %v2204
    %v2783 = vpop.f32.mrf.mxu0
    %v2784 = vadd.f32 %v2480, %v2783
    %v2785 = vpop.f32.mrf.mxu0
    %2786 = vmatprep.mubr.f32.mxu0 %v2207
    %2787 = vmatmul.mubr.f32.gmra.mxu0 %v2206
    %v2788 = vpop.f32.mrf.mxu0
    %v2789 = vadd.f32 %v2485, %v2788
    %v2790 = vpop.f32.mrf.mxu0
    %2791 = vmatprep.mubr.f32.mxu0 %v2209
    %2792 = vmatmul.mubr.f32.gmra.mxu0 %v2208
    %v2793 = vpop.f32.mrf.mxu0
    %v2794 = vadd.f32 %v2490, %v2793
    %v2795 = vpop.f32.mrf.mxu0
    %2796 = vmatprep.mubr.f32.mxu0 %v2211
    %2797 = vmatmul.mubr.f32.gmra.mxu0 %v2210
    %v2798 = vpop.f32.mrf.mxu0
    %v2799 = vadd.f32 %v2495, %v2798
    %v2800 = vpop.f32.mrf.mxu0
    %2801 = vmatprep.mubr.f32.mxu0 %v2213
    %2802 = vmatmul.mubr.f32.gmra.mxu0 %v2212
    %v2803 = vpop.f32.mrf.mxu0
    %v2804 = vadd.f32 %v2500, %v2803
    %v2805 = vpop.f32.mrf.mxu0
    %2806 = vdwg.mxu0
    %v2807 = vmax.f32 %v2569, 0.0
    %v2808 = vmax.f32 %v2574, 0.0
    %v2809 = vmax.f32 %v2579, 0.0
    %v2810 = vmax.f32 %v2584, 0.0
    %v2811 = vmax.f32 %v2589, 0.0
    %v2812 = vmax.f32 %v2594, 0.0
    %v2813 = vmax.f32 %v2599, 0.0
    %v2814 = vmax.f32 %v2604, 0.0
    %v2815 = vmax.f32 %v2609, 0.0
    %v2816 = vmax.f32 %v2614, 0.0
    %v2817 = vmax.f32 %v2619, 0.0
    %v2818 = vmax.f32 %v2624, 0.0
    %v2819 = vmax.f32 %v2629, 0.0
    %v2820 = vmax.f32 %v2634, 0.0
    %v2821 = vmax.f32 %v2639, 0.0
    %v2822 = vmax.f32 %v2644, 0.0
    %v2823 = vmax.f32 %v2649, 0.0
    %v2824 = vmax.f32 %v2654, 0.0
    %v2825 = vmax.f32 %v2659, 0.0
    %v2826 = vmax.f32 %v2664, 0.0
    %v2827 = vmax.f32 %v2669, 0.0
    %v2828 = vmax.f32 %v2674, 0.0
    %v2829 = vmax.f32 %v2679, 0.0
    %v2830 = vmax.f32 %v2684, 0.0
    %v2831 = vmax.f32 %v2689, 0.0
    %v2832 = vmax.f32 %v2694, 0.0
    %v2833 = vmax.f32 %v2699, 0.0
    %v2834 = vmax.f32 %v2704, 0.0
    %v2835 = vmax.f32 %v2709, 0.0
    %v2836 = vmax.f32 %v2714, 0.0
    %v2837 = vmax.f32 %v2719, 0.0
    %v2838 = vmax.f32 %v2724, 0.0
    %v2839 = vmax.f32 %v2729, 0.0
    %v2840 = vmax.f32 %v2734, 0.0
    %v2841 = vmax.f32 %v2739, 0.0
    %v2842 = vmax.f32 %v2744, 0.0
    %v2843 = vmax.f32 %v2749, 0.0
    %v2844 = vmax.f32 %v2754, 0.0
    %v2845 = vmax.f32 %v2759, 0.0
    %v2846 = vmax.f32 %v2764, 0.0
    %v2847 = vmax.f32 %v2769, 0.0
    %v2848 = vmax.f32 %v2774, 0.0
    %v2849 = vmax.f32 %v2779, 0.0
    %v2850 = vmax.f32 %v2784, 0.0
    %v2851 = vmax.f32 %v2789, 0.0
    %v2852 = vmax.f32 %v2794, 0.0
    %v2853 = vmax.f32 %v2799, 0.0
    %v2854 = vmax.f32 %v2804, 0.0
    %v2855 = vld [vmem:[#allocation7] sm:$0xff]
    %v2856 = vld [vmem:[#allocation7 + $0x8] sm:$0xff]
    %v2857 = vld [vmem:[#allocation7 + $0x10] sm:$0xff]
    %v2858 = vld [vmem:[#allocation7 + $0x18] sm:$0xff]
    %v2859 = vld [vmem:[#allocation7 + $0x20] sm:$0xff]
    %v2860 = vld [vmem:[#allocation7 + $0x28] sm:$0xff]
    %v2861 = vld [vmem:[#allocation7 + $0x30] sm:$0xff]
    %v2862 = vld [vmem:[#allocation7 + $0x38] sm:$0xff]
    %v2863 = vld [vmem:[#allocation7 + $0x40] sm:$0xff]
    %v2864 = vld [vmem:[#allocation7 + $0x48] sm:$0xff]
    %v2865 = vld [vmem:[#allocation7 + $0x50] sm:$0xff]
    %v2866 = vld [vmem:[#allocation7 + $0x58] sm:$0xff]
    %v2867 = vld [vmem:[#allocation7 + $0x60] sm:$0xff]
    %v2868 = vld [vmem:[#allocation7 + $0x68] sm:$0xff]
    %v2869 = vld [vmem:[#allocation7 + $0x70] sm:$0xff]
    %v2870 = vld [vmem:[#allocation7 + $0x78] sm:$0xff]
    %v2871 = vld [vmem:[#allocation7 + $0x80] sm:$0xff]
    %v2872 = vld [vmem:[#allocation7 + $0x88] sm:$0xff]
    %v2873 = vld [vmem:[#allocation7 + $0x90] sm:$0xff]
    %v2874 = vld [vmem:[#allocation7 + $0x98] sm:$0xff]
    %v2875 = vld [vmem:[#allocation7 + $0xa0] sm:$0xff]
    %v2876 = vld [vmem:[#allocation7 + $0xa8] sm:$0xff]
    %v2877 = vld [vmem:[#allocation7 + $0xb0] sm:$0xff]
    %v2878 = vld [vmem:[#allocation7 + $0xb8] sm:$0xff]
    %v2879 = vld [vmem:[#allocation7 + $0xc0] sm:$0xff]
    %v2880 = vld [vmem:[#allocation7 + $0xc8] sm:$0xff]
    %v2881 = vld [vmem:[#allocation7 + $0xd0] sm:$0xff]
    %v2882 = vld [vmem:[#allocation7 + $0xd8] sm:$0xff]
    %v2883 = vld [vmem:[#allocation7 + $0xe0] sm:$0xff]
    %v2884 = vld [vmem:[#allocation7 + $0xe8] sm:$0xff]
    %v2885 = vld [vmem:[#allocation7 + $0xf0] sm:$0xff]
    %v2886 = vld [vmem:[#allocation7 + $0xf8] sm:$0xff]
    %v2887 = vld [vmem:[#allocation7 + $0x100] sm:$0xff]
    %v2888 = vld [vmem:[#allocation7 + $0x108] sm:$0xff]
    %v2889 = vld [vmem:[#allocation7 + $0x110] sm:$0xff]
    %v2890 = vld [vmem:[#allocation7 + $0x118] sm:$0xff]
    %v2891 = vld [vmem:[#allocation7 + $0x120] sm:$0xff]
    %v2892 = vld [vmem:[#allocation7 + $0x128] sm:$0xff]
    %v2893 = vld [vmem:[#allocation7 + $0x130] sm:$0xff]
    %v2894 = vld [vmem:[#allocation7 + $0x138] sm:$0xff]
    %v2895 = vld [vmem:[#allocation7 + $0x140] sm:$0xff]
    %v2896 = vld [vmem:[#allocation7 + $0x148] sm:$0xff]
    %v2897 = vld [vmem:[#allocation7 + $0x150] sm:$0xff]
    %v2898 = vld [vmem:[#allocation7 + $0x158] sm:$0xff]
    %v2899 = vld [vmem:[#allocation7 + $0x160] sm:$0xff]
    %v2900 = vld [vmem:[#allocation7 + $0x168] sm:$0xff]
    %v2901 = vld [vmem:[#allocation7 + $0x170] sm:$0xff]
    %v2902 = vld [vmem:[#allocation7 + $0x178] sm:$0xff]
    %v2903 = vld [vmem:[#allocation9] sm:$0xff]
    %v2904 = vld [vmem:[#allocation9 + $0x8] sm:$0xff]
    %v2905 = vld [vmem:[#allocation9 + $0x10] sm:$0xff]
    %v2906 = vld [vmem:[#allocation9 + $0x18] sm:$0xff]
    %v2907 = vld [vmem:[#allocation9 + $0x20] sm:$0xff]
    %v2908 = vld [vmem:[#allocation9 + $0x28] sm:$0xff]
    %v2909 = vld [vmem:[#allocation9 + $0x30] sm:$0xff]
    %v2910 = vld [vmem:[#allocation9 + $0x38] sm:$0xff]
    %v2911 = vld [vmem:[#allocation9 + $0x40] sm:$0xff]
    %v2912 = vld [vmem:[#allocation9 + $0x48] sm:$0xff]
    %v2913 = vld [vmem:[#allocation9 + $0x50] sm:$0xff]
    %v2914 = vld [vmem:[#allocation9 + $0x58] sm:$0xff]
    %v2915 = vld [vmem:[#allocation9 + $0x60] sm:$0xff]
    %v2916 = vld [vmem:[#allocation9 + $0x68] sm:$0xff]
    %v2917 = vld [vmem:[#allocation9 + $0x70] sm:$0xff]
    %v2918 = vld [vmem:[#allocation9 + $0x78] sm:$0xff]
    %2920 = vset.pattern.permute.xlu0 0
    %2921 = vperm.xlu0 %2920, %v2903
    %v2922 = vpop.permute.xlu0 %2921
    %2925 = vset.pattern.permute.xlu0 0
    %2926 = vperm.xlu0 %2925, %v2904
    %v2927 = vpop.permute.xlu0 %2926
    %2930 = vset.pattern.permute.xlu0 0
    %2931 = vperm.xlu0 %2930, %v2905
    %v2932 = vpop.permute.xlu0 %2931
    %2935 = vset.pattern.permute.xlu0 0
    %2936 = vperm.xlu0 %2935, %v2906
    %v2937 = vpop.permute.xlu0 %2936
    %2940 = vset.pattern.permute.xlu0 0
    %2941 = vperm.xlu0 %2940, %v2907
    %v2942 = vpop.permute.xlu0 %2941
    %2945 = vset.pattern.permute.xlu0 0
    %2946 = vperm.xlu0 %2945, %v2908
    %v2947 = vpop.permute.xlu0 %2946
    %2950 = vset.pattern.permute.xlu0 0
    %2951 = vperm.xlu0 %2950, %v2909
    %v2952 = vpop.permute.xlu0 %2951
    %2955 = vset.pattern.permute.xlu0 0
    %2956 = vperm.xlu0 %2955, %v2910
    %v2957 = vpop.permute.xlu0 %2956
    %2960 = vset.pattern.permute.xlu0 0
    %2961 = vperm.xlu0 %2960, %v2911
    %v2962 = vpop.permute.xlu0 %2961
    %2965 = vset.pattern.permute.xlu0 0
    %2966 = vperm.xlu0 %2965, %v2912
    %v2967 = vpop.permute.xlu0 %2966
    %2970 = vset.pattern.permute.xlu0 0
    %2971 = vperm.xlu0 %2970, %v2913
    %v2972 = vpop.permute.xlu0 %2971
    %2975 = vset.pattern.permute.xlu0 0
    %2976 = vperm.xlu0 %2975, %v2914
    %v2977 = vpop.permute.xlu0 %2976
    %2980 = vset.pattern.permute.xlu0 0
    %2981 = vperm.xlu0 %2980, %v2915
    %v2982 = vpop.permute.xlu0 %2981
    %2985 = vset.pattern.permute.xlu0 0
    %2986 = vperm.xlu0 %2985, %v2916
    %v2987 = vpop.permute.xlu0 %2986
    %2990 = vset.pattern.permute.xlu0 0
    %2991 = vperm.xlu0 %2990, %v2917
    %v2992 = vpop.permute.xlu0 %2991
    %2995 = vset.pattern.permute.xlu0 0
    %2996 = vperm.xlu0 %2995, %v2918
    %v2997 = vpop.permute.xlu0 %2996
    %2999 = vmatprep.subr.mxu0 0.0
    %3000 = vmatpush1.msra.mxu0 %v2822
    %3001 = vmatprep.subr.mxu0 0.0
    %3002 = vmatpush1.msra.mxu0 %v2821
    %3003 = vmatprep.subr.mxu0 0.0
    %3004 = vmatpush1.msra.mxu0 %v2820
    %3005 = vmatprep.subr.mxu0 0.0
    %3006 = vmatpush1.msra.mxu0 %v2819
    %3007 = vmatprep.subr.mxu0 0.0
    %3008 = vmatpush1.msra.mxu0 %v2818
    %3009 = vmatprep.subr.mxu0 0.0
    %3010 = vmatpush1.msra.mxu0 %v2817
    %3011 = vmatprep.subr.mxu0 0.0
    %3012 = vmatpush1.msra.mxu0 %v2816
    %3013 = vmatprep.subr.mxu0 0.0
    %3014 = vmatpush1.msra.mxu0 %v2815
    %3015 = vmatprep.subr.mxu0 0.0
    %3016 = vmatpush1.msra.mxu0 %v2814
    %3017 = vmatprep.subr.mxu0 0.0
    %3018 = vmatpush1.msra.mxu0 %v2813
    %3019 = vmatprep.subr.mxu0 0.0
    %3020 = vmatpush1.msra.mxu0 %v2812
    %3021 = vmatprep.subr.mxu0 0.0
    %3022 = vmatpush1.msra.mxu0 %v2811
    %3023 = vmatprep.subr.mxu0 0.0
    %3024 = vmatpush1.msra.mxu0 %v2810
    %3025 = vmatprep.subr.mxu0 0.0
    %3026 = vmatpush1.msra.mxu0 %v2809
    %3027 = vmatprep.subr.mxu0 0.0
    %3028 = vmatpush1.msra.mxu0 %v2808
    %3029 = vmatprep.subr.mxu0 0.0
    %3030 = vmatpush1.msra.mxu0 %v2807
    %3031 = vmatprep.subr.mxu0 0.0
    %3032 = vmatpush2.msra.mxu0 %v2838
    %3033 = vmatprep.subr.mxu0 0.0
    %3034 = vmatpush2.msra.mxu0 %v2837
    %3035 = vmatprep.subr.mxu0 0.0
    %3036 = vmatpush2.msra.mxu0 %v2836
    %3037 = vmatprep.subr.mxu0 0.0
    %3038 = vmatpush2.msra.mxu0 %v2835
    %3039 = vmatprep.subr.mxu0 0.0
    %3040 = vmatpush2.msra.mxu0 %v2834
    %3041 = vmatprep.subr.mxu0 0.0
    %3042 = vmatpush2.msra.mxu0 %v2833
    %3043 = vmatprep.subr.mxu0 0.0
    %3044 = vmatpush2.msra.mxu0 %v2832
    %3045 = vmatprep.subr.mxu0 0.0
    %3046 = vmatpush2.msra.mxu0 %v2831
    %3047 = vmatprep.subr.mxu0 0.0
    %3048 = vmatpush2.msra.mxu0 %v2830
    %3049 = vmatprep.subr.mxu0 0.0
    %3050 = vmatpush2.msra.mxu0 %v2829
    %3051 = vmatprep.subr.mxu0 0.0
    %3052 = vmatpush2.msra.mxu0 %v2828
    %3053 = vmatprep.subr.mxu0 0.0
    %3054 = vmatpush2.msra.mxu0 %v2827
    %3055 = vmatprep.subr.mxu0 0.0
    %3056 = vmatpush2.msra.mxu0 %v2826
    %3057 = vmatprep.subr.mxu0 0.0
    %3058 = vmatpush2.msra.mxu0 %v2825
    %3059 = vmatprep.subr.mxu0 0.0
    %3060 = vmatpush2.msra.mxu0 %v2824
    %3061 = vmatprep.subr.mxu0 0.0
    %3062 = vmatpush2.msra.mxu0 %v2823
    %3063 = vmatprep.mubr.f32.mxu0 %v2856
    %3064 = vmatmul.mubr.f32.gmra.mxu0 %v2855
    %v3065 = vpop.f32.mrf.mxu0
    %v3066 = vadd.f32 %v2922, %v3065
    %v3067 = vpop.f32.mrf.mxu0
    %3068 = vmatprep.mubr.f32.mxu0 %v2859
    %3069 = vmatmul.mubr.f32.gmra.mxu0 %v2858
    %v3070 = vpop.f32.mrf.mxu0
    %v3071 = vadd.f32 %v2927, %v3070
    %v3072 = vpop.f32.mrf.mxu0
    %3073 = vmatprep.mubr.f32.mxu0 %v2862
    %3074 = vmatmul.mubr.f32.gmra.mxu0 %v2861
    %v3075 = vpop.f32.mrf.mxu0
    %v3076 = vadd.f32 %v2932, %v3075
    %v3077 = vpop.f32.mrf.mxu0
    %3078 = vmatprep.mubr.f32.mxu0 %v2865
    %3079 = vmatmul.mubr.f32.gmra.mxu0 %v2864
    %v3080 = vpop.f32.mrf.mxu0
    %v3081 = vadd.f32 %v2937, %v3080
    %v3082 = vpop.f32.mrf.mxu0
    %3083 = vmatprep.mubr.f32.mxu0 %v2868
    %3084 = vmatmul.mubr.f32.gmra.mxu0 %v2867
    %v3085 = vpop.f32.mrf.mxu0
    %v3086 = vadd.f32 %v2942, %v3085
    %v3087 = vpop.f32.mrf.mxu0
    %3088 = vmatprep.mubr.f32.mxu0 %v2871
    %3089 = vmatmul.mubr.f32.gmra.mxu0 %v2870
    %v3090 = vpop.f32.mrf.mxu0
    %v3091 = vadd.f32 %v2947, %v3090
    %v3092 = vpop.f32.mrf.mxu0
    %3093 = vmatprep.mubr.f32.mxu0 %v2874
    %3094 = vmatmul.mubr.f32.gmra.mxu0 %v2873
    %v3095 = vpop.f32.mrf.mxu0
    %v3096 = vadd.f32 %v2952, %v3095
    %v3097 = vpop.f32.mrf.mxu0
    %3098 = vmatprep.mubr.f32.mxu0 %v2877
    %3099 = vmatmul.mubr.f32.gmra.mxu0 %v2876
    %v3100 = vpop.f32.mrf.mxu0
    %v3101 = vadd.f32 %v2957, %v3100
    %v3102 = vpop.f32.mrf.mxu0
    %3103 = vmatprep.mubr.f32.mxu0 %v2880
    %3104 = vmatmul.mubr.f32.gmra.mxu0 %v2879
    %v3105 = vpop.f32.mrf.mxu0
    %v3106 = vadd.f32 %v2962, %v3105
    %v3107 = vpop.f32.mrf.mxu0
    %3108 = vmatprep.mubr.f32.mxu0 %v2883
    %3109 = vmatmul.mubr.f32.gmra.mxu0 %v2882
    %v3110 = vpop.f32.mrf.mxu0
    %v3111 = vadd.f32 %v2967, %v3110
    %v3112 = vpop.f32.mrf.mxu0
    %3113 = vmatprep.mubr.f32.mxu0 %v2886
    %3114 = vmatmul.mubr.f32.gmra.mxu0 %v2885
    %v3115 = vpop.f32.mrf.mxu0
    %v3116 = vadd.f32 %v2972, %v3115
    %v3117 = vpop.f32.mrf.mxu0
    %3118 = vmatprep.mubr.f32.mxu0 %v2889
    %3119 = vmatmul.mubr.f32.gmra.mxu0 %v2888
    %v3120 = vpop.f32.mrf.mxu0
    %v3121 = vadd.f32 %v2977, %v3120
    %v3122 = vpop.f32.mrf.mxu0
    %3123 = vmatprep.mubr.f32.mxu0 %v2892
    %3124 = vmatmul.mubr.f32.gmra.mxu0 %v2891
    %v3125 = vpop.f32.mrf.mxu0
    %v3126 = vadd.f32 %v2982, %v3125
    %v3127 = vpop.f32.mrf.mxu0
    %3128 = vmatprep.mubr.f32.mxu0 %v2895
    %3129 = vmatmul.mubr.f32.gmra.mxu0 %v2894
    %v3130 = vpop.f32.mrf.mxu0
    %v3131 = vadd.f32 %v2987, %v3130
    %v3132 = vpop.f32.mrf.mxu0
    %3133 = vmatprep.mubr.f32.mxu0 %v2898
    %3134 = vmatmul.mubr.f32.gmra.mxu0 %v2897
    %v3135 = vpop.f32.mrf.mxu0
    %v3136 = vadd.f32 %v2992, %v3135
    %v3137 = vpop.f32.mrf.mxu0
    %3138 = vmatprep.mubr.f32.mxu0 %v2901
    %3139 = vmatmul.mubr.f32.gmra.mxu0 %v2900
    %v3140 = vpop.f32.mrf.mxu0
    %v3141 = vadd.f32 %v2997, %v3140
    %v3142 = vpop.f32.mrf.mxu0
    %3143 = vdwg.mxu0
    %3144 = vmatprep.subr.mxu0 0.0
    %3145 = vmatpush1.msra.mxu0 %v2854
    %3146 = vmatprep.subr.mxu0 0.0
    %3147 = vmatpush1.msra.mxu0 %v2853
    %3148 = vmatprep.subr.mxu0 0.0
    %3149 = vmatpush1.msra.mxu0 %v2852
    %3150 = vmatprep.subr.mxu0 0.0
    %3151 = vmatpush1.msra.mxu0 %v2851
    %3152 = vmatprep.subr.mxu0 0.0
    %3153 = vmatpush1.msra.mxu0 %v2850
    %3154 = vmatprep.subr.mxu0 0.0
    %3155 = vmatpush1.msra.mxu0 %v2849
    %3156 = vmatprep.subr.mxu0 0.0
    %3157 = vmatpush1.msra.mxu0 %v2848
    %3158 = vmatprep.subr.mxu0 0.0
    %3159 = vmatpush1.msra.mxu0 %v2847
    %3160 = vmatprep.subr.mxu0 0.0
    %3161 = vmatpush1.msra.mxu0 %v2846
    %3162 = vmatprep.subr.mxu0 0.0
    %3163 = vmatpush1.msra.mxu0 %v2845
    %3164 = vmatprep.subr.mxu0 0.0
    %3165 = vmatpush1.msra.mxu0 %v2844
    %3166 = vmatprep.subr.mxu0 0.0
    %3167 = vmatpush1.msra.mxu0 %v2843
    %3168 = vmatprep.subr.mxu0 0.0
    %3169 = vmatpush1.msra.mxu0 %v2842
    %3170 = vmatprep.subr.mxu0 0.0
    %3171 = vmatpush1.msra.mxu0 %v2841
    %3172 = vmatprep.subr.mxu0 0.0
    %3173 = vmatpush1.msra.mxu0 %v2840
    %3174 = vmatprep.subr.mxu0 0.0
    %3175 = vmatpush1.msra.mxu0 %v2839
    %3176 = vmatprep.subr.mxu0 0.0
    %3177 = vmatpush2.msra.mxu0 0.0
    %3178 = vmatprep.subr.mxu0 0.0
    %3179 = vmatpush2.msra.mxu0 0.0
    %3180 = vmatprep.subr.mxu0 0.0
    %3181 = vmatpush2.msra.mxu0 0.0
    %3182 = vmatprep.subr.mxu0 0.0
    %3183 = vmatpush2.msra.mxu0 0.0
    %3184 = vmatprep.subr.mxu0 0.0
    %3185 = vmatpush2.msra.mxu0 0.0
    %3186 = vmatprep.subr.mxu0 0.0
    %3187 = vmatpush2.msra.mxu0 0.0
    %3188 = vmatprep.subr.mxu0 0.0
    %3189 = vmatpush2.msra.mxu0 0.0
    %3190 = vmatprep.subr.mxu0 0.0
    %3191 = vmatpush2.msra.mxu0 0.0
    %3192 = vmatprep.subr.mxu0 0.0
    %3193 = vmatpush2.msra.mxu0 0.0
    %3194 = vmatprep.subr.mxu0 0.0
    %3195 = vmatpush2.msra.mxu0 0.0
    %3196 = vmatprep.subr.mxu0 0.0
    %3197 = vmatpush2.msra.mxu0 0.0
    %3198 = vmatprep.subr.mxu0 0.0
    %3199 = vmatpush2.msra.mxu0 0.0
    %3200 = vmatprep.subr.mxu0 0.0
    %3201 = vmatpush2.msra.mxu0 0.0
    %3202 = vmatprep.subr.mxu0 0.0
    %3203 = vmatpush2.msra.mxu0 0.0
    %3204 = vmatprep.subr.mxu0 0.0
    %3205 = vmatpush2.msra.mxu0 0.0
    %3206 = vmatprep.subr.mxu0 0.0
    %3207 = vmatpush2.msra.mxu0 0.0
    %3208 = vmatprep.mubr.f32.mxu0 0.0
    %3209 = vmatmul.mubr.f32.gmra.mxu0 %v2857
    %v3210 = vpop.f32.mrf.mxu0
    %v3211 = vadd.f32 %v3066, %v3210
    %v3212 = vpop.f32.mrf.mxu0
    %3213 = vmatprep.mubr.f32.mxu0 0.0
    %3214 = vmatmul.mubr.f32.gmra.mxu0 %v2860
    %v3215 = vpop.f32.mrf.mxu0
    %v3216 = vadd.f32 %v3071, %v3215
    %v3217 = vpop.f32.mrf.mxu0
    %3218 = vmatprep.mubr.f32.mxu0 0.0
    %3219 = vmatmul.mubr.f32.gmra.mxu0 %v2863
    %v3220 = vpop.f32.mrf.mxu0
    %v3221 = vadd.f32 %v3076, %v3220
    %v3222 = vpop.f32.mrf.mxu0
    %3223 = vmatprep.mubr.f32.mxu0 0.0
    %3224 = vmatmul.mubr.f32.gmra.mxu0 %v2866
    %v3225 = vpop.f32.mrf.mxu0
    %v3226 = vadd.f32 %v3081, %v3225
    %v3227 = vpop.f32.mrf.mxu0
    %3228 = vmatprep.mubr.f32.mxu0 0.0
    %3229 = vmatmul.mubr.f32.gmra.mxu0 %v2869
    %v3230 = vpop.f32.mrf.mxu0
    %v3231 = vadd.f32 %v3086, %v3230
    %v3232 = vpop.f32.mrf.mxu0
    %3233 = vmatprep.mubr.f32.mxu0 0.0
    %3234 = vmatmul.mubr.f32.gmra.mxu0 %v2872
    %v3235 = vpop.f32.mrf.mxu0
    %v3236 = vadd.f32 %v3091, %v3235
    %v3237 = vpop.f32.mrf.mxu0
    %3238 = vmatprep.mubr.f32.mxu0 0.0
    %3239 = vmatmul.mubr.f32.gmra.mxu0 %v2875
    %v3240 = vpop.f32.mrf.mxu0
    %v3241 = vadd.f32 %v3096, %v3240
    %v3242 = vpop.f32.mrf.mxu0
    %3243 = vmatprep.mubr.f32.mxu0 0.0
    %3244 = vmatmul.mubr.f32.gmra.mxu0 %v2878
    %v3245 = vpop.f32.mrf.mxu0
    %v3246 = vadd.f32 %v3101, %v3245
    %v3247 = vpop.f32.mrf.mxu0
    %3248 = vmatprep.mubr.f32.mxu0 0.0
    %3249 = vmatmul.mubr.f32.gmra.mxu0 %v2881
    %v3250 = vpop.f32.mrf.mxu0
    %v3251 = vadd.f32 %v3106, %v3250
    %v3252 = vpop.f32.mrf.mxu0
    %3253 = vmatprep.mubr.f32.mxu0 0.0
    %3254 = vmatmul.mubr.f32.gmra.mxu0 %v2884
    %v3255 = vpop.f32.mrf.mxu0
    %v3256 = vadd.f32 %v3111, %v3255
    %v3257 = vpop.f32.mrf.mxu0
    %3258 = vmatprep.mubr.f32.mxu0 0.0
    %3259 = vmatmul.mubr.f32.gmra.mxu0 %v2887
    %v3260 = vpop.f32.mrf.mxu0
    %v3261 = vadd.f32 %v3116, %v3260
    %v3262 = vpop.f32.mrf.mxu0
    %3263 = vmatprep.mubr.f32.mxu0 0.0
    %3264 = vmatmul.mubr.f32.gmra.mxu0 %v2890
    %v3265 = vpop.f32.mrf.mxu0
    %v3266 = vadd.f32 %v3121, %v3265
    %v3267 = vpop.f32.mrf.mxu0
    %3268 = vmatprep.mubr.f32.mxu0 0.0
    %3269 = vmatmul.mubr.f32.gmra.mxu0 %v2893
    %v3270 = vpop.f32.mrf.mxu0
    %v3271 = vadd.f32 %v3126, %v3270
    %v3272 = vpop.f32.mrf.mxu0
    %3273 = vmatprep.mubr.f32.mxu0 0.0
    %3274 = vmatmul.mubr.f32.gmra.mxu0 %v2896
    %v3275 = vpop.f32.mrf.mxu0
    %v3276 = vadd.f32 %v3131, %v3275
    %v3277 = vpop.f32.mrf.mxu0
    %3278 = vmatprep.mubr.f32.mxu0 0.0
    %3279 = vmatmul.mubr.f32.gmra.mxu0 %v2899
    %v3280 = vpop.f32.mrf.mxu0
    %v3281 = vadd.f32 %v3136, %v3280
    %v3282 = vpop.f32.mrf.mxu0
    %3283 = vmatprep.mubr.f32.mxu0 0.0
    %3284 = vmatmul.mubr.f32.gmra.mxu0 %v2902
    %v3285 = vpop.f32.mrf.mxu0
    %v3286 = vadd.f32 %v3141, %v3285
    %v3287 = vpop.f32.mrf.mxu0
    %3288 = vdwg.mxu0
    %v3289 = vmax.f32 %v3211, 0.0
    %v3290 = vmax.f32 %v3216, 0.0
    %v3291 = vmax.f32 %v3221, 0.0
    %v3292 = vmax.f32 %v3226, 0.0
    %v3293 = vmax.f32 %v3231, 0.0
    %v3294 = vmax.f32 %v3236, 0.0
    %v3295 = vmax.f32 %v3241, 0.0
    %v3296 = vmax.f32 %v3246, 0.0
    %v3297 = vmax.f32 %v3251, 0.0
    %v3298 = vmax.f32 %v3256, 0.0
    %v3299 = vmax.f32 %v3261, 0.0
    %v3300 = vmax.f32 %v3266, 0.0
    %v3301 = vmax.f32 %v3271, 0.0
    %v3302 = vmax.f32 %v3276, 0.0
    %v3303 = vmax.f32 %v3281, 0.0
    %v3304 = vmax.f32 %v3286, 0.0
    %v3305 = vld [vmem:[#allocation10] sm:$0xff]
    %v3306 = vld [vmem:[#allocation10 + $0x8] sm:$0xff]
    %v3307 = vld [vmem:[#allocation10 + $0x10] sm:$0xff]
    %v3308 = vld [vmem:[#allocation10 + $0x18] sm:$0xff]
    %v3309 = vld [vmem:[#allocation10 + $0x20] sm:$0xff]
    %v3310 = vld [vmem:[#allocation10 + $0x28] sm:$0xff]
    %v3311 = vld [vmem:[#allocation10 + $0x30] sm:$0xff]
    %v3312 = vld [vmem:[#allocation10 + $0x38] sm:$0xff]
    %v3313 = vld [vmem:[#allocation10 + $0x40] sm:$0xff]
    %v3314 = vld [vmem:[#allocation10 + $0x48] sm:$0xff]
    %v3315 = vld [vmem:[#allocation10 + $0x50] sm:$0xff]
    %v3316 = vld [vmem:[#allocation10 + $0x58] sm:$0xff]
    %v3317 = vld [vmem:[#allocation10 + $0x60] sm:$0xff]
    %v3318 = vld [vmem:[#allocation10 + $0x68] sm:$0xff]
    %v3319 = vld [vmem:[#allocation10 + $0x70] sm:$0xff]
    %v3320 = vld [vmem:[#allocation10 + $0x78] sm:$0xff]
    %v3321 = vld [vmem:[#allocation12] sm:$0xff]
    %v3322 = vld [vmem:[#allocation12 + $0x8] sm:$0xff]
    %v3323 = vld [vmem:[#allocation12 + $0x10] sm:$0xff]
    %v3324 = vld [vmem:[#allocation12 + $0x18] sm:$0xff]
    %v3325 = vld [vmem:[#allocation12 + $0x20] sm:$0xff]
    %v3326 = vld [vmem:[#allocation12 + $0x28] sm:$0xff]
    %v3327 = vld [vmem:[#allocation12 + $0x30] sm:$0xff]
    %v3328 = vld [vmem:[#allocation12 + $0x38] sm:$0xff]
    %v3329 = vld [vmem:[#allocation12 + $0x40] sm:$0xff]
    %v3330 = vld [vmem:[#allocation12 + $0x48] sm:$0xff]
    %v3331 = vld [vmem:[#allocation12 + $0x50] sm:$0xff]
    %v3332 = vld [vmem:[#allocation12 + $0x58] sm:$0xff]
    %v3333 = vld [vmem:[#allocation12 + $0x60] sm:$0xff]
    %v3334 = vld [vmem:[#allocation12 + $0x68] sm:$0xff]
    %v3335 = vld [vmem:[#allocation12 + $0x70] sm:$0xff]
    %v3336 = vld [vmem:[#allocation12 + $0x78] sm:$0xff]
    %3338 = vset.pattern.permute.xlu0 0
    %3339 = vperm.xlu0 %3338, %v3321
    %v3340 = vpop.permute.xlu0 %3339
    %3343 = vset.pattern.permute.xlu0 0
    %3344 = vperm.xlu0 %3343, %v3322
    %v3345 = vpop.permute.xlu0 %3344
    %3348 = vset.pattern.permute.xlu0 0
    %3349 = vperm.xlu0 %3348, %v3323
    %v3350 = vpop.permute.xlu0 %3349
    %3353 = vset.pattern.permute.xlu0 0
    %3354 = vperm.xlu0 %3353, %v3324
    %v3355 = vpop.permute.xlu0 %3354
    %3358 = vset.pattern.permute.xlu0 0
    %3359 = vperm.xlu0 %3358, %v3325
    %v3360 = vpop.permute.xlu0 %3359
    %3363 = vset.pattern.permute.xlu0 0
    %3364 = vperm.xlu0 %3363, %v3326
    %v3365 = vpop.permute.xlu0 %3364
    %3368 = vset.pattern.permute.xlu0 0
    %3369 = vperm.xlu0 %3368, %v3327
    %v3370 = vpop.permute.xlu0 %3369
    %3373 = vset.pattern.permute.xlu0 0
    %3374 = vperm.xlu0 %3373, %v3328
    %v3375 = vpop.permute.xlu0 %3374
    %3378 = vset.pattern.permute.xlu0 0
    %3379 = vperm.xlu0 %3378, %v3329
    %v3380 = vpop.permute.xlu0 %3379
    %3383 = vset.pattern.permute.xlu0 0
    %3384 = vperm.xlu0 %3383, %v3330
    %v3385 = vpop.permute.xlu0 %3384
    %3388 = vset.pattern.permute.xlu0 0
    %3389 = vperm.xlu0 %3388, %v3331
    %v3390 = vpop.permute.xlu0 %3389
    %3393 = vset.pattern.permute.xlu0 0
    %3394 = vperm.xlu0 %3393, %v3332
    %v3395 = vpop.permute.xlu0 %3394
    %3398 = vset.pattern.permute.xlu0 0
    %3399 = vperm.xlu0 %3398, %v3333
    %v3400 = vpop.permute.xlu0 %3399
    %3403 = vset.pattern.permute.xlu0 0
    %3404 = vperm.xlu0 %3403, %v3334
    %v3405 = vpop.permute.xlu0 %3404
    %3408 = vset.pattern.permute.xlu0 0
    %3409 = vperm.xlu0 %3408, %v3335
    %v3410 = vpop.permute.xlu0 %3409
    %3413 = vset.pattern.permute.xlu0 0
    %3414 = vperm.xlu0 %3413, %v3336
    %v3415 = vpop.permute.xlu0 %3414
    %3417 = vmatprep.subr.mxu0 0.0
    %3418 = vmatpush1.msra.mxu0 %v3304
    %3419 = vmatprep.subr.mxu0 0.0
    %3420 = vmatpush1.msra.mxu0 %v3303
    %3421 = vmatprep.subr.mxu0 0.0
    %3422 = vmatpush1.msra.mxu0 %v3302
    %3423 = vmatprep.subr.mxu0 0.0
    %3424 = vmatpush1.msra.mxu0 %v3301
    %3425 = vmatprep.subr.mxu0 0.0
    %3426 = vmatpush1.msra.mxu0 %v3300
    %3427 = vmatprep.subr.mxu0 0.0
    %3428 = vmatpush1.msra.mxu0 %v3299
    %3429 = vmatprep.subr.mxu0 0.0
    %3430 = vmatpush1.msra.mxu0 %v3298
    %3431 = vmatprep.subr.mxu0 0.0
    %3432 = vmatpush1.msra.mxu0 %v3297
    %3433 = vmatprep.subr.mxu0 0.0
    %3434 = vmatpush1.msra.mxu0 %v3296
    %3435 = vmatprep.subr.mxu0 0.0
    %3436 = vmatpush1.msra.mxu0 %v3295
    %3437 = vmatprep.subr.mxu0 0.0
    %3438 = vmatpush1.msra.mxu0 %v3294
    %3439 = vmatprep.subr.mxu0 0.0
    %3440 = vmatpush1.msra.mxu0 %v3293
    %3441 = vmatprep.subr.mxu0 0.0
    %3442 = vmatpush1.msra.mxu0 %v3292
    %3443 = vmatprep.subr.mxu0 0.0
    %3444 = vmatpush1.msra.mxu0 %v3291
    %3445 = vmatprep.subr.mxu0 0.0
    %3446 = vmatpush1.msra.mxu0 %v3290
    %3447 = vmatprep.subr.mxu0 0.0
    %3448 = vmatpush1.msra.mxu0 %v3289
    %3449 = vmatprep.subr.mxu0 0.0
    %3450 = vmatpush2.msra.mxu0 0.0
    %3451 = vmatprep.subr.mxu0 0.0
    %3452 = vmatpush2.msra.mxu0 0.0
    %3453 = vmatprep.subr.mxu0 0.0
    %3454 = vmatpush2.msra.mxu0 0.0
    %3455 = vmatprep.subr.mxu0 0.0
    %3456 = vmatpush2.msra.mxu0 0.0
    %3457 = vmatprep.subr.mxu0 0.0
    %3458 = vmatpush2.msra.mxu0 0.0
    %3459 = vmatprep.subr.mxu0 0.0
    %3460 = vmatpush2.msra.mxu0 0.0
    %3461 = vmatprep.subr.mxu0 0.0
    %3462 = vmatpush2.msra.mxu0 0.0
    %3463 = vmatprep.subr.mxu0 0.0
    %3464 = vmatpush2.msra.mxu0 0.0
    %3465 = vmatprep.subr.mxu0 0.0
    %3466 = vmatpush2.msra.mxu0 0.0
    %3467 = vmatprep.subr.mxu0 0.0
    %3468 = vmatpush2.msra.mxu0 0.0
    %3469 = vmatprep.subr.mxu0 0.0
    %3470 = vmatpush2.msra.mxu0 0.0
    %3471 = vmatprep.subr.mxu0 0.0
    %3472 = vmatpush2.msra.mxu0 0.0
    %3473 = vmatprep.subr.mxu0 0.0
    %3474 = vmatpush2.msra.mxu0 0.0
    %3475 = vmatprep.subr.mxu0 0.0
    %3476 = vmatpush2.msra.mxu0 0.0
    %3477 = vmatprep.subr.mxu0 0.0
    %3478 = vmatpush2.msra.mxu0 0.0
    %3479 = vmatprep.subr.mxu0 0.0
    %3480 = vmatpush2.msra.mxu0 0.0
    %3481 = vmatprep.mubr.f32.mxu0 0.0
    %3482 = vmatmul.mubr.f32.gmra.mxu0 %v3305
    %v3483 = vpop.f32.mrf.mxu0
    %v3484 = vadd.f32 %v3340, %v3483
    %v3485 = vpop.f32.mrf.mxu0
    %3486 = vmatprep.mubr.f32.mxu0 0.0
    %3487 = vmatmul.mubr.f32.gmra.mxu0 %v3306
    %v3488 = vpop.f32.mrf.mxu0
    %v3489 = vadd.f32 %v3345, %v3488
    %v3490 = vpop.f32.mrf.mxu0
    %3491 = vmatprep.mubr.f32.mxu0 0.0
    %3492 = vmatmul.mubr.f32.gmra.mxu0 %v3307
    %v3493 = vpop.f32.mrf.mxu0
    %v3494 = vadd.f32 %v3350, %v3493
    %v3495 = vpop.f32.mrf.mxu0
    %3496 = vmatprep.mubr.f32.mxu0 0.0
    %3497 = vmatmul.mubr.f32.gmra.mxu0 %v3308
    %v3498 = vpop.f32.mrf.mxu0
    %v3499 = vadd.f32 %v3355, %v3498
    %v3500 = vpop.f32.mrf.mxu0
    %3501 = vmatprep.mubr.f32.mxu0 0.0
    %3502 = vmatmul.mubr.f32.gmra.mxu0 %v3309
    %v3503 = vpop.f32.mrf.mxu0
    %v3504 = vadd.f32 %v3360, %v3503
    %v3505 = vpop.f32.mrf.mxu0
    %3506 = vmatprep.mubr.f32.mxu0 0.0
    %3507 = vmatmul.mubr.f32.gmra.mxu0 %v3310
    %v3508 = vpop.f32.mrf.mxu0
    %v3509 = vadd.f32 %v3365, %v3508
    %v3510 = vpop.f32.mrf.mxu0
    %3511 = vmatprep.mubr.f32.mxu0 0.0
    %3512 = vmatmul.mubr.f32.gmra.mxu0 %v3311
    %v3513 = vpop.f32.mrf.mxu0
    %v3514 = vadd.f32 %v3370, %v3513
    %v3515 = vpop.f32.mrf.mxu0
    %3516 = vmatprep.mubr.f32.mxu0 0.0
    %3517 = vmatmul.mubr.f32.gmra.mxu0 %v3312
    %v3518 = vpop.f32.mrf.mxu0
    %v3519 = vadd.f32 %v3375, %v3518
    %v3520 = vpop.f32.mrf.mxu0
    %3521 = vmatprep.mubr.f32.mxu0 0.0
    %3522 = vmatmul.mubr.f32.gmra.mxu0 %v3313
    %v3523 = vpop.f32.mrf.mxu0
    %v3524 = vadd.f32 %v3380, %v3523
    %v3525 = vpop.f32.mrf.mxu0
    %3526 = vmatprep.mubr.f32.mxu0 0.0
    %3527 = vmatmul.mubr.f32.gmra.mxu0 %v3314
    %v3528 = vpop.f32.mrf.mxu0
    %v3529 = vadd.f32 %v3385, %v3528
    %v3530 = vpop.f32.mrf.mxu0
    %3531 = vmatprep.mubr.f32.mxu0 0.0
    %3532 = vmatmul.mubr.f32.gmra.mxu0 %v3315
    %v3533 = vpop.f32.mrf.mxu0
    %v3534 = vadd.f32 %v3390, %v3533
    %v3535 = vpop.f32.mrf.mxu0
    %3536 = vmatprep.mubr.f32.mxu0 0.0
    %3537 = vmatmul.mubr.f32.gmra.mxu0 %v3316
    %v3538 = vpop.f32.mrf.mxu0
    %v3539 = vadd.f32 %v3395, %v3538
    %v3540 = vpop.f32.mrf.mxu0
    %3541 = vmatprep.mubr.f32.mxu0 0.0
    %3542 = vmatmul.mubr.f32.gmra.mxu0 %v3317
    %v3543 = vpop.f32.mrf.mxu0
    %v3544 = vadd.f32 %v3400, %v3543
    %v3545 = vpop.f32.mrf.mxu0
    %3546 = vmatprep.mubr.f32.mxu0 0.0
    %3547 = vmatmul.mubr.f32.gmra.mxu0 %v3318
    %v3548 = vpop.f32.mrf.mxu0
    %v3549 = vadd.f32 %v3405, %v3548
    %v3550 = vpop.f32.mrf.mxu0
    %3551 = vmatprep.mubr.f32.mxu0 0.0
    %3552 = vmatmul.mubr.f32.gmra.mxu0 %v3319
    %v3553 = vpop.f32.mrf.mxu0
    %v3554 = vadd.f32 %v3410, %v3553
    %v3555 = vpop.f32.mrf.mxu0
    %3556 = vmatprep.mubr.f32.mxu0 0.0
    %3557 = vmatmul.mubr.f32.gmra.mxu0 %v3320
    %v3558 = vpop.f32.mrf.mxu0
    %v3559 = vadd.f32 %v3415, %v3558
    %v3560 = vpop.f32.mrf.mxu0
    %3561 = vdwg.mxu0
    %v3562 = vtanh.pop %v3484
    %v3563 = vtanh.pop %v3489
    %v3564 = vtanh.pop %v3494
    %v3565 = vtanh.pop %v3499
    %v3566 = vtanh.pop %v3504
    %v3567 = vtanh.pop %v3509
    %v3568 = vtanh.pop %v3514
    %v3569 = vtanh.pop %v3519
    %v3570 = vtanh.pop %v3524
    %v3571 = vtanh.pop %v3529
    %v3572 = vtanh.pop %v3534
    %v3573 = vtanh.pop %v3539
    %v3574 = vtanh.pop %v3544
    %v3575 = vtanh.pop %v3549
    %v3576 = vtanh.pop %v3554
    %v3577 = vtanh.pop %v3559
    %v3578 = vld [vmem:[%s9] sm:$0xff]
    %v3579 = vld [vmem:[%s10] sm:$0xff]
    %3581 = vset.pattern.permute.xlu0 0
    %3582 = vperm.xlu0 %3581, %v3579
    %v3583 = vpop.permute.xlu0 %3582
    %3585 = vmatprep.subr.mxu0 0.0
    %3586 = vmatpush1.msra.mxu0 %v3577
    %3587 = vmatprep.subr.mxu0 0.0
    %3588 = vmatpush1.msra.mxu0 %v3576
    %3589 = vmatprep.subr.mxu0 0.0
    %3590 = vmatpush1.msra.mxu0 %v3575
    %3591 = vmatprep.subr.mxu0 0.0
    %3592 = vmatpush1.msra.mxu0 %v3574
    %3593 = vmatprep.subr.mxu0 0.0
    %3594 = vmatpush1.msra.mxu0 %v3573
    %3595 = vmatprep.subr.mxu0 0.0
    %3596 = vmatpush1.msra.mxu0 %v3572
    %3597 = vmatprep.subr.mxu0 0.0
    %3598 = vmatpush1.msra.mxu0 %v3571
    %3599 = vmatprep.subr.mxu0 0.0
    %3600 = vmatpush1.msra.mxu0 %v3570
    %3601 = vmatprep.subr.mxu0 0.0
    %3602 = vmatpush1.msra.mxu0 %v3569
    %3603 = vmatprep.subr.mxu0 0.0
    %3604 = vmatpush1.msra.mxu0 %v3568
    %3605 = vmatprep.subr.mxu0 0.0
    %3606 = vmatpush1.msra.mxu0 %v3567
    %3607 = vmatprep.subr.mxu0 0.0
    %3608 = vmatpush1.msra.mxu0 %v3566
    %3609 = vmatprep.subr.mxu0 0.0
    %3610 = vmatpush1.msra.mxu0 %v3565
    %3611 = vmatprep.subr.mxu0 0.0
    %3612 = vmatpush1.msra.mxu0 %v3564
    %3613 = vmatprep.subr.mxu0 0.0
    %3614 = vmatpush1.msra.mxu0 %v3563
    %3615 = vmatprep.subr.mxu0 0.0
    %3616 = vmatpush1.msra.mxu0 %v3562
    %3617 = vmatprep.subr.mxu0 0.0
    %3618 = vmatpush2.msra.mxu0 0.0
    %3619 = vmatprep.subr.mxu0 0.0
    %3620 = vmatpush2.msra.mxu0 0.0
    %3621 = vmatprep.subr.mxu0 0.0
    %3622 = vmatpush2.msra.mxu0 0.0
    %3623 = vmatprep.subr.mxu0 0.0
    %3624 = vmatpush2.msra.mxu0 0.0
    %3625 = vmatprep.subr.mxu0 0.0
    %3626 = vmatpush2.msra.mxu0 0.0
    %3627 = vmatprep.subr.mxu0 0.0
    %3628 = vmatpush2.msra.mxu0 0.0
    %3629 = vmatprep.subr.mxu0 0.0
    %3630 = vmatpush2.msra.mxu0 0.0
    %3631 = vmatprep.subr.mxu0 0.0
    %3632 = vmatpush2.msra.mxu0 0.0
    %3633 = vmatprep.subr.mxu0 0.0
    %3634 = vmatpush2.msra.mxu0 0.0
    %3635 = vmatprep.subr.mxu0 0.0
    %3636 = vmatpush2.msra.mxu0 0.0
    %3637 = vmatprep.subr.mxu0 0.0
    %3638 = vmatpush2.msra.mxu0 0.0
    %3639 = vmatprep.subr.mxu0 0.0
    %3640 = vmatpush2.msra.mxu0 0.0
    %3641 = vmatprep.subr.mxu0 0.0
    %3642 = vmatpush2.msra.mxu0 0.0
    %3643 = vmatprep.subr.mxu0 0.0
    %3644 = vmatpush2.msra.mxu0 0.0
    %3645 = vmatprep.subr.mxu0 0.0
    %3646 = vmatpush2.msra.mxu0 0.0
    %3647 = vmatprep.subr.mxu0 0.0
    %3648 = vmatpush2.msra.mxu0 0.0
    %3649 = vmatprep.mubr.f32.mxu0 0.0
    %3650 = vmatmul.mubr.f32.gmra.mxu0 %v3578
    %v3651 = vpop.f32.mrf.mxu0
    %v3652 = vadd.f32 %v3583, %v3651
    %v3653 = vpop.f32.mrf.mxu0
    %3654 = vdwg.mxu0
    %v3655 = vlaneseq
    %v3656 = vshrl.u32 %v3655, 7
    %vm3657 = vcmp.lt.s32.totalorder %v3656, 7
    %v3658 = vsel %vm3657, %v3652, -1e+30
    %v3659 = vrot.slane %v3658, 4
    %v3660 = vmax.f32 %v3658, %v3659
    %v3661 = vrot.slane %v3660, 2
    %v3662 = vmax.f32 %v3660, %v3661
    %v3663 = vrot.slane %v3662, 1
    %v3664 = vmax.f32 %v3662, %v3663
    %v3665 = vsub.f32 %v3652, %v3664
    %v3666 = vmul.f32 %v3665, 1.442695
    %v3667 = vpow.pop %v3666
    %v3668 = vsel %vm3657, %v3667, 0.0
    %v3669 = vrot.slane %v3668, 4
    %v3670 = vadd.f32 %v3668, %v3669
    %v3671 = vrot.slane %v3670, 2
    %v3672 = vadd.f32 %v3670, %v3671
    %v3673 = vrot.slane %v3672, 1
    %v3674 = vadd.f32 %v3672, %v3673
    %v3675 = vlog2.pop %v3674
    %v3676 = vmul.f32 %v3675, 0.6931472
    %v3677 = vsub.f32 %v3665, %v3676
    %v3678 = vrcp.pop %v3674
    %v3679 = vmul.f32 %v3668, %v3678
    %v3680 = vmul.f32 %v3679, %v3677
    %v3681 = vrot.slane %v3680, 4
    %v3682 = vadd.f32 %v3680, %v3681
    %v3683 = vrot.slane %v3682, 2
    %v3684 = vadd.f32 %v3682, %v3683
    %v3685 = vrot.slane %v3684, 1
    %v3686 = vadd.f32 %v3684, %v3685
    %v3687 = vsub.f32 0.0, %v3686
    %vm3688 = vcmp.ge.f32.partialorder %v3658, %v3664
    %v3689 = vcvt.s32.f32 %v3656
    %v3690 = vsel %vm3688, %v3689, 7.0
    %v3691 = vrot.slane %v3690, 4
    %v3692 = vmin.f32 %v3690, %v3691
    %v3693 = vrot.slane %v3692, 2
    %v3694 = vmin.f32 %v3692, %v3693
    %v3695 = vrot.slane %v3694, 1
    %v3696 = vmin.f32 %v3694, %v3695
    %vm3697 = vcmp.eq.s32.totalorder %v3656, 7
    %v3698 = vsel %vm3697, %v3652, 0.0
    %v3699 = vrot.slane %v3698, 4
    %v3700 = vadd.f32 %v3698, %v3699
    %v3701 = vrot.slane %v3700, 2
    %v3702 = vadd.f32 %v3700, %v3701
    %v3703 = vrot.slane %v3702, 1
    %v3704 = vadd.f32 %v3702, %v3703
    %v3705 = vsel %vm3657, %v3677, 0.0
    %v3706 = vsel %vm3697, %v3704, 0.0
    %v3707 = vadd.f32 %v3705, %v3706
    %vm3708 = vcmp.eq.s32.totalorder %v3656, 0
    %v3709 = vsel %vm3708, %v3696, 0.0
    %vm3710 = vcmp.eq.s32.totalorder %v3656, 1
    %v3711 = vsel %vm3710, %v3687, 0.0
    %v3712 = vadd.f32 %v3709, %v3711
    %3713 = vst [vmem:[%s11] sm:$0xff] %v3707
    %3714 = vst [vmem:[%s11 + $0x8] sm:$0xff] %v3712
    // Predicated region
    $region74: #{act.1} parent=1 // pred_check
      _
    $region75: #{act.1} parent=1 // pred_check_branch
      %3716 = sbr.rel (0) target = $region77
    $region76: #{act.1} parent=1 // pred_region
      _
    $region77: #{act.1} parent=1 // pred_fallthru
      _
    // Predicated region
    $region78: #{act.1} parent=1 // pred_check
      _
    $region79: #{act.1} parent=1 // pred_check_branch
      %3718 = sbr.rel (0) target = $region81
    $region80: #{act.1} parent=1 // pred_region
      _
    $region81: #{act.1} parent=1 // pred_fallthru
      _
    %3719 = vsyncpa [#allocation3], 1
    %3720 = vsyncpa [#allocation5], 1
    %3721 = vsyncpa [#allocation8], 1
    %3722 = vsyncpa [#allocation11], 1

</llo_original>
